<compile_context>
chip_gen: v7x
topology: tpu7x:2x2x1
jax: 0.10.0
libtpu: 0.0.40
codegen_flags: <defaults>
</compile_context>

<pallas_src>
import functools

import numpy as np
import jax
import jax.numpy as jnp
from jax import lax
from jax.experimental import pallas as pl
from jax.experimental.pallas import tpu as pltpu


# -----------------------------------------------------------------------------
# Fused kernel: VPU shifted-FMA time conv + SSA + 1x1 conv/BN/ELU + avg-pool mixer
# -----------------------------------------------------------------------------
def _encoder_kernel(xp_ref, w_sref, b_sref, g_sref, wchan_ref, shift_ref,
                    pool_ref, o_ref, *, chans, F1, K, T, block_b,
                    inv_sqrt_samples):
    # ---- LightweightConv1d as a K-tap shifted FMA on the VPU -----------------
    # xp_ref holds block_b batches stacked on the sublane axis, already 'same'
    # zero padded along time, so tap k just reads columns [k : k+T].
    xp = xp_ref[...]                                    # (block_b*chans, T+K-1) f32
    shifts = [xp[:, k:k + T] for k in range(K)]         # K static lane slices
    hf = []                                             # per-filter (R, T) strips
    for f in range(F1):                                 # static unroll, F1 small
        acc = shifts[0] * w_sref[f, 0]
        for k in range(1, K):
            acc = acc + shifts[k] * w_sref[f, k]
        hf.append(acc + b_sref[f])                      # conv bias added per strip

    g = g_sref[0]                                       # SSA gamma (SMEM scalar)
    wchan = wchan_ref[...]                              # (F2, C) bf16, BN scale folded
    shift = shift_ref[...]                              # (F2, 1) f32
    pool = pool_ref[...]                                # (T, Lp) bf16, lane-dense

    for bb in range(block_b):                           # static unroll over batches
        r0 = bb * chans
        # f-major channel order (row = f*chans + c); wchan columns were pre-permuted
        # at init, so the result matches torch's c*F1+f ordering exactly.
        h = jnp.concatenate([s[r0:r0 + chans, :] for s in hf], axis=0)   # (C, T)

        # ---- SSA channel attention (attention matrix is discarded upstream) ---
        scores = lax.dot_general(h, h, (((1,), (1,)), ((), ())),
                                 preferred_element_type=jnp.float32)     # (C, C)
        scores = scores * inv_sqrt_samples
        scores = scores - jnp.max(scores, axis=-1, keepdims=True)
        e = jnp.exp(scores)
        attn = e * pl.reciprocal(jnp.sum(e, axis=-1, keepdims=True), approx=True)
        h2 = g * jnp.dot(attn, h, preferred_element_type=jnp.float32) + h  # (C, T)

        # ---- 1x1 chanConv + folded BatchNorm + ELU (bf16 MXU, f32 accumulate) --
        y = jnp.dot(wchan, h2.astype(jnp.bfloat16),
                    preferred_element_type=jnp.float32) + shift            # (F2, T)
        y = jnp.where(y > 0.0, y, jnp.exp(jnp.minimum(y, 0.0)) - 1.0)      # ELU(1)

        # ---- Mixer1D multi-scale average pooling, lane-dense 128-col output ----
        o_ref[bb] = jnp.dot(y.astype(jnp.bfloat16), pool,
                            preferred_element_type=jnp.float32).astype(o_ref.dtype)


def efficient_encoder_forward(x, p, samples, pool_kernels, *, block_b=None):
    B, chans, T = x.shape
    F1, K = p["w_time"].shape
    C = chans * F1
    F2 = p["w_chan_scaled"].shape[0]
    Lp = p["pool_pad"].shape[1]
    Ltot = sum(T // k for k in pool_kernels)

    if block_b is None:
        # Prefer exactly two grid steps (one per v7x TensorCore) when the stacked
        # row block stays 8-sublane aligned; otherwise take the whole batch at once.
        if B % 2 == 0 and ((B // 2) * chans) % 8 == 0:
            block_b = B // 2
        else:
            block_b = B
    assert B % block_b == 0
    grid_b = B // block_b

    # 'same' zero padding + (batch, chan) flatten done once in XLA, so the kernel
    # reads aligned (block_b*chans, T+K-1) tiles with no in-kernel pad or reshape.
    pad_l = (K - 1) // 2
    xp = jnp.pad(x, ((0, 0), (0, 0), (pad_l, K - 1 - pad_l)))
    xp = xp.reshape(B * chans, T + K - 1)

    kernel = functools.partial(
        _encoder_kernel, chans=chans, F1=F1, K=K, T=T, block_b=block_b,
        inv_sqrt_samples=1.0 / float(np.sqrt(samples)))

    def smem_spec():
        return pl.BlockSpec(memory_space=pltpu.MemorySpace.SMEM)

    pooled = pl.pallas_call(
        kernel,
        out_shape=jax.ShapeDtypeStruct((B, F2, Lp), jnp.float32),
        grid_spec=pltpu.PrefetchScalarGridSpec(
            num_scalar_prefetch=0,
            grid=(grid_b,),
            in_specs=[
                pl.BlockSpec((block_b * chans, T + K - 1), lambda i: (i, 0)),  # x block
                smem_spec(),                                     # time-conv taps (F1,K)
                smem_spec(),                                     # time-conv bias (F1,)
                smem_spec(),                                     # SSA gamma (1,)
                pl.BlockSpec((F2, C), lambda i: (0, 0)),         # 1x1 conv (scaled, perm)
                pl.BlockSpec((F2, 1), lambda i: (0, 0)),         # BN shift (+conv bias)
                pl.BlockSpec((T, Lp), lambda i: (0, 0)),         # pooling matrix (padded)
            ],
            out_specs=pl.BlockSpec((block_b, F2, Lp), lambda i: (i, 0, 0)),
        ),
        compiler_params=pltpu.CompilerParams(dimension_semantics=("parallel",)),
    )(xp, p["w_time"], p["b_time"], p["gamma"], p["w_chan_scaled"],
      p["shift"], p["pool_pad"])

    # Mixer1D flatten: per branch (B, F2, L_k) -> (B, F2*L_k), concat branches.
    pooled = pooled[:, :, :Ltot]
    segs, off = [], 0
    for k in pool_kernels:
        n = T // k
        segs.append(pooled[:, :, off:off + n].reshape(B, -1))
        off += n
    return jnp.concatenate(segs, axis=1)


# -----------------------------------------------------------------------------
# Parameter construction (one-time host work: pooling matrix, channel permutation,
# BN folding, bf16 weight casts) + pure-JAX f32 reference.
# -----------------------------------------------------------------------------
def build_pool_matrix(T, pool_kernels):
    cols = []
    for k in pool_kernels:
        n = T // k
        P = np.zeros((T, n), np.float32)
        for j in range(n):
            P[j * k:(j + 1) * k, j] = 1.0 / k
        cols.append(P)
    return np.concatenate(cols, axis=1)          # (T, Ltot)


def init_params(key, chans, samples, F1, F2, K, pool_kernels):
    C = chans * F1
    k1, k2, k3, k4, k5, k6 = jax.random.split(key, 6)
    w_time = 0.1 * jax.random.normal(k1, (F1, K), jnp.float32)
    b_time = 0.05 * jax.random.normal(k2, (F1,), jnp.float32)
    gamma = jnp.full((1,), 0.5, jnp.float32)                     # SSA residual gain
    w_chan = jax.random.normal(k3, (F2, C), jnp.float32) / np.sqrt(C)
    b_chan = 0.1 * jax.random.normal(k4, (F2,), jnp.float32)
    bn_g = 1.0 + 0.1 * jax.random.normal(k5, (F2,), jnp.float32)
    bn_b = 0.1 * jax.random.normal(k6, (F2,), jnp.float32)
    bn_mean = jnp.zeros((F2,), jnp.float32)
    bn_var = jnp.ones((F2,), jnp.float32)
    eps = 1e-5
    scale = bn_g / jnp.sqrt(bn_var + eps)                                   # (F2,)
    shift = (bn_b + (b_chan - bn_mean) * scale).reshape(F2, 1)              # (F2, 1)

    # Kernel-internal channel order is f-major (i = f*chans + c); torch is c*F1 + f.
    perm = np.array([(i % chans) * F1 + (i // chans) for i in range(C)], np.int32)
    w_chan_perm = np.asarray(w_chan)[:, perm]
    # Fold the BatchNorm scale into the 1x1-conv rows; store bf16 for the MXU.
    w_chan_scaled = jnp.asarray(np.asarray(scale)[:, None] * w_chan_perm,
                                dtype=jnp.bfloat16)

    pool_np = build_pool_matrix(samples, pool_kernels)
    Ltot = pool_np.shape[1]
    Lp = ((Ltot + 127) // 128) * 128             # lane-dense output width
    pool_pad = np.zeros((samples, Lp), np.float32)
    pool_pad[:, :Ltot] = pool_np

    return {
        # kernel-side params
        "w_time": w_time, "b_time": b_time, "gamma": gamma,
        "w_chan_scaled": w_chan_scaled, "shift": shift,
        "pool_pad": jnp.asarray(pool_pad, jnp.bfloat16),
        # reference-side params
        "w_chan": w_chan, "scale": scale.reshape(F2, 1),
        "pool": jnp.asarray(pool_np),
    }


def reference_forward(x, p, samples, pool_kernels):
    hp = jax.lax.Precision.HIGHEST
    B, chans, T = x.shape
    F1, K = p["w_time"].shape
    pad = (K - 1) // 2
    xp = jnp.pad(x, ((0, 0), (0, 0), (pad, K - 1 - pad)))
    out = jnp.zeros((B, chans, F1, T), jnp.float32)
    for k in range(K):
        out = out + xp[:, :, None, k:k + T] * p["w_time"][None, None, :, k:k + 1]
    out = out + p["b_time"][None, None, :, None]
    h = out.reshape(B, chans * F1, T)                       # torch channel order c*F1+f
    scores = jnp.einsum("bct,bdt->bcd", h, h, precision=hp) / np.sqrt(samples)
    attn = jax.nn.softmax(scores, axis=-1)
    h2 = p["gamma"][0] * jnp.einsum("bcd,bdt->bct", attn, h, precision=hp) + h
    y = jnp.einsum("fc,bct->bft", p["w_chan"], h2, precision=hp)
    y = y * p["scale"][None] + p["shift"][None]
    y = jnp.where(y > 0.0, y, jnp.exp(jnp.minimum(y, 0.0)) - 1.0)
    pooled = jnp.einsum("bft,tl->bfl", y, p["pool"], precision=hp)
    segs, off = [], 0
    for k in pool_kernels:
        n = T // k
        segs.append(pooled[:, :, off:off + n].reshape(B, -1))
        off += n
    return jnp.concatenate(segs, axis=1)


if __name__ == "__main__":
    B, CHANS, SAMPLES = 4, 4, 256
    F1, F2, K = 8, 16, 15
    POOL_KERNELS = [16, 32, 64]

    key = jax.random.PRNGKey(0)
    kx, kp = jax.random.split(key)
    x = jax.random.normal(kx, (B, CHANS, SAMPLES), jnp.float32)
    params = init_params(kp, CHANS, SAMPLES, F1, F2, K, POOL_KERNELS)

    feat = efficient_encoder_forward(x, params, SAMPLES, POOL_KERNELS)
    feat = jax.block_until_ready(feat)

    expected_dim = F2 * sum(SAMPLES // k for k in POOL_KERNELS)
    assert feat.shape == (B, expected_dim), feat.shape

    ref = jax.block_until_ready(reference_forward(x, params, SAMPLES, POOL_KERNELS))
    err = float(np.max(np.abs(np.asarray(feat) - np.asarray(ref))))
    assert np.allclose(np.asarray(feat), np.asarray(ref), atol=5e-2, rtol=5e-2), err

    print("KERNEL_OK")
</pallas_src>

<mosaic_0001>
module attributes {stable_mosaic.version = 11 : i64} {
  func.func @_encoder_kernel(%arg0: i32, %arg1: memref<8x270xf32, #tpu.memory_space<vmem>>, %arg2: memref<8x15xf32, #tpu.memory_space<smem>>, %arg3: memref<8xf32, #tpu.memory_space<smem>>, %arg4: memref<1xf32, #tpu.memory_space<smem>>, %arg5: memref<16x32xbf16, #tpu.memory_space<vmem>>, %arg6: memref<16x1xf32, #tpu.memory_space<vmem>>, %arg7: memref<256x128xbf16, #tpu.memory_space<vmem>>, %arg8: memref<2x16x128xf32, #tpu.memory_space<vmem>>) attributes {dimension_semantics = [#tpu.dimension_semantics<parallel>], iteration_bounds = array<i64: 2>, scalar_prefetch = 0 : i64, scratch_operands = 0 : i64, tpu.core_type = #tpu.core_type<tc>, window_params = [{transform_indices = @transform_0, window_bounds = array<i64: 8, 270>}, {transform_indices = @transform_1, window_bounds = array<i64: 8, 15>}, {transform_indices = @transform_2, window_bounds = array<i64: 8>}, {transform_indices = @transform_3, window_bounds = array<i64: 1>}, {pipeline_mode = #tpu.pipeline_mode<synchronous>, transform_indices = @transform_4, window_bounds = array<i64: 16, 32>}, {pipeline_mode = #tpu.pipeline_mode<synchronous>, transform_indices = @transform_5, window_bounds = array<i64: 16, 1>}, {pipeline_mode = #tpu.pipeline_mode<synchronous>, transform_indices = @transform_6, window_bounds = array<i64: 256, 128>}, {transform_indices = @transform_7, window_bounds = array<i64: 2, 16, 128>}]} {
    %c0 = arith.constant 0 : index
    %c0_0 = arith.constant 0 : index
    %0 = vector.load %arg1[%c0, %c0_0] : memref<8x270xf32, #tpu.memory_space<vmem>>, vector<8x270xf32>
    %1 = vector.extract_strided_slice %0 {offsets = [0, 0], sizes = [8, 256], strides = [1, 1]} : vector<8x270xf32> to vector<8x256xf32>
    %2 = vector.extract_strided_slice %0 {offsets = [0, 1], sizes = [8, 256], strides = [1, 1]} : vector<8x270xf32> to vector<8x256xf32>
    %3 = vector.extract_strided_slice %0 {offsets = [0, 2], sizes = [8, 256], strides = [1, 1]} : vector<8x270xf32> to vector<8x256xf32>
    %4 = vector.extract_strided_slice %0 {offsets = [0, 3], sizes = [8, 256], strides = [1, 1]} : vector<8x270xf32> to vector<8x256xf32>
    %5 = vector.extract_strided_slice %0 {offsets = [0, 4], sizes = [8, 256], strides = [1, 1]} : vector<8x270xf32> to vector<8x256xf32>
    %6 = vector.extract_strided_slice %0 {offsets = [0, 5], sizes = [8, 256], strides = [1, 1]} : vector<8x270xf32> to vector<8x256xf32>
    %7 = vector.extract_strided_slice %0 {offsets = [0, 6], sizes = [8, 256], strides = [1, 1]} : vector<8x270xf32> to vector<8x256xf32>
    %8 = vector.extract_strided_slice %0 {offsets = [0, 7], sizes = [8, 256], strides = [1, 1]} : vector<8x270xf32> to vector<8x256xf32>
    %9 = vector.extract_strided_slice %0 {offsets = [0, 8], sizes = [8, 256], strides = [1, 1]} : vector<8x270xf32> to vector<8x256xf32>
    %10 = vector.extract_strided_slice %0 {offsets = [0, 9], sizes = [8, 256], strides = [1, 1]} : vector<8x270xf32> to vector<8x256xf32>
    %11 = vector.extract_strided_slice %0 {offsets = [0, 10], sizes = [8, 256], strides = [1, 1]} : vector<8x270xf32> to vector<8x256xf32>
    %12 = vector.extract_strided_slice %0 {offsets = [0, 11], sizes = [8, 256], strides = [1, 1]} : vector<8x270xf32> to vector<8x256xf32>
    %13 = vector.extract_strided_slice %0 {offsets = [0, 12], sizes = [8, 256], strides = [1, 1]} : vector<8x270xf32> to vector<8x256xf32>
    %14 = vector.extract_strided_slice %0 {offsets = [0, 13], sizes = [8, 256], strides = [1, 1]} : vector<8x270xf32> to vector<8x256xf32>
    %15 = vector.extract_strided_slice %0 {offsets = [0, 14], sizes = [8, 256], strides = [1, 1]} : vector<8x270xf32> to vector<8x256xf32>
    %c0_1 = arith.constant 0 : index
    %c0_2 = arith.constant 0 : index
    %16 = memref.load %arg2[%c0_1, %c0_2] : memref<8x15xf32, #tpu.memory_space<smem>>
    %17 = vector.broadcast %16 : f32 to vector<8x256xf32>
    %18 = arith.mulf %1, %17 : vector<8x256xf32>
    %c0_3 = arith.constant 0 : index
    %c1 = arith.constant 1 : index
    %19 = memref.load %arg2[%c0_3, %c1] : memref<8x15xf32, #tpu.memory_space<smem>>
    %20 = vector.broadcast %19 : f32 to vector<8x256xf32>
    %21 = arith.mulf %2, %20 : vector<8x256xf32>
    %22 = arith.addf %18, %21 : vector<8x256xf32>
    %c0_4 = arith.constant 0 : index
    %c2 = arith.constant 2 : index
    %23 = memref.load %arg2[%c0_4, %c2] : memref<8x15xf32, #tpu.memory_space<smem>>
    %24 = vector.broadcast %23 : f32 to vector<8x256xf32>
    %25 = arith.mulf %3, %24 : vector<8x256xf32>
    %26 = arith.addf %22, %25 : vector<8x256xf32>
    %c0_5 = arith.constant 0 : index
    %c3 = arith.constant 3 : index
    %27 = memref.load %arg2[%c0_5, %c3] : memref<8x15xf32, #tpu.memory_space<smem>>
    %28 = vector.broadcast %27 : f32 to vector<8x256xf32>
    %29 = arith.mulf %4, %28 : vector<8x256xf32>
    %30 = arith.addf %26, %29 : vector<8x256xf32>
    %c0_6 = arith.constant 0 : index
    %c4 = arith.constant 4 : index
    %31 = memref.load %arg2[%c0_6, %c4] : memref<8x15xf32, #tpu.memory_space<smem>>
    %32 = vector.broadcast %31 : f32 to vector<8x256xf32>
    %33 = arith.mulf %5, %32 : vector<8x256xf32>
    %34 = arith.addf %30, %33 : vector<8x256xf32>
    %c0_7 = arith.constant 0 : index
    %c5 = arith.constant 5 : index
    %35 = memref.load %arg2[%c0_7, %c5] : memref<8x15xf32, #tpu.memory_space<smem>>
    %36 = vector.broadcast %35 : f32 to vector<8x256xf32>
    %37 = arith.mulf %6, %36 : vector<8x256xf32>
    %38 = arith.addf %34, %37 : vector<8x256xf32>
    %c0_8 = arith.constant 0 : index
    %c6 = arith.constant 6 : index
    %39 = memref.load %arg2[%c0_8, %c6] : memref<8x15xf32, #tpu.memory_space<smem>>
    %40 = vector.broadcast %39 : f32 to vector<8x256xf32>
    %41 = arith.mulf %7, %40 : vector<8x256xf32>
    %42 = arith.addf %38, %41 : vector<8x256xf32>
    %c0_9 = arith.constant 0 : index
    %c7 = arith.constant 7 : index
    %43 = memref.load %arg2[%c0_9, %c7] : memref<8x15xf32, #tpu.memory_space<smem>>
    %44 = vector.broadcast %43 : f32 to vector<8x256xf32>
    %45 = arith.mulf %8, %44 : vector<8x256xf32>
    %46 = arith.addf %42, %45 : vector<8x256xf32>
    %c0_10 = arith.constant 0 : index
    %c8 = arith.constant 8 : index
    %47 = memref.load %arg2[%c0_10, %c8] : memref<8x15xf32, #tpu.memory_space<smem>>
    %48 = vector.broadcast %47 : f32 to vector<8x256xf32>
    %49 = arith.mulf %9, %48 : vector<8x256xf32>
    %50 = arith.addf %46, %49 : vector<8x256xf32>
    %c0_11 = arith.constant 0 : index
    %c9 = arith.constant 9 : index
    %51 = memref.load %arg2[%c0_11, %c9] : memref<8x15xf32, #tpu.memory_space<smem>>
    %52 = vector.broadcast %51 : f32 to vector<8x256xf32>
    %53 = arith.mulf %10, %52 : vector<8x256xf32>
    %54 = arith.addf %50, %53 : vector<8x256xf32>
    %c0_12 = arith.constant 0 : index
    %c10 = arith.constant 10 : index
    %55 = memref.load %arg2[%c0_12, %c10] : memref<8x15xf32, #tpu.memory_space<smem>>
    %56 = vector.broadcast %55 : f32 to vector<8x256xf32>
    %57 = arith.mulf %11, %56 : vector<8x256xf32>
    %58 = arith.addf %54, %57 : vector<8x256xf32>
    %c0_13 = arith.constant 0 : index
    %c11 = arith.constant 11 : index
    %59 = memref.load %arg2[%c0_13, %c11] : memref<8x15xf32, #tpu.memory_space<smem>>
    %60 = vector.broadcast %59 : f32 to vector<8x256xf32>
    %61 = arith.mulf %12, %60 : vector<8x256xf32>
    %62 = arith.addf %58, %61 : vector<8x256xf32>
    %c0_14 = arith.constant 0 : index
    %c12 = arith.constant 12 : index
    %63 = memref.load %arg2[%c0_14, %c12] : memref<8x15xf32, #tpu.memory_space<smem>>
    %64 = vector.broadcast %63 : f32 to vector<8x256xf32>
    %65 = arith.mulf %13, %64 : vector<8x256xf32>
    %66 = arith.addf %62, %65 : vector<8x256xf32>
    %c0_15 = arith.constant 0 : index
    %c13 = arith.constant 13 : index
    %67 = memref.load %arg2[%c0_15, %c13] : memref<8x15xf32, #tpu.memory_space<smem>>
    %68 = vector.broadcast %67 : f32 to vector<8x256xf32>
    %69 = arith.mulf %14, %68 : vector<8x256xf32>
    %70 = arith.addf %66, %69 : vector<8x256xf32>
    %c0_16 = arith.constant 0 : index
    %c14 = arith.constant 14 : index
    %71 = memref.load %arg2[%c0_16, %c14] : memref<8x15xf32, #tpu.memory_space<smem>>
    %72 = vector.broadcast %71 : f32 to vector<8x256xf32>
    %73 = arith.mulf %15, %72 : vector<8x256xf32>
    %74 = arith.addf %70, %73 : vector<8x256xf32>
    %c0_17 = arith.constant 0 : index
    %75 = memref.load %arg3[%c0_17] : memref<8xf32, #tpu.memory_space<smem>>
    %76 = vector.broadcast %75 : f32 to vector<8x256xf32>
    %77 = arith.addf %74, %76 : vector<8x256xf32>
    %c1_18 = arith.constant 1 : index
    %c0_19 = arith.constant 0 : index
    %78 = memref.load %arg2[%c1_18, %c0_19] : memref<8x15xf32, #tpu.memory_space<smem>>
    %79 = vector.broadcast %78 : f32 to vector<8x256xf32>
    %80 = arith.mulf %1, %79 : vector<8x256xf32>
    %c1_20 = arith.constant 1 : index
    %c1_21 = arith.constant 1 : index
    %81 = memref.load %arg2[%c1_20, %c1_21] : memref<8x15xf32, #tpu.memory_space<smem>>
    %82 = vector.broadcast %81 : f32 to vector<8x256xf32>
    %83 = arith.mulf %2, %82 : vector<8x256xf32>
    %84 = arith.addf %80, %83 : vector<8x256xf32>
    %c1_22 = arith.constant 1 : index
    %c2_23 = arith.constant 2 : index
    %85 = memref.load %arg2[%c1_22, %c2_23] : memref<8x15xf32, #tpu.memory_space<smem>>
    %86 = vector.broadcast %85 : f32 to vector<8x256xf32>
    %87 = arith.mulf %3, %86 : vector<8x256xf32>
    %88 = arith.addf %84, %87 : vector<8x256xf32>
    %c1_24 = arith.constant 1 : index
    %c3_25 = arith.constant 3 : index
    %89 = memref.load %arg2[%c1_24, %c3_25] : memref<8x15xf32, #tpu.memory_space<smem>>
    %90 = vector.broadcast %89 : f32 to vector<8x256xf32>
    %91 = arith.mulf %4, %90 : vector<8x256xf32>
    %92 = arith.addf %88, %91 : vector<8x256xf32>
    %c1_26 = arith.constant 1 : index
    %c4_27 = arith.constant 4 : index
    %93 = memref.load %arg2[%c1_26, %c4_27] : memref<8x15xf32, #tpu.memory_space<smem>>
    %94 = vector.broadcast %93 : f32 to vector<8x256xf32>
    %95 = arith.mulf %5, %94 : vector<8x256xf32>
    %96 = arith.addf %92, %95 : vector<8x256xf32>
    %c1_28 = arith.constant 1 : index
    %c5_29 = arith.constant 5 : index
    %97 = memref.load %arg2[%c1_28, %c5_29] : memref<8x15xf32, #tpu.memory_space<smem>>
    %98 = vector.broadcast %97 : f32 to vector<8x256xf32>
    %99 = arith.mulf %6, %98 : vector<8x256xf32>
    %100 = arith.addf %96, %99 : vector<8x256xf32>
    %c1_30 = arith.constant 1 : index
    %c6_31 = arith.constant 6 : index
    %101 = memref.load %arg2[%c1_30, %c6_31] : memref<8x15xf32, #tpu.memory_space<smem>>
    %102 = vector.broadcast %101 : f32 to vector<8x256xf32>
    %103 = arith.mulf %7, %102 : vector<8x256xf32>
    %104 = arith.addf %100, %103 : vector<8x256xf32>
    %c1_32 = arith.constant 1 : index
    %c7_33 = arith.constant 7 : index
    %105 = memref.load %arg2[%c1_32, %c7_33] : memref<8x15xf32, #tpu.memory_space<smem>>
    %106 = vector.broadcast %105 : f32 to vector<8x256xf32>
    %107 = arith.mulf %8, %106 : vector<8x256xf32>
    %108 = arith.addf %104, %107 : vector<8x256xf32>
    %c1_34 = arith.constant 1 : index
    %c8_35 = arith.constant 8 : index
    %109 = memref.load %arg2[%c1_34, %c8_35] : memref<8x15xf32, #tpu.memory_space<smem>>
    %110 = vector.broadcast %109 : f32 to vector<8x256xf32>
    %111 = arith.mulf %9, %110 : vector<8x256xf32>
    %112 = arith.addf %108, %111 : vector<8x256xf32>
    %c1_36 = arith.constant 1 : index
    %c9_37 = arith.constant 9 : index
    %113 = memref.load %arg2[%c1_36, %c9_37] : memref<8x15xf32, #tpu.memory_space<smem>>
    %114 = vector.broadcast %113 : f32 to vector<8x256xf32>
    %115 = arith.mulf %10, %114 : vector<8x256xf32>
    %116 = arith.addf %112, %115 : vector<8x256xf32>
    %c1_38 = arith.constant 1 : index
    %c10_39 = arith.constant 10 : index
    %117 = memref.load %arg2[%c1_38, %c10_39] : memref<8x15xf32, #tpu.memory_space<smem>>
    %118 = vector.broadcast %117 : f32 to vector<8x256xf32>
    %119 = arith.mulf %11, %118 : vector<8x256xf32>
    %120 = arith.addf %116, %119 : vector<8x256xf32>
    %c1_40 = arith.constant 1 : index
    %c11_41 = arith.constant 11 : index
    %121 = memref.load %arg2[%c1_40, %c11_41] : memref<8x15xf32, #tpu.memory_space<smem>>
    %122 = vector.broadcast %121 : f32 to vector<8x256xf32>
    %123 = arith.mulf %12, %122 : vector<8x256xf32>
    %124 = arith.addf %120, %123 : vector<8x256xf32>
    %c1_42 = arith.constant 1 : index
    %c12_43 = arith.constant 12 : index
    %125 = memref.load %arg2[%c1_42, %c12_43] : memref<8x15xf32, #tpu.memory_space<smem>>
    %126 = vector.broadcast %125 : f32 to vector<8x256xf32>
    %127 = arith.mulf %13, %126 : vector<8x256xf32>
    %128 = arith.addf %124, %127 : vector<8x256xf32>
    %c1_44 = arith.constant 1 : index
    %c13_45 = arith.constant 13 : index
    %129 = memref.load %arg2[%c1_44, %c13_45] : memref<8x15xf32, #tpu.memory_space<smem>>
    %130 = vector.broadcast %129 : f32 to vector<8x256xf32>
    %131 = arith.mulf %14, %130 : vector<8x256xf32>
    %132 = arith.addf %128, %131 : vector<8x256xf32>
    %c1_46 = arith.constant 1 : index
    %c14_47 = arith.constant 14 : index
    %133 = memref.load %arg2[%c1_46, %c14_47] : memref<8x15xf32, #tpu.memory_space<smem>>
    %134 = vector.broadcast %133 : f32 to vector<8x256xf32>
    %135 = arith.mulf %15, %134 : vector<8x256xf32>
    %136 = arith.addf %132, %135 : vector<8x256xf32>
    %c1_48 = arith.constant 1 : index
    %137 = memref.load %arg3[%c1_48] : memref<8xf32, #tpu.memory_space<smem>>
    %138 = vector.broadcast %137 : f32 to vector<8x256xf32>
    %139 = arith.addf %136, %138 : vector<8x256xf32>
    %c2_49 = arith.constant 2 : index
    %c0_50 = arith.constant 0 : index
    %140 = memref.load %arg2[%c2_49, %c0_50] : memref<8x15xf32, #tpu.memory_space<smem>>
    %141 = vector.broadcast %140 : f32 to vector<8x256xf32>
    %142 = arith.mulf %1, %141 : vector<8x256xf32>
    %c2_51 = arith.constant 2 : index
    %c1_52 = arith.constant 1 : index
    %143 = memref.load %arg2[%c2_51, %c1_52] : memref<8x15xf32, #tpu.memory_space<smem>>
    %144 = vector.broadcast %143 : f32 to vector<8x256xf32>
    %145 = arith.mulf %2, %144 : vector<8x256xf32>
    %146 = arith.addf %142, %145 : vector<8x256xf32>
    %c2_53 = arith.constant 2 : index
    %c2_54 = arith.constant 2 : index
    %147 = memref.load %arg2[%c2_53, %c2_54] : memref<8x15xf32, #tpu.memory_space<smem>>
    %148 = vector.broadcast %147 : f32 to vector<8x256xf32>
    %149 = arith.mulf %3, %148 : vector<8x256xf32>
    %150 = arith.addf %146, %149 : vector<8x256xf32>
    %c2_55 = arith.constant 2 : index
    %c3_56 = arith.constant 3 : index
    %151 = memref.load %arg2[%c2_55, %c3_56] : memref<8x15xf32, #tpu.memory_space<smem>>
    %152 = vector.broadcast %151 : f32 to vector<8x256xf32>
    %153 = arith.mulf %4, %152 : vector<8x256xf32>
    %154 = arith.addf %150, %153 : vector<8x256xf32>
    %c2_57 = arith.constant 2 : index
    %c4_58 = arith.constant 4 : index
    %155 = memref.load %arg2[%c2_57, %c4_58] : memref<8x15xf32, #tpu.memory_space<smem>>
    %156 = vector.broadcast %155 : f32 to vector<8x256xf32>
    %157 = arith.mulf %5, %156 : vector<8x256xf32>
    %158 = arith.addf %154, %157 : vector<8x256xf32>
    %c2_59 = arith.constant 2 : index
    %c5_60 = arith.constant 5 : index
    %159 = memref.load %arg2[%c2_59, %c5_60] : memref<8x15xf32, #tpu.memory_space<smem>>
    %160 = vector.broadcast %159 : f32 to vector<8x256xf32>
    %161 = arith.mulf %6, %160 : vector<8x256xf32>
    %162 = arith.addf %158, %161 : vector<8x256xf32>
    %c2_61 = arith.constant 2 : index
    %c6_62 = arith.constant 6 : index
    %163 = memref.load %arg2[%c2_61, %c6_62] : memref<8x15xf32, #tpu.memory_space<smem>>
    %164 = vector.broadcast %163 : f32 to vector<8x256xf32>
    %165 = arith.mulf %7, %164 : vector<8x256xf32>
    %166 = arith.addf %162, %165 : vector<8x256xf32>
    %c2_63 = arith.constant 2 : index
    %c7_64 = arith.constant 7 : index
    %167 = memref.load %arg2[%c2_63, %c7_64] : memref<8x15xf32, #tpu.memory_space<smem>>
    %168 = vector.broadcast %167 : f32 to vector<8x256xf32>
    %169 = arith.mulf %8, %168 : vector<8x256xf32>
    %170 = arith.addf %166, %169 : vector<8x256xf32>
    %c2_65 = arith.constant 2 : index
    %c8_66 = arith.constant 8 : index
    %171 = memref.load %arg2[%c2_65, %c8_66] : memref<8x15xf32, #tpu.memory_space<smem>>
    %172 = vector.broadcast %171 : f32 to vector<8x256xf32>
    %173 = arith.mulf %9, %172 : vector<8x256xf32>
    %174 = arith.addf %170, %173 : vector<8x256xf32>
    %c2_67 = arith.constant 2 : index
    %c9_68 = arith.constant 9 : index
    %175 = memref.load %arg2[%c2_67, %c9_68] : memref<8x15xf32, #tpu.memory_space<smem>>
    %176 = vector.broadcast %175 : f32 to vector<8x256xf32>
    %177 = arith.mulf %10, %176 : vector<8x256xf32>
    %178 = arith.addf %174, %177 : vector<8x256xf32>
    %c2_69 = arith.constant 2 : index
    %c10_70 = arith.constant 10 : index
    %179 = memref.load %arg2[%c2_69, %c10_70] : memref<8x15xf32, #tpu.memory_space<smem>>
    %180 = vector.broadcast %179 : f32 to vector<8x256xf32>
    %181 = arith.mulf %11, %180 : vector<8x256xf32>
    %182 = arith.addf %178, %181 : vector<8x256xf32>
    %c2_71 = arith.constant 2 : index
    %c11_72 = arith.constant 11 : index
    %183 = memref.load %arg2[%c2_71, %c11_72] : memref<8x15xf32, #tpu.memory_space<smem>>
    %184 = vector.broadcast %183 : f32 to vector<8x256xf32>
    %185 = arith.mulf %12, %184 : vector<8x256xf32>
    %186 = arith.addf %182, %185 : vector<8x256xf32>
    %c2_73 = arith.constant 2 : index
    %c12_74 = arith.constant 12 : index
    %187 = memref.load %arg2[%c2_73, %c12_74] : memref<8x15xf32, #tpu.memory_space<smem>>
    %188 = vector.broadcast %187 : f32 to vector<8x256xf32>
    %189 = arith.mulf %13, %188 : vector<8x256xf32>
    %190 = arith.addf %186, %189 : vector<8x256xf32>
    %c2_75 = arith.constant 2 : index
    %c13_76 = arith.constant 13 : index
    %191 = memref.load %arg2[%c2_75, %c13_76] : memref<8x15xf32, #tpu.memory_space<smem>>
    %192 = vector.broadcast %191 : f32 to vector<8x256xf32>
    %193 = arith.mulf %14, %192 : vector<8x256xf32>
    %194 = arith.addf %190, %193 : vector<8x256xf32>
    %c2_77 = arith.constant 2 : index
    %c14_78 = arith.constant 14 : index
    %195 = memref.load %arg2[%c2_77, %c14_78] : memref<8x15xf32, #tpu.memory_space<smem>>
    %196 = vector.broadcast %195 : f32 to vector<8x256xf32>
    %197 = arith.mulf %15, %196 : vector<8x256xf32>
    %198 = arith.addf %194, %197 : vector<8x256xf32>
    %c2_79 = arith.constant 2 : index
    %199 = memref.load %arg3[%c2_79] : memref<8xf32, #tpu.memory_space<smem>>
    %200 = vector.broadcast %199 : f32 to vector<8x256xf32>
    %201 = arith.addf %198, %200 : vector<8x256xf32>
    %c3_80 = arith.constant 3 : index
    %c0_81 = arith.constant 0 : index
    %202 = memref.load %arg2[%c3_80, %c0_81] : memref<8x15xf32, #tpu.memory_space<smem>>
    %203 = vector.broadcast %202 : f32 to vector<8x256xf32>
    %204 = arith.mulf %1, %203 : vector<8x256xf32>
    %c3_82 = arith.constant 3 : index
    %c1_83 = arith.constant 1 : index
    %205 = memref.load %arg2[%c3_82, %c1_83] : memref<8x15xf32, #tpu.memory_space<smem>>
    %206 = vector.broadcast %205 : f32 to vector<8x256xf32>
    %207 = arith.mulf %2, %206 : vector<8x256xf32>
    %208 = arith.addf %204, %207 : vector<8x256xf32>
    %c3_84 = arith.constant 3 : index
    %c2_85 = arith.constant 2 : index
    %209 = memref.load %arg2[%c3_84, %c2_85] : memref<8x15xf32, #tpu.memory_space<smem>>
    %210 = vector.broadcast %209 : f32 to vector<8x256xf32>
    %211 = arith.mulf %3, %210 : vector<8x256xf32>
    %212 = arith.addf %208, %211 : vector<8x256xf32>
    %c3_86 = arith.constant 3 : index
    %c3_87 = arith.constant 3 : index
    %213 = memref.load %arg2[%c3_86, %c3_87] : memref<8x15xf32, #tpu.memory_space<smem>>
    %214 = vector.broadcast %213 : f32 to vector<8x256xf32>
    %215 = arith.mulf %4, %214 : vector<8x256xf32>
    %216 = arith.addf %212, %215 : vector<8x256xf32>
    %c3_88 = arith.constant 3 : index
    %c4_89 = arith.constant 4 : index
    %217 = memref.load %arg2[%c3_88, %c4_89] : memref<8x15xf32, #tpu.memory_space<smem>>
    %218 = vector.broadcast %217 : f32 to vector<8x256xf32>
    %219 = arith.mulf %5, %218 : vector<8x256xf32>
    %220 = arith.addf %216, %219 : vector<8x256xf32>
    %c3_90 = arith.constant 3 : index
    %c5_91 = arith.constant 5 : index
    %221 = memref.load %arg2[%c3_90, %c5_91] : memref<8x15xf32, #tpu.memory_space<smem>>
    %222 = vector.broadcast %221 : f32 to vector<8x256xf32>
    %223 = arith.mulf %6, %222 : vector<8x256xf32>
    %224 = arith.addf %220, %223 : vector<8x256xf32>
    %c3_92 = arith.constant 3 : index
    %c6_93 = arith.constant 6 : index
    %225 = memref.load %arg2[%c3_92, %c6_93] : memref<8x15xf32, #tpu.memory_space<smem>>
    %226 = vector.broadcast %225 : f32 to vector<8x256xf32>
    %227 = arith.mulf %7, %226 : vector<8x256xf32>
    %228 = arith.addf %224, %227 : vector<8x256xf32>
    %c3_94 = arith.constant 3 : index
    %c7_95 = arith.constant 7 : index
    %229 = memref.load %arg2[%c3_94, %c7_95] : memref<8x15xf32, #tpu.memory_space<smem>>
    %230 = vector.broadcast %229 : f32 to vector<8x256xf32>
    %231 = arith.mulf %8, %230 : vector<8x256xf32>
    %232 = arith.addf %228, %231 : vector<8x256xf32>
    %c3_96 = arith.constant 3 : index
    %c8_97 = arith.constant 8 : index
    %233 = memref.load %arg2[%c3_96, %c8_97] : memref<8x15xf32, #tpu.memory_space<smem>>
    %234 = vector.broadcast %233 : f32 to vector<8x256xf32>
    %235 = arith.mulf %9, %234 : vector<8x256xf32>
    %236 = arith.addf %232, %235 : vector<8x256xf32>
    %c3_98 = arith.constant 3 : index
    %c9_99 = arith.constant 9 : index
    %237 = memref.load %arg2[%c3_98, %c9_99] : memref<8x15xf32, #tpu.memory_space<smem>>
    %238 = vector.broadcast %237 : f32 to vector<8x256xf32>
    %239 = arith.mulf %10, %238 : vector<8x256xf32>
    %240 = arith.addf %236, %239 : vector<8x256xf32>
    %c3_100 = arith.constant 3 : index
    %c10_101 = arith.constant 10 : index
    %241 = memref.load %arg2[%c3_100, %c10_101] : memref<8x15xf32, #tpu.memory_space<smem>>
    %242 = vector.broadcast %241 : f32 to vector<8x256xf32>
    %243 = arith.mulf %11, %242 : vector<8x256xf32>
    %244 = arith.addf %240, %243 : vector<8x256xf32>
    %c3_102 = arith.constant 3 : index
    %c11_103 = arith.constant 11 : index
    %245 = memref.load %arg2[%c3_102, %c11_103] : memref<8x15xf32, #tpu.memory_space<smem>>
    %246 = vector.broadcast %245 : f32 to vector<8x256xf32>
    %247 = arith.mulf %12, %246 : vector<8x256xf32>
    %248 = arith.addf %244, %247 : vector<8x256xf32>
    %c3_104 = arith.constant 3 : index
    %c12_105 = arith.constant 12 : index
    %249 = memref.load %arg2[%c3_104, %c12_105] : memref<8x15xf32, #tpu.memory_space<smem>>
    %250 = vector.broadcast %249 : f32 to vector<8x256xf32>
    %251 = arith.mulf %13, %250 : vector<8x256xf32>
    %252 = arith.addf %248, %251 : vector<8x256xf32>
    %c3_106 = arith.constant 3 : index
    %c13_107 = arith.constant 13 : index
    %253 = memref.load %arg2[%c3_106, %c13_107] : memref<8x15xf32, #tpu.memory_space<smem>>
    %254 = vector.broadcast %253 : f32 to vector<8x256xf32>
    %255 = arith.mulf %14, %254 : vector<8x256xf32>
    %256 = arith.addf %252, %255 : vector<8x256xf32>
    %c3_108 = arith.constant 3 : index
    %c14_109 = arith.constant 14 : index
    %257 = memref.load %arg2[%c3_108, %c14_109] : memref<8x15xf32, #tpu.memory_space<smem>>
    %258 = vector.broadcast %257 : f32 to vector<8x256xf32>
    %259 = arith.mulf %15, %258 : vector<8x256xf32>
    %260 = arith.addf %256, %259 : vector<8x256xf32>
    %c3_110 = arith.constant 3 : index
    %261 = memref.load %arg3[%c3_110] : memref<8xf32, #tpu.memory_space<smem>>
    %262 = vector.broadcast %261 : f32 to vector<8x256xf32>
    %263 = arith.addf %260, %262 : vector<8x256xf32>
    %c4_111 = arith.constant 4 : index
    %c0_112 = arith.constant 0 : index
    %264 = memref.load %arg2[%c4_111, %c0_112] : memref<8x15xf32, #tpu.memory_space<smem>>
    %265 = vector.broadcast %264 : f32 to vector<8x256xf32>
    %266 = arith.mulf %1, %265 : vector<8x256xf32>
    %c4_113 = arith.constant 4 : index
    %c1_114 = arith.constant 1 : index
    %267 = memref.load %arg2[%c4_113, %c1_114] : memref<8x15xf32, #tpu.memory_space<smem>>
    %268 = vector.broadcast %267 : f32 to vector<8x256xf32>
    %269 = arith.mulf %2, %268 : vector<8x256xf32>
    %270 = arith.addf %266, %269 : vector<8x256xf32>
    %c4_115 = arith.constant 4 : index
    %c2_116 = arith.constant 2 : index
    %271 = memref.load %arg2[%c4_115, %c2_116] : memref<8x15xf32, #tpu.memory_space<smem>>
    %272 = vector.broadcast %271 : f32 to vector<8x256xf32>
    %273 = arith.mulf %3, %272 : vector<8x256xf32>
    %274 = arith.addf %270, %273 : vector<8x256xf32>
    %c4_117 = arith.constant 4 : index
    %c3_118 = arith.constant 3 : index
    %275 = memref.load %arg2[%c4_117, %c3_118] : memref<8x15xf32, #tpu.memory_space<smem>>
    %276 = vector.broadcast %275 : f32 to vector<8x256xf32>
    %277 = arith.mulf %4, %276 : vector<8x256xf32>
    %278 = arith.addf %274, %277 : vector<8x256xf32>
    %c4_119 = arith.constant 4 : index
    %c4_120 = arith.constant 4 : index
    %279 = memref.load %arg2[%c4_119, %c4_120] : memref<8x15xf32, #tpu.memory_space<smem>>
    %280 = vector.broadcast %279 : f32 to vector<8x256xf32>
    %281 = arith.mulf %5, %280 : vector<8x256xf32>
    %282 = arith.addf %278, %281 : vector<8x256xf32>
    %c4_121 = arith.constant 4 : index
    %c5_122 = arith.constant 5 : index
    %283 = memref.load %arg2[%c4_121, %c5_122] : memref<8x15xf32, #tpu.memory_space<smem>>
    %284 = vector.broadcast %283 : f32 to vector<8x256xf32>
    %285 = arith.mulf %6, %284 : vector<8x256xf32>
    %286 = arith.addf %282, %285 : vector<8x256xf32>
    %c4_123 = arith.constant 4 : index
    %c6_124 = arith.constant 6 : index
    %287 = memref.load %arg2[%c4_123, %c6_124] : memref<8x15xf32, #tpu.memory_space<smem>>
    %288 = vector.broadcast %287 : f32 to vector<8x256xf32>
    %289 = arith.mulf %7, %288 : vector<8x256xf32>
    %290 = arith.addf %286, %289 : vector<8x256xf32>
    %c4_125 = arith.constant 4 : index
    %c7_126 = arith.constant 7 : index
    %291 = memref.load %arg2[%c4_125, %c7_126] : memref<8x15xf32, #tpu.memory_space<smem>>
    %292 = vector.broadcast %291 : f32 to vector<8x256xf32>
    %293 = arith.mulf %8, %292 : vector<8x256xf32>
    %294 = arith.addf %290, %293 : vector<8x256xf32>
    %c4_127 = arith.constant 4 : index
    %c8_128 = arith.constant 8 : index
    %295 = memref.load %arg2[%c4_127, %c8_128] : memref<8x15xf32, #tpu.memory_space<smem>>
    %296 = vector.broadcast %295 : f32 to vector<8x256xf32>
    %297 = arith.mulf %9, %296 : vector<8x256xf32>
    %298 = arith.addf %294, %297 : vector<8x256xf32>
    %c4_129 = arith.constant 4 : index
    %c9_130 = arith.constant 9 : index
    %299 = memref.load %arg2[%c4_129, %c9_130] : memref<8x15xf32, #tpu.memory_space<smem>>
    %300 = vector.broadcast %299 : f32 to vector<8x256xf32>
    %301 = arith.mulf %10, %300 : vector<8x256xf32>
    %302 = arith.addf %298, %301 : vector<8x256xf32>
    %c4_131 = arith.constant 4 : index
    %c10_132 = arith.constant 10 : index
    %303 = memref.load %arg2[%c4_131, %c10_132] : memref<8x15xf32, #tpu.memory_space<smem>>
    %304 = vector.broadcast %303 : f32 to vector<8x256xf32>
    %305 = arith.mulf %11, %304 : vector<8x256xf32>
    %306 = arith.addf %302, %305 : vector<8x256xf32>
    %c4_133 = arith.constant 4 : index
    %c11_134 = arith.constant 11 : index
    %307 = memref.load %arg2[%c4_133, %c11_134] : memref<8x15xf32, #tpu.memory_space<smem>>
    %308 = vector.broadcast %307 : f32 to vector<8x256xf32>
    %309 = arith.mulf %12, %308 : vector<8x256xf32>
    %310 = arith.addf %306, %309 : vector<8x256xf32>
    %c4_135 = arith.constant 4 : index
    %c12_136 = arith.constant 12 : index
    %311 = memref.load %arg2[%c4_135, %c12_136] : memref<8x15xf32, #tpu.memory_space<smem>>
    %312 = vector.broadcast %311 : f32 to vector<8x256xf32>
    %313 = arith.mulf %13, %312 : vector<8x256xf32>
    %314 = arith.addf %310, %313 : vector<8x256xf32>
    %c4_137 = arith.constant 4 : index
    %c13_138 = arith.constant 13 : index
    %315 = memref.load %arg2[%c4_137, %c13_138] : memref<8x15xf32, #tpu.memory_space<smem>>
    %316 = vector.broadcast %315 : f32 to vector<8x256xf32>
    %317 = arith.mulf %14, %316 : vector<8x256xf32>
    %318 = arith.addf %314, %317 : vector<8x256xf32>
    %c4_139 = arith.constant 4 : index
    %c14_140 = arith.constant 14 : index
    %319 = memref.load %arg2[%c4_139, %c14_140] : memref<8x15xf32, #tpu.memory_space<smem>>
    %320 = vector.broadcast %319 : f32 to vector<8x256xf32>
    %321 = arith.mulf %15, %320 : vector<8x256xf32>
    %322 = arith.addf %318, %321 : vector<8x256xf32>
    %c4_141 = arith.constant 4 : index
    %323 = memref.load %arg3[%c4_141] : memref<8xf32, #tpu.memory_space<smem>>
    %324 = vector.broadcast %323 : f32 to vector<8x256xf32>
    %325 = arith.addf %322, %324 : vector<8x256xf32>
    %c5_142 = arith.constant 5 : index
    %c0_143 = arith.constant 0 : index
    %326 = memref.load %arg2[%c5_142, %c0_143] : memref<8x15xf32, #tpu.memory_space<smem>>
    %327 = vector.broadcast %326 : f32 to vector<8x256xf32>
    %328 = arith.mulf %1, %327 : vector<8x256xf32>
    %c5_144 = arith.constant 5 : index
    %c1_145 = arith.constant 1 : index
    %329 = memref.load %arg2[%c5_144, %c1_145] : memref<8x15xf32, #tpu.memory_space<smem>>
    %330 = vector.broadcast %329 : f32 to vector<8x256xf32>
    %331 = arith.mulf %2, %330 : vector<8x256xf32>
    %332 = arith.addf %328, %331 : vector<8x256xf32>
    %c5_146 = arith.constant 5 : index
    %c2_147 = arith.constant 2 : index
    %333 = memref.load %arg2[%c5_146, %c2_147] : memref<8x15xf32, #tpu.memory_space<smem>>
    %334 = vector.broadcast %333 : f32 to vector<8x256xf32>
    %335 = arith.mulf %3, %334 : vector<8x256xf32>
    %336 = arith.addf %332, %335 : vector<8x256xf32>
    %c5_148 = arith.constant 5 : index
    %c3_149 = arith.constant 3 : index
    %337 = memref.load %arg2[%c5_148, %c3_149] : memref<8x15xf32, #tpu.memory_space<smem>>
    %338 = vector.broadcast %337 : f32 to vector<8x256xf32>
    %339 = arith.mulf %4, %338 : vector<8x256xf32>
    %340 = arith.addf %336, %339 : vector<8x256xf32>
    %c5_150 = arith.constant 5 : index
    %c4_151 = arith.constant 4 : index
    %341 = memref.load %arg2[%c5_150, %c4_151] : memref<8x15xf32, #tpu.memory_space<smem>>
    %342 = vector.broadcast %341 : f32 to vector<8x256xf32>
    %343 = arith.mulf %5, %342 : vector<8x256xf32>
    %344 = arith.addf %340, %343 : vector<8x256xf32>
    %c5_152 = arith.constant 5 : index
    %c5_153 = arith.constant 5 : index
    %345 = memref.load %arg2[%c5_152, %c5_153] : memref<8x15xf32, #tpu.memory_space<smem>>
    %346 = vector.broadcast %345 : f32 to vector<8x256xf32>
    %347 = arith.mulf %6, %346 : vector<8x256xf32>
    %348 = arith.addf %344, %347 : vector<8x256xf32>
    %c5_154 = arith.constant 5 : index
    %c6_155 = arith.constant 6 : index
    %349 = memref.load %arg2[%c5_154, %c6_155] : memref<8x15xf32, #tpu.memory_space<smem>>
    %350 = vector.broadcast %349 : f32 to vector<8x256xf32>
    %351 = arith.mulf %7, %350 : vector<8x256xf32>
    %352 = arith.addf %348, %351 : vector<8x256xf32>
    %c5_156 = arith.constant 5 : index
    %c7_157 = arith.constant 7 : index
    %353 = memref.load %arg2[%c5_156, %c7_157] : memref<8x15xf32, #tpu.memory_space<smem>>
    %354 = vector.broadcast %353 : f32 to vector<8x256xf32>
    %355 = arith.mulf %8, %354 : vector<8x256xf32>
    %356 = arith.addf %352, %355 : vector<8x256xf32>
    %c5_158 = arith.constant 5 : index
    %c8_159 = arith.constant 8 : index
    %357 = memref.load %arg2[%c5_158, %c8_159] : memref<8x15xf32, #tpu.memory_space<smem>>
    %358 = vector.broadcast %357 : f32 to vector<8x256xf32>
    %359 = arith.mulf %9, %358 : vector<8x256xf32>
    %360 = arith.addf %356, %359 : vector<8x256xf32>
    %c5_160 = arith.constant 5 : index
    %c9_161 = arith.constant 9 : index
    %361 = memref.load %arg2[%c5_160, %c9_161] : memref<8x15xf32, #tpu.memory_space<smem>>
    %362 = vector.broadcast %361 : f32 to vector<8x256xf32>
    %363 = arith.mulf %10, %362 : vector<8x256xf32>
    %364 = arith.addf %360, %363 : vector<8x256xf32>
    %c5_162 = arith.constant 5 : index
    %c10_163 = arith.constant 10 : index
    %365 = memref.load %arg2[%c5_162, %c10_163] : memref<8x15xf32, #tpu.memory_space<smem>>
    %366 = vector.broadcast %365 : f32 to vector<8x256xf32>
    %367 = arith.mulf %11, %366 : vector<8x256xf32>
    %368 = arith.addf %364, %367 : vector<8x256xf32>
    %c5_164 = arith.constant 5 : index
    %c11_165 = arith.constant 11 : index
    %369 = memref.load %arg2[%c5_164, %c11_165] : memref<8x15xf32, #tpu.memory_space<smem>>
    %370 = vector.broadcast %369 : f32 to vector<8x256xf32>
    %371 = arith.mulf %12, %370 : vector<8x256xf32>
    %372 = arith.addf %368, %371 : vector<8x256xf32>
    %c5_166 = arith.constant 5 : index
    %c12_167 = arith.constant 12 : index
    %373 = memref.load %arg2[%c5_166, %c12_167] : memref<8x15xf32, #tpu.memory_space<smem>>
    %374 = vector.broadcast %373 : f32 to vector<8x256xf32>
    %375 = arith.mulf %13, %374 : vector<8x256xf32>
    %376 = arith.addf %372, %375 : vector<8x256xf32>
    %c5_168 = arith.constant 5 : index
    %c13_169 = arith.constant 13 : index
    %377 = memref.load %arg2[%c5_168, %c13_169] : memref<8x15xf32, #tpu.memory_space<smem>>
    %378 = vector.broadcast %377 : f32 to vector<8x256xf32>
    %379 = arith.mulf %14, %378 : vector<8x256xf32>
    %380 = arith.addf %376, %379 : vector<8x256xf32>
    %c5_170 = arith.constant 5 : index
    %c14_171 = arith.constant 14 : index
    %381 = memref.load %arg2[%c5_170, %c14_171] : memref<8x15xf32, #tpu.memory_space<smem>>
    %382 = vector.broadcast %381 : f32 to vector<8x256xf32>
    %383 = arith.mulf %15, %382 : vector<8x256xf32>
    %384 = arith.addf %380, %383 : vector<8x256xf32>
    %c5_172 = arith.constant 5 : index
    %385 = memref.load %arg3[%c5_172] : memref<8xf32, #tpu.memory_space<smem>>
    %386 = vector.broadcast %385 : f32 to vector<8x256xf32>
    %387 = arith.addf %384, %386 : vector<8x256xf32>
    %c6_173 = arith.constant 6 : index
    %c0_174 = arith.constant 0 : index
    %388 = memref.load %arg2[%c6_173, %c0_174] : memref<8x15xf32, #tpu.memory_space<smem>>
    %389 = vector.broadcast %388 : f32 to vector<8x256xf32>
    %390 = arith.mulf %1, %389 : vector<8x256xf32>
    %c6_175 = arith.constant 6 : index
    %c1_176 = arith.constant 1 : index
    %391 = memref.load %arg2[%c6_175, %c1_176] : memref<8x15xf32, #tpu.memory_space<smem>>
    %392 = vector.broadcast %391 : f32 to vector<8x256xf32>
    %393 = arith.mulf %2, %392 : vector<8x256xf32>
    %394 = arith.addf %390, %393 : vector<8x256xf32>
    %c6_177 = arith.constant 6 : index
    %c2_178 = arith.constant 2 : index
    %395 = memref.load %arg2[%c6_177, %c2_178] : memref<8x15xf32, #tpu.memory_space<smem>>
    %396 = vector.broadcast %395 : f32 to vector<8x256xf32>
    %397 = arith.mulf %3, %396 : vector<8x256xf32>
    %398 = arith.addf %394, %397 : vector<8x256xf32>
    %c6_179 = arith.constant 6 : index
    %c3_180 = arith.constant 3 : index
    %399 = memref.load %arg2[%c6_179, %c3_180] : memref<8x15xf32, #tpu.memory_space<smem>>
    %400 = vector.broadcast %399 : f32 to vector<8x256xf32>
    %401 = arith.mulf %4, %400 : vector<8x256xf32>
    %402 = arith.addf %398, %401 : vector<8x256xf32>
    %c6_181 = arith.constant 6 : index
    %c4_182 = arith.constant 4 : index
    %403 = memref.load %arg2[%c6_181, %c4_182] : memref<8x15xf32, #tpu.memory_space<smem>>
    %404 = vector.broadcast %403 : f32 to vector<8x256xf32>
    %405 = arith.mulf %5, %404 : vector<8x256xf32>
    %406 = arith.addf %402, %405 : vector<8x256xf32>
    %c6_183 = arith.constant 6 : index
    %c5_184 = arith.constant 5 : index
    %407 = memref.load %arg2[%c6_183, %c5_184] : memref<8x15xf32, #tpu.memory_space<smem>>
    %408 = vector.broadcast %407 : f32 to vector<8x256xf32>
    %409 = arith.mulf %6, %408 : vector<8x256xf32>
    %410 = arith.addf %406, %409 : vector<8x256xf32>
    %c6_185 = arith.constant 6 : index
    %c6_186 = arith.constant 6 : index
    %411 = memref.load %arg2[%c6_185, %c6_186] : memref<8x15xf32, #tpu.memory_space<smem>>
    %412 = vector.broadcast %411 : f32 to vector<8x256xf32>
    %413 = arith.mulf %7, %412 : vector<8x256xf32>
    %414 = arith.addf %410, %413 : vector<8x256xf32>
    %c6_187 = arith.constant 6 : index
    %c7_188 = arith.constant 7 : index
    %415 = memref.load %arg2[%c6_187, %c7_188] : memref<8x15xf32, #tpu.memory_space<smem>>
    %416 = vector.broadcast %415 : f32 to vector<8x256xf32>
    %417 = arith.mulf %8, %416 : vector<8x256xf32>
    %418 = arith.addf %414, %417 : vector<8x256xf32>
    %c6_189 = arith.constant 6 : index
    %c8_190 = arith.constant 8 : index
    %419 = memref.load %arg2[%c6_189, %c8_190] : memref<8x15xf32, #tpu.memory_space<smem>>
    %420 = vector.broadcast %419 : f32 to vector<8x256xf32>
    %421 = arith.mulf %9, %420 : vector<8x256xf32>
    %422 = arith.addf %418, %421 : vector<8x256xf32>
    %c6_191 = arith.constant 6 : index
    %c9_192 = arith.constant 9 : index
    %423 = memref.load %arg2[%c6_191, %c9_192] : memref<8x15xf32, #tpu.memory_space<smem>>
    %424 = vector.broadcast %423 : f32 to vector<8x256xf32>
    %425 = arith.mulf %10, %424 : vector<8x256xf32>
    %426 = arith.addf %422, %425 : vector<8x256xf32>
    %c6_193 = arith.constant 6 : index
    %c10_194 = arith.constant 10 : index
    %427 = memref.load %arg2[%c6_193, %c10_194] : memref<8x15xf32, #tpu.memory_space<smem>>
    %428 = vector.broadcast %427 : f32 to vector<8x256xf32>
    %429 = arith.mulf %11, %428 : vector<8x256xf32>
    %430 = arith.addf %426, %429 : vector<8x256xf32>
    %c6_195 = arith.constant 6 : index
    %c11_196 = arith.constant 11 : index
    %431 = memref.load %arg2[%c6_195, %c11_196] : memref<8x15xf32, #tpu.memory_space<smem>>
    %432 = vector.broadcast %431 : f32 to vector<8x256xf32>
    %433 = arith.mulf %12, %432 : vector<8x256xf32>
    %434 = arith.addf %430, %433 : vector<8x256xf32>
    %c6_197 = arith.constant 6 : index
    %c12_198 = arith.constant 12 : index
    %435 = memref.load %arg2[%c6_197, %c12_198] : memref<8x15xf32, #tpu.memory_space<smem>>
    %436 = vector.broadcast %435 : f32 to vector<8x256xf32>
    %437 = arith.mulf %13, %436 : vector<8x256xf32>
    %438 = arith.addf %434, %437 : vector<8x256xf32>
    %c6_199 = arith.constant 6 : index
    %c13_200 = arith.constant 13 : index
    %439 = memref.load %arg2[%c6_199, %c13_200] : memref<8x15xf32, #tpu.memory_space<smem>>
    %440 = vector.broadcast %439 : f32 to vector<8x256xf32>
    %441 = arith.mulf %14, %440 : vector<8x256xf32>
    %442 = arith.addf %438, %441 : vector<8x256xf32>
    %c6_201 = arith.constant 6 : index
    %c14_202 = arith.constant 14 : index
    %443 = memref.load %arg2[%c6_201, %c14_202] : memref<8x15xf32, #tpu.memory_space<smem>>
    %444 = vector.broadcast %443 : f32 to vector<8x256xf32>
    %445 = arith.mulf %15, %444 : vector<8x256xf32>
    %446 = arith.addf %442, %445 : vector<8x256xf32>
    %c6_203 = arith.constant 6 : index
    %447 = memref.load %arg3[%c6_203] : memref<8xf32, #tpu.memory_space<smem>>
    %448 = vector.broadcast %447 : f32 to vector<8x256xf32>
    %449 = arith.addf %446, %448 : vector<8x256xf32>
    %c7_204 = arith.constant 7 : index
    %c0_205 = arith.constant 0 : index
    %450 = memref.load %arg2[%c7_204, %c0_205] : memref<8x15xf32, #tpu.memory_space<smem>>
    %451 = vector.broadcast %450 : f32 to vector<8x256xf32>
    %452 = arith.mulf %1, %451 : vector<8x256xf32>
    %c7_206 = arith.constant 7 : index
    %c1_207 = arith.constant 1 : index
    %453 = memref.load %arg2[%c7_206, %c1_207] : memref<8x15xf32, #tpu.memory_space<smem>>
    %454 = vector.broadcast %453 : f32 to vector<8x256xf32>
    %455 = arith.mulf %2, %454 : vector<8x256xf32>
    %456 = arith.addf %452, %455 : vector<8x256xf32>
    %c7_208 = arith.constant 7 : index
    %c2_209 = arith.constant 2 : index
    %457 = memref.load %arg2[%c7_208, %c2_209] : memref<8x15xf32, #tpu.memory_space<smem>>
    %458 = vector.broadcast %457 : f32 to vector<8x256xf32>
    %459 = arith.mulf %3, %458 : vector<8x256xf32>
    %460 = arith.addf %456, %459 : vector<8x256xf32>
    %c7_210 = arith.constant 7 : index
    %c3_211 = arith.constant 3 : index
    %461 = memref.load %arg2[%c7_210, %c3_211] : memref<8x15xf32, #tpu.memory_space<smem>>
    %462 = vector.broadcast %461 : f32 to vector<8x256xf32>
    %463 = arith.mulf %4, %462 : vector<8x256xf32>
    %464 = arith.addf %460, %463 : vector<8x256xf32>
    %c7_212 = arith.constant 7 : index
    %c4_213 = arith.constant 4 : index
    %465 = memref.load %arg2[%c7_212, %c4_213] : memref<8x15xf32, #tpu.memory_space<smem>>
    %466 = vector.broadcast %465 : f32 to vector<8x256xf32>
    %467 = arith.mulf %5, %466 : vector<8x256xf32>
    %468 = arith.addf %464, %467 : vector<8x256xf32>
    %c7_214 = arith.constant 7 : index
    %c5_215 = arith.constant 5 : index
    %469 = memref.load %arg2[%c7_214, %c5_215] : memref<8x15xf32, #tpu.memory_space<smem>>
    %470 = vector.broadcast %469 : f32 to vector<8x256xf32>
    %471 = arith.mulf %6, %470 : vector<8x256xf32>
    %472 = arith.addf %468, %471 : vector<8x256xf32>
    %c7_216 = arith.constant 7 : index
    %c6_217 = arith.constant 6 : index
    %473 = memref.load %arg2[%c7_216, %c6_217] : memref<8x15xf32, #tpu.memory_space<smem>>
    %474 = vector.broadcast %473 : f32 to vector<8x256xf32>
    %475 = arith.mulf %7, %474 : vector<8x256xf32>
    %476 = arith.addf %472, %475 : vector<8x256xf32>
    %c7_218 = arith.constant 7 : index
    %c7_219 = arith.constant 7 : index
    %477 = memref.load %arg2[%c7_218, %c7_219] : memref<8x15xf32, #tpu.memory_space<smem>>
    %478 = vector.broadcast %477 : f32 to vector<8x256xf32>
    %479 = arith.mulf %8, %478 : vector<8x256xf32>
    %480 = arith.addf %476, %479 : vector<8x256xf32>
    %c7_220 = arith.constant 7 : index
    %c8_221 = arith.constant 8 : index
    %481 = memref.load %arg2[%c7_220, %c8_221] : memref<8x15xf32, #tpu.memory_space<smem>>
    %482 = vector.broadcast %481 : f32 to vector<8x256xf32>
    %483 = arith.mulf %9, %482 : vector<8x256xf32>
    %484 = arith.addf %480, %483 : vector<8x256xf32>
    %c7_222 = arith.constant 7 : index
    %c9_223 = arith.constant 9 : index
    %485 = memref.load %arg2[%c7_222, %c9_223] : memref<8x15xf32, #tpu.memory_space<smem>>
    %486 = vector.broadcast %485 : f32 to vector<8x256xf32>
    %487 = arith.mulf %10, %486 : vector<8x256xf32>
    %488 = arith.addf %484, %487 : vector<8x256xf32>
    %c7_224 = arith.constant 7 : index
    %c10_225 = arith.constant 10 : index
    %489 = memref.load %arg2[%c7_224, %c10_225] : memref<8x15xf32, #tpu.memory_space<smem>>
    %490 = vector.broadcast %489 : f32 to vector<8x256xf32>
    %491 = arith.mulf %11, %490 : vector<8x256xf32>
    %492 = arith.addf %488, %491 : vector<8x256xf32>
    %c7_226 = arith.constant 7 : index
    %c11_227 = arith.constant 11 : index
    %493 = memref.load %arg2[%c7_226, %c11_227] : memref<8x15xf32, #tpu.memory_space<smem>>
    %494 = vector.broadcast %493 : f32 to vector<8x256xf32>
    %495 = arith.mulf %12, %494 : vector<8x256xf32>
    %496 = arith.addf %492, %495 : vector<8x256xf32>
    %c7_228 = arith.constant 7 : index
    %c12_229 = arith.constant 12 : index
    %497 = memref.load %arg2[%c7_228, %c12_229] : memref<8x15xf32, #tpu.memory_space<smem>>
    %498 = vector.broadcast %497 : f32 to vector<8x256xf32>
    %499 = arith.mulf %13, %498 : vector<8x256xf32>
    %500 = arith.addf %496, %499 : vector<8x256xf32>
    %c7_230 = arith.constant 7 : index
    %c13_231 = arith.constant 13 : index
    %501 = memref.load %arg2[%c7_230, %c13_231] : memref<8x15xf32, #tpu.memory_space<smem>>
    %502 = vector.broadcast %501 : f32 to vector<8x256xf32>
    %503 = arith.mulf %14, %502 : vector<8x256xf32>
    %504 = arith.addf %500, %503 : vector<8x256xf32>
    %c7_232 = arith.constant 7 : index
    %c14_233 = arith.constant 14 : index
    %505 = memref.load %arg2[%c7_232, %c14_233] : memref<8x15xf32, #tpu.memory_space<smem>>
    %506 = vector.broadcast %505 : f32 to vector<8x256xf32>
    %507 = arith.mulf %15, %506 : vector<8x256xf32>
    %508 = arith.addf %504, %507 : vector<8x256xf32>
    %c7_234 = arith.constant 7 : index
    %509 = memref.load %arg3[%c7_234] : memref<8xf32, #tpu.memory_space<smem>>
    %510 = vector.broadcast %509 : f32 to vector<8x256xf32>
    %511 = arith.addf %508, %510 : vector<8x256xf32>
    %c0_235 = arith.constant 0 : index
    %512 = memref.load %arg4[%c0_235] : memref<1xf32, #tpu.memory_space<smem>>
    %c0_236 = arith.constant 0 : index
    %c0_237 = arith.constant 0 : index
    %513 = vector.load %arg5[%c0_236, %c0_237] : memref<16x32xbf16, #tpu.memory_space<vmem>>, vector<16x32xbf16>
    %c0_238 = arith.constant 0 : index
    %c0_239 = arith.constant 0 : index
    %514 = vector.load %arg6[%c0_238, %c0_239] : memref<16x1xf32, #tpu.memory_space<vmem>>, vector<16x1xf32>
    %c0_240 = arith.constant 0 : index
    %c0_241 = arith.constant 0 : index
    %515 = vector.load %arg7[%c0_240, %c0_241] : memref<256x128xbf16, #tpu.memory_space<vmem>>, vector<256x128xbf16>
    %516 = vector.extract_strided_slice %77 {offsets = [0, 0], sizes = [4, 256], strides = [1, 1]} : vector<8x256xf32> to vector<4x256xf32>
    %517 = vector.extract_strided_slice %139 {offsets = [0, 0], sizes = [4, 256], strides = [1, 1]} : vector<8x256xf32> to vector<4x256xf32>
    %518 = vector.extract_strided_slice %201 {offsets = [0, 0], sizes = [4, 256], strides = [1, 1]} : vector<8x256xf32> to vector<4x256xf32>
    %519 = vector.extract_strided_slice %263 {offsets = [0, 0], sizes = [4, 256], strides = [1, 1]} : vector<8x256xf32> to vector<4x256xf32>
    %520 = vector.extract_strided_slice %325 {offsets = [0, 0], sizes = [4, 256], strides = [1, 1]} : vector<8x256xf32> to vector<4x256xf32>
    %521 = vector.extract_strided_slice %387 {offsets = [0, 0], sizes = [4, 256], strides = [1, 1]} : vector<8x256xf32> to vector<4x256xf32>
    %522 = vector.extract_strided_slice %449 {offsets = [0, 0], sizes = [4, 256], strides = [1, 1]} : vector<8x256xf32> to vector<4x256xf32>
    %523 = vector.extract_strided_slice %511 {offsets = [0, 0], sizes = [4, 256], strides = [1, 1]} : vector<8x256xf32> to vector<4x256xf32>
    %524 = tpu.concatenate %516, %517, %518, %519, %520, %521, %522, %523 in 0 : vector<4x256xf32>, vector<4x256xf32>, vector<4x256xf32>, vector<4x256xf32>, vector<4x256xf32>, vector<4x256xf32>, vector<4x256xf32>, vector<4x256xf32> -> vector<32x256xf32>
    %cst = arith.constant dense<0.000000e+00> : vector<32x32xf32>
    %525 = tpu.matmul %524, %524, %cst {dimension_numbers = #tpu.dot_dimension_numbers<[1], [1], [0], [0], [0, 0, 1, 0], [], []>} : vector<32x256xf32>, vector<32x256xf32>, vector<32x32xf32> -> vector<32x32xf32>
    %cst_242 = arith.constant 6.250000e-02 : f32
    %526 = vector.broadcast %cst_242 : f32 to vector<32x32xf32>
    %527 = arith.mulf %525, %526 : vector<32x32xf32>
    %cst_243 = arith.constant dense<0xFF800000> : vector<32xf32>
    %528 = vector.multi_reduction <maximumf>, %527, %cst_243 [1] : vector<32x32xf32> to vector<32xf32>
    %529 = vector.shape_cast %528 : vector<32xf32> to vector<32x1xf32>
    %530 = vector.broadcast %529 : vector<32x1xf32> to vector<32x32xf32>
    %531 = arith.subf %527, %530 : vector<32x32xf32>
    %532 = math.exp %531 : vector<32x32xf32>
    %cst_244 = arith.constant dense<0.000000e+00> : vector<32xf32>
    %533 = vector.multi_reduction <add>, %532, %cst_244 [1] : vector<32x32xf32> to vector<32xf32>
    %534 = vector.shape_cast %533 : vector<32xf32> to vector<32x1xf32>
    %535 = tpu.reciprocal %534 {approx = true} : vector<32x1xf32> -> vector<32x1xf32>
    %536 = vector.broadcast %535 : vector<32x1xf32> to vector<32x32xf32>
    %537 = arith.mulf %532, %536 : vector<32x32xf32>
    %cst_245 = arith.constant dense<0.000000e+00> : vector<32x256xf32>
    %538 = tpu.matmul %537, %524, %cst_245 {dimension_numbers = #tpu.dot_dimension_numbers<[1], [0], [0], [1], [0, 0, 1, 1], [], []>} : vector<32x32xf32>, vector<32x256xf32>, vector<32x256xf32> -> vector<32x256xf32>
    %539 = vector.broadcast %512 : f32 to vector<32x256xf32>
    %540 = arith.mulf %539, %538 : vector<32x256xf32>
    %541 = arith.addf %540, %524 : vector<32x256xf32>
    %542 = arith.truncf %541 : vector<32x256xf32> to vector<32x256xbf16>
    %cst_246 = arith.constant dense<0.000000e+00> : vector<16x256xf32>
    %543 = tpu.matmul %513, %542, %cst_246 {dimension_numbers = #tpu.dot_dimension_numbers<[1], [0], [0], [1], [0, 0, 1, 1], [], []>} : vector<16x32xbf16>, vector<32x256xbf16>, vector<16x256xf32> -> vector<16x256xf32>
    %544 = vector.broadcast %514 : vector<16x1xf32> to vector<16x256xf32>
    %545 = arith.addf %543, %544 : vector<16x256xf32>
    %cst_247 = arith.constant 0.000000e+00 : f32
    %546 = vector.broadcast %cst_247 : f32 to vector<16x256xf32>
    %547 = arith.cmpf ogt, %545, %546 : vector<16x256xf32>
    %cst_248 = arith.constant 0.000000e+00 : f32
    %548 = vector.broadcast %cst_248 : f32 to vector<16x256xf32>
    %549 = arith.minimumf %545, %548 : vector<16x256xf32>
    %550 = math.exp %549 : vector<16x256xf32>
    %cst_249 = arith.constant 1.000000e+00 : f32
    %551 = vector.broadcast %cst_249 : f32 to vector<16x256xf32>
    %552 = arith.subf %550, %551 : vector<16x256xf32>
    %553 = arith.select %547, %545, %552 : vector<16x256xi1>, vector<16x256xf32>
    %554 = arith.truncf %553 : vector<16x256xf32> to vector<16x256xbf16>
    %cst_250 = arith.constant dense<0.000000e+00> : vector<16x128xf32>
    %555 = tpu.matmul %554, %515, %cst_250 {dimension_numbers = #tpu.dot_dimension_numbers<[1], [0], [0], [1], [0, 0, 1, 1], [], []>} : vector<16x256xbf16>, vector<256x128xbf16>, vector<16x128xf32> -> vector<16x128xf32>
    %c0_251 = arith.constant 0 : index
    %c0_252 = arith.constant 0 : index
    %c0_253 = arith.constant 0 : index
    %556 = vector.load %arg8[%c0_251, %c0_252, %c0_253] : memref<2x16x128xf32, #tpu.memory_space<vmem>>, vector<1x16x128xf32>
    %557 = vector.shape_cast %556 : vector<1x16x128xf32> to vector<16x128xf32>
    %558 = vector.shape_cast %555 : vector<16x128xf32> to vector<1x16x128xf32>
    tpu.vector_store %arg8[%c0_251, %c0_252, %c0_253], %558 {strides = array<i32>} : memref<2x16x128xf32, #tpu.memory_space<vmem>>, vector<1x16x128xf32>,
    %559 = vector.extract_strided_slice %77 {offsets = [4, 0], sizes = [4, 256], strides = [1, 1]} : vector<8x256xf32> to vector<4x256xf32>
    %560 = vector.extract_strided_slice %139 {offsets = [4, 0], sizes = [4, 256], strides = [1, 1]} : vector<8x256xf32> to vector<4x256xf32>
    %561 = vector.extract_strided_slice %201 {offsets = [4, 0], sizes = [4, 256], strides = [1, 1]} : vector<8x256xf32> to vector<4x256xf32>
    %562 = vector.extract_strided_slice %263 {offsets = [4, 0], sizes = [4, 256], strides = [1, 1]} : vector<8x256xf32> to vector<4x256xf32>
    %563 = vector.extract_strided_slice %325 {offsets = [4, 0], sizes = [4, 256], strides = [1, 1]} : vector<8x256xf32> to vector<4x256xf32>
    %564 = vector.extract_strided_slice %387 {offsets = [4, 0], sizes = [4, 256], strides = [1, 1]} : vector<8x256xf32> to vector<4x256xf32>
    %565 = vector.extract_strided_slice %449 {offsets = [4, 0], sizes = [4, 256], strides = [1, 1]} : vector<8x256xf32> to vector<4x256xf32>
    %566 = vector.extract_strided_slice %511 {offsets = [4, 0], sizes = [4, 256], strides = [1, 1]} : vector<8x256xf32> to vector<4x256xf32>
    %567 = tpu.concatenate %559, %560, %561, %562, %563, %564, %565, %566 in 0 : vector<4x256xf32>, vector<4x256xf32>, vector<4x256xf32>, vector<4x256xf32>, vector<4x256xf32>, vector<4x256xf32>, vector<4x256xf32>, vector<4x256xf32> -> vector<32x256xf32>
    %cst_254 = arith.constant dense<0.000000e+00> : vector<32x32xf32>
    %568 = tpu.matmul %567, %567, %cst_254 {dimension_numbers = #tpu.dot_dimension_numbers<[1], [1], [0], [0], [0, 0, 1, 0], [], []>} : vector<32x256xf32>, vector<32x256xf32>, vector<32x32xf32> -> vector<32x32xf32>
    %cst_255 = arith.constant 6.250000e-02 : f32
    %569 = vector.broadcast %cst_255 : f32 to vector<32x32xf32>
    %570 = arith.mulf %568, %569 : vector<32x32xf32>
    %cst_256 = arith.constant dense<0xFF800000> : vector<32xf32>
    %571 = vector.multi_reduction <maximumf>, %570, %cst_256 [1] : vector<32x32xf32> to vector<32xf32>
    %572 = vector.shape_cast %571 : vector<32xf32> to vector<32x1xf32>
    %573 = vector.broadcast %572 : vector<32x1xf32> to vector<32x32xf32>
    %574 = arith.subf %570, %573 : vector<32x32xf32>
    %575 = math.exp %574 : vector<32x32xf32>
    %cst_257 = arith.constant dense<0.000000e+00> : vector<32xf32>
    %576 = vector.multi_reduction <add>, %575, %cst_257 [1] : vector<32x32xf32> to vector<32xf32>
    %577 = vector.shape_cast %576 : vector<32xf32> to vector<32x1xf32>
    %578 = tpu.reciprocal %577 {approx = true} : vector<32x1xf32> -> vector<32x1xf32>
    %579 = vector.broadcast %578 : vector<32x1xf32> to vector<32x32xf32>
    %580 = arith.mulf %575, %579 : vector<32x32xf32>
    %cst_258 = arith.constant dense<0.000000e+00> : vector<32x256xf32>
    %581 = tpu.matmul %580, %567, %cst_258 {dimension_numbers = #tpu.dot_dimension_numbers<[1], [0], [0], [1], [0, 0, 1, 1], [], []>} : vector<32x32xf32>, vector<32x256xf32>, vector<32x256xf32> -> vector<32x256xf32>
    %582 = vector.broadcast %512 : f32 to vector<32x256xf32>
    %583 = arith.mulf %582, %581 : vector<32x256xf32>
    %584 = arith.addf %583, %567 : vector<32x256xf32>
    %585 = arith.truncf %584 : vector<32x256xf32> to vector<32x256xbf16>
    %cst_259 = arith.constant dense<0.000000e+00> : vector<16x256xf32>
    %586 = tpu.matmul %513, %585, %cst_259 {dimension_numbers = #tpu.dot_dimension_numbers<[1], [0], [0], [1], [0, 0, 1, 1], [], []>} : vector<16x32xbf16>, vector<32x256xbf16>, vector<16x256xf32> -> vector<16x256xf32>
    %587 = vector.broadcast %514 : vector<16x1xf32> to vector<16x256xf32>
    %588 = arith.addf %586, %587 : vector<16x256xf32>
    %cst_260 = arith.constant 0.000000e+00 : f32
    %589 = vector.broadcast %cst_260 : f32 to vector<16x256xf32>
    %590 = arith.cmpf ogt, %588, %589 : vector<16x256xf32>
    %cst_261 = arith.constant 0.000000e+00 : f32
    %591 = vector.broadcast %cst_261 : f32 to vector<16x256xf32>
    %592 = arith.minimumf %588, %591 : vector<16x256xf32>
    %593 = math.exp %592 : vector<16x256xf32>
    %cst_262 = arith.constant 1.000000e+00 : f32
    %594 = vector.broadcast %cst_262 : f32 to vector<16x256xf32>
    %595 = arith.subf %593, %594 : vector<16x256xf32>
    %596 = arith.select %590, %588, %595 : vector<16x256xi1>, vector<16x256xf32>
    %597 = arith.truncf %596 : vector<16x256xf32> to vector<16x256xbf16>
    %cst_263 = arith.constant dense<0.000000e+00> : vector<16x128xf32>
    %598 = tpu.matmul %597, %515, %cst_263 {dimension_numbers = #tpu.dot_dimension_numbers<[1], [0], [0], [1], [0, 0, 1, 1], [], []>} : vector<16x256xbf16>, vector<256x128xbf16>, vector<16x128xf32> -> vector<16x128xf32>
    %c1_264 = arith.constant 1 : index
    %c0_265 = arith.constant 0 : index
    %c0_266 = arith.constant 0 : index
    %599 = vector.load %arg8[%c1_264, %c0_265, %c0_266] : memref<2x16x128xf32, #tpu.memory_space<vmem>>, vector<1x16x128xf32>
    %600 = vector.shape_cast %599 : vector<1x16x128xf32> to vector<16x128xf32>
    %601 = vector.shape_cast %598 : vector<16x128xf32> to vector<1x16x128xf32>
    tpu.vector_store %arg8[%c1_264, %c0_265, %c0_266], %601 {strides = array<i32>} : memref<2x16x128xf32, #tpu.memory_space<vmem>>, vector<1x16x128xf32>,
    return
  }
  func.func @transform_0(%arg0: i32) -> (i32, i32) {
    %c0_i32 = arith.constant 0 : i32
    %c0_i32_0 = arith.constant 0 : i32
    return %arg0, %c0_i32 : i32, i32
  }
  func.func @transform_1(%arg0: i32) -> (i32, i32) {
    %c0_i32 = arith.constant 0 : i32
    %c0_i32_0 = arith.constant 0 : i32
    %c0_i32_1 = arith.constant 0 : i32
    return %c0_i32, %c0_i32_0 : i32, i32
  }
  func.func @transform_2(%arg0: i32) -> i32 {
    %c0_i32 = arith.constant 0 : i32
    %c0_i32_0 = arith.constant 0 : i32
    return %c0_i32 : i32
  }
  func.func @transform_3(%arg0: i32) -> i32 {
    %c0_i32 = arith.constant 0 : i32
    %c0_i32_0 = arith.constant 0 : i32
    return %c0_i32 : i32
  }
  func.func @transform_4(%arg0: i32) -> (i32, i32) {
    %c0_i32 = arith.constant 0 : i32
    %c0_i32_0 = arith.constant 0 : i32
    %c0_i32_1 = arith.constant 0 : i32
    return %c0_i32, %c0_i32_0 : i32, i32
  }
  func.func @transform_5(%arg0: i32) -> (i32, i32) {
    %c0_i32 = arith.constant 0 : i32
    %c0_i32_0 = arith.constant 0 : i32
    %c0_i32_1 = arith.constant 0 : i32
    return %c0_i32, %c0_i32_0 : i32, i32
  }
  func.func @transform_6(%arg0: i32) -> (i32, i32) {
    %c0_i32 = arith.constant 0 : i32
    %c0_i32_0 = arith.constant 0 : i32
    %c0_i32_1 = arith.constant 0 : i32
    return %c0_i32, %c0_i32_0 : i32, i32
  }
  func.func @transform_7(%arg0: i32) -> (i32, i32, i32) {
    %c0_i32 = arith.constant 0 : i32
    %c0_i32_0 = arith.constant 0 : i32
    %c0_i32_1 = arith.constant 0 : i32
    return %arg0, %c0_i32, %c0_i32_0 : i32, i32, i32
  }
}

</mosaic_0001>

<llo_original>
// kernel: tpu_custom_call.1
$region0: #{tpu_custom_call.1}
  #allocation0 [shape = 'u32[]', space=smem, size = 0x4, offset = 0x4, fixed_abs, tag = 'smem constant byte address 0x4 - core index']
  #allocation1 [shape = 'u32[144,128]{1,0:T(1,128)}', space=vmem, size = 0x12000, scoped, tag = 'internal scratch']
  #allocation2 [shape = 'f32[1]{0:T(128)S(6)}', space=smem, size = 0x200, scoped, tag = 'scoped memory for tpu_custom_call.1']
  %s0 = inlined_call_operand.hbm [shape: f32[16,270], index: 0, kind: input, shape index: {}]
  %s1 = inlined_call_operand.vmem [shape: f32[8,15], index: 1, kind: input, shape index: {}]
  %s2 = inlined_call_operand.vmem [shape: f32[8], index: 2, kind: input, shape index: {}]
  %s3 = inlined_call_operand.<no memory space> [shape: f32[1], index: 3, kind: input, shape index: {}]
  %s4 = inlined_call_operand.vmem [shape: bf16[16,32], index: 4, kind: input, shape index: {}]
  %s5 = inlined_call_operand.vmem [shape: f32[16,1], index: 5, kind: input, shape index: {}]
  %s6 = inlined_call_operand.hbm [shape: bf16[256,128], index: 6, kind: input, shape index: {}]
  %s7 = inlined_call_operand.hbm [shape: f32[4,16,128], index: 7, kind: output, shape index: {}]
  %s8 = sld [smem:[#allocation0]]
  $region77: #{tpu_custom_call.1} parent=0
    _
  %s10 = ssub.s32 1, %s8
  %s11 = scalar_select 0, %s10, %s8
  %12 = sst [smem:[#allocation2]] %s3
  $region1: #{tpu_custom_call.1} parent=0
    #allocation3 [shape = 'u8[24576]{0}', space=vmem, size = 0x6000, scoped, tag = 'input window, operand 0']
    #allocation4 [shape = 's32[2]{0}', space=sflag, size = 0x8, scoped, tag = 'scoped memory for tpu_custom_call.1']
    #allocation5 [shape = 's32[2]{0}', space=sflag, size = 0x8, scoped, tag = 'scoped memory for tpu_custom_call.1']
    #allocation6 [shape = 's32[2]{0}', space=sflag, size = 0x8, scoped, tag = 'scoped memory for tpu_custom_call.1']
    #allocation7 [shape = 'u8[4096]{0}', space=smem, size = 0x1000, scoped, tag = 'input window, operand 1, single buffered']
    #allocation8 [shape = 'u8[512]{0}', space=smem, size = 0x200, scoped, tag = 'input window, operand 2, single buffered']
    #allocation9 [shape = 's32[1]{0}', space=sflag, size = 0x4, scoped, tag = 'scoped memory for tpu_custom_call.1']
    #allocation10 [shape = 'u8[65536]{0}', space=vmem, size = 0x10000, scoped, tag = 'input window, operand 6, single buffered']
    #allocation11 [shape = 's32[1]{0}', space=sflag, size = 0x4, scoped, tag = 'scoped memory for tpu_custom_call.1']
    #allocation12 [shape = 'u8[32768]{0}', space=vmem, size = 0x8000, scoped, tag = 'output window, operand 0']
    %13 = vsyncpa [#allocation4], 0
    %s14 = scalar_lea.sflag [#allocation4], 1
    %15 = vsyncpa %s14, 0
    %16 = vsyncpa [#allocation6], 0
    %17 = vsyncpa [#allocation9], 0
    %18 = vsyncpa [#allocation11], 0
    %19 = vsyncpa [#allocation5], 0
    %s20 = scalar_lea.sflag [#allocation5], 1
    %21 = vsyncpa %s20, 0
    loop: start=0, step=1, limit=4
    $region2: #{tpu_custom_call.1} parent=1 // loop_pre_header
      _
    $region3: #{tpu_custom_call.1} parent=1 // loop_header
      %s23 = sphi 0, %s27
      %p24 = scmp.ge.s32.totalorder %s23, 4
      %s33 = sphi 0, %s35
      %s36 = sphi 0, %s33
      %s37 = sphi 0, %s36
      %s53 = sphi 0, %s37
      %s57 = sphi 0, %s57
      %s59 = sphi 0, %s57
      %s60 = sphi 0, %s59
      %s74 = sphi 0, %s60
      %s78 = sphi 0, %s78
      %s80 = sphi 0, %s78
      %s81 = sphi 0, %s80
      %s95 = sphi 0, %s81
      %s99 = sphi 0, %s99
      %s101 = sphi 0, %s99
      %s102 = sphi 0, %s101
      %s116 = sphi 0, %s102
      %s120 = sphi 0, %s120
      %s122 = sphi 0, %s120
      %s123 = sphi 0, %s122
      %s137 = sphi 0, %s123
      %s141 = sphi 0, %s141
      %s143 = sphi 0, %s141
      %s144 = sphi 0, %s143
      %s158 = sphi 0, %s144
      %s162 = sphi 0, %s162
      %s164 = sphi 0, %s162
      %s165 = sphi 0, %s164
      %s179 = sphi 0, %s165
      %s185 = sphi 0, %s187
      %s188 = sphi 0, %s185
      %s189 = sphi 0, %s188
      %s205 = sphi 0, %s189
    $region4: #{tpu_custom_call.1} parent=1 // loop_header_branch
      %26 = sbr.rel (%p24) target = $region8
    $region5: #{tpu_custom_call.1} parent=1 // loop_body
      %s28 = ssub.s32 %s23, 1
      %s29 = ssub.s32 %s23, 2
      %s30 = sadd.s32 %s23, 1
      %s31 = ssub.s32 %s23, %s30
      %p32 = scmp.eq.s32.totalorder %s31, 0
      %s34 = sadd.s32 %s33, 1
      %s35 = scalar_select %p32, %s33, %s34
      %p38 = pneg %p32
      %p39 = scmp.eq.s32.totalorder %s23, 1
      %p40 = por %p38, %p39
      %p41 = scmp.ne.s32.totalorder %s33, %s36
      %p42 = scmp.eq.s32.totalorder %s23, 0
      %p43 = por %p41, %p42
      %p44 = scmp.ne.s32.totalorder %s33, %s36
      %p45 = scmp.eq.s32.totalorder %s28, 1
      %p46 = por %p44, %p45
      %p47 = scmp.ne.s32.totalorder %s36, %s37
      %p48 = scmp.eq.s32.totalorder %s28, 0
      %p49 = por %p47, %p48
      %p50 = scmp.ne.s32.totalorder %s36, %s37
      %p51 = scmp.eq.s32.totalorder %s29, 1
      %p52 = por %p50, %p51
      %p54 = scmp.ne.s32.totalorder %s37, %s53
      %p55 = scmp.eq.s32.totalorder %s29, 0
      %p56 = por %p54, %p55
      %s58 = sadd.s32 %s57, 1
      %p61 = scmp.eq.s32.totalorder %s23, 1
      %p62 = scmp.ne.s32.totalorder %s57, %s59
      %p63 = scmp.eq.s32.totalorder %s23, 0
      %p64 = por %p62, %p63
      %p65 = scmp.ne.s32.totalorder %s57, %s59
      %p66 = scmp.eq.s32.totalorder %s28, 1
      %p67 = por %p65, %p66
      %p68 = scmp.ne.s32.totalorder %s59, %s60
      %p69 = scmp.eq.s32.totalorder %s28, 0
      %p70 = por %p68, %p69
      %p71 = scmp.ne.s32.totalorder %s59, %s60
      %p72 = scmp.eq.s32.totalorder %s29, 1
      %p73 = por %p71, %p72
      %p75 = scmp.ne.s32.totalorder %s60, %s74
      %p76 = scmp.eq.s32.totalorder %s29, 0
      %p77 = por %p75, %p76
      %s79 = sadd.s32 %s78, 1
      %p82 = scmp.eq.s32.totalorder %s23, 1
      %p83 = scmp.ne.s32.totalorder %s78, %s80
      %p84 = scmp.eq.s32.totalorder %s23, 0
      %p85 = por %p83, %p84
      %p86 = scmp.ne.s32.totalorder %s78, %s80
      %p87 = scmp.eq.s32.totalorder %s28, 1
      %p88 = por %p86, %p87
      %p89 = scmp.ne.s32.totalorder %s80, %s81
      %p90 = scmp.eq.s32.totalorder %s28, 0
      %p91 = por %p89, %p90
      %p92 = scmp.ne.s32.totalorder %s80, %s81
      %p93 = scmp.eq.s32.totalorder %s29, 1
      %p94 = por %p92, %p93
      %p96 = scmp.ne.s32.totalorder %s81, %s95
      %p97 = scmp.eq.s32.totalorder %s29, 0
      %p98 = por %p96, %p97
      %s100 = sadd.s32 %s99, 1
      %p103 = scmp.eq.s32.totalorder %s23, 1
      %p104 = scmp.ne.s32.totalorder %s99, %s101
      %p105 = scmp.eq.s32.totalorder %s23, 0
      %p106 = por %p104, %p105
      %p107 = scmp.ne.s32.totalorder %s99, %s101
      %p108 = scmp.eq.s32.totalorder %s28, 1
      %p109 = por %p107, %p108
      %p110 = scmp.ne.s32.totalorder %s101, %s102
      %p111 = scmp.eq.s32.totalorder %s28, 0
      %p112 = por %p110, %p111
      %p113 = scmp.ne.s32.totalorder %s101, %s102
      %p114 = scmp.eq.s32.totalorder %s29, 1
      %p115 = por %p113, %p114
      %p117 = scmp.ne.s32.totalorder %s102, %s116
      %p118 = scmp.eq.s32.totalorder %s29, 0
      %p119 = por %p117, %p118
      %s121 = sadd.s32 %s120, 1
      %p124 = scmp.eq.s32.totalorder %s23, 1
      %p125 = scmp.ne.s32.totalorder %s120, %s122
      %p126 = scmp.eq.s32.totalorder %s23, 0
      %p127 = por %p125, %p126
      %p128 = scmp.ne.s32.totalorder %s120, %s122
      %p129 = scmp.eq.s32.totalorder %s28, 1
      %p130 = por %p128, %p129
      %p131 = scmp.ne.s32.totalorder %s122, %s123
      %p132 = scmp.eq.s32.totalorder %s28, 0
      %p133 = por %p131, %p132
      %p134 = scmp.ne.s32.totalorder %s122, %s123
      %p135 = scmp.eq.s32.totalorder %s29, 1
      %p136 = por %p134, %p135
      %p138 = scmp.ne.s32.totalorder %s123, %s137
      %p139 = scmp.eq.s32.totalorder %s29, 0
      %p140 = por %p138, %p139
      %s142 = sadd.s32 %s141, 1
      %p145 = scmp.eq.s32.totalorder %s23, 1
      %p146 = scmp.ne.s32.totalorder %s141, %s143
      %p147 = scmp.eq.s32.totalorder %s23, 0
      %p148 = por %p146, %p147
      %p149 = scmp.ne.s32.totalorder %s141, %s143
      %p150 = scmp.eq.s32.totalorder %s28, 1
      %p151 = por %p149, %p150
      %p152 = scmp.ne.s32.totalorder %s143, %s144
      %p153 = scmp.eq.s32.totalorder %s28, 0
      %p154 = por %p152, %p153
      %p155 = scmp.ne.s32.totalorder %s143, %s144
      %p156 = scmp.eq.s32.totalorder %s29, 1
      %p157 = por %p155, %p156
      %p159 = scmp.ne.s32.totalorder %s144, %s158
      %p160 = scmp.eq.s32.totalorder %s29, 0
      %p161 = por %p159, %p160
      %s163 = sadd.s32 %s162, 1
      %p166 = scmp.eq.s32.totalorder %s23, 1
      %p167 = scmp.ne.s32.totalorder %s162, %s164
      %p168 = scmp.eq.s32.totalorder %s23, 0
      %p169 = por %p167, %p168
      %p170 = scmp.ne.s32.totalorder %s162, %s164
      %p171 = scmp.eq.s32.totalorder %s28, 1
      %p172 = por %p170, %p171
      %p173 = scmp.ne.s32.totalorder %s164, %s165
      %p174 = scmp.eq.s32.totalorder %s28, 0
      %p175 = por %p173, %p174
      %p176 = scmp.ne.s32.totalorder %s164, %s165
      %p177 = scmp.eq.s32.totalorder %s29, 1
      %p178 = por %p176, %p177
      %p180 = scmp.ne.s32.totalorder %s165, %s179
      %p181 = scmp.eq.s32.totalorder %s29, 0
      %p182 = por %p180, %p181
      %s183 = ssub.s32 %s23, %s30
      %p184 = scmp.eq.s32.totalorder %s183, 0
      %s186 = sadd.s32 %s185, 1
      %s187 = scalar_select %p184, %s185, %s186
      %p190 = pneg %p184
      %p191 = scmp.eq.s32.totalorder %s23, 1
      %p192 = por %p190, %p191
      %p193 = scmp.ne.s32.totalorder %s185, %s188
      %p194 = scmp.eq.s32.totalorder %s23, 0
      %p195 = por %p193, %p194
      %p196 = scmp.ne.s32.totalorder %s185, %s188
      %p197 = scmp.eq.s32.totalorder %s28, 1
      %p198 = por %p196, %p197
      %p199 = scmp.ne.s32.totalorder %s188, %s189
      %p200 = scmp.eq.s32.totalorder %s28, 0
      %p201 = por %p199, %p200
      %p202 = scmp.ne.s32.totalorder %s188, %s189
      %p203 = scmp.eq.s32.totalorder %s29, 1
      %p204 = por %p202, %p203
      %p206 = scmp.ne.s32.totalorder %s189, %s205
      %p207 = scmp.eq.s32.totalorder %s29, 0
      %p208 = por %p206, %p207
      %p209 = scmp.le.s32.totalorder 1, %s23
      %p210 = scmp.lt.s32.totalorder %s23, 3
      %p211 = pnand %p209, %p210
      %p212 = pneg %p211
      // Predicated region
      $region9: #{tpu_custom_call.1} parent=5 // pred_check
        _
      $region10: #{tpu_custom_call.1} parent=5 // pred_check_branch
        %214 = sbr.rel (%p211) target = $region12
      $region11: #{tpu_custom_call.1} parent=5 // pred_region
        %s215 = ssub.s32 %s23, 1
        // Predicated region
        $region13: #{tpu_custom_call.1} parent=11 // pred_check
          %p216 = pneg %p70
        $region14: #{tpu_custom_call.1} parent=11 // pred_check_branch
          %218 = sbr.rel (%p216) target = $region16
        $region15: #{tpu_custom_call.1} parent=11 // pred_region
          %s220 = ssub.s32 128, 128
          %221 = vsyncadd [#allocation6], %s220
          %s223 = sshll.u32 %s1, 4
          %s224 = int_to_ptr.vmem [resolvable:$true] %s223
          %226 = dma.vmem_to_smem %s224, 128, [#allocation7], [#allocation6]
        $region16: #{tpu_custom_call.1} parent=11 // pred_fallthru
          _
        // Predicated region
        $region17: #{tpu_custom_call.1} parent=11 // pred_check
          %p227 = pneg %p91
        $region18: #{tpu_custom_call.1} parent=11 // pred_check_branch
          %229 = sbr.rel (%p227) target = $region20
        $region19: #{tpu_custom_call.1} parent=11 // pred_region
          %s231 = ssub.s32 16, 16
          %232 = vsyncadd [#allocation9], %s231
          %s234 = sshll.u32 %s2, 4
          %s235 = int_to_ptr.vmem [resolvable:$true] %s234
          %237 = dma.vmem_to_smem %s235, 16, [#allocation8], [#allocation9]
        $region20: #{tpu_custom_call.1} parent=11 // pred_fallthru
          _
        // Predicated region
        $region21: #{tpu_custom_call.1} parent=11 // pred_check
          %p238 = pneg %p112
        $region22: #{tpu_custom_call.1} parent=11 // pred_check_branch
          %240 = sbr.rel (%p238) target = $region24
        $region23: #{tpu_custom_call.1} parent=11 // pred_region
          _
        $region24: #{tpu_custom_call.1} parent=11 // pred_fallthru
          _
        // Predicated region
        $region25: #{tpu_custom_call.1} parent=11 // pred_check
          %p241 = pneg %p133
        $region26: #{tpu_custom_call.1} parent=11 // pred_check_branch
          %243 = sbr.rel (%p241) target = $region28
        $region27: #{tpu_custom_call.1} parent=11 // pred_region
          _
        $region28: #{tpu_custom_call.1} parent=11 // pred_fallthru
          _
        // Predicated region
        $region29: #{tpu_custom_call.1} parent=11 // pred_check
          %p244 = pneg %p154
        $region30: #{tpu_custom_call.1} parent=11 // pred_check_branch
          %246 = sbr.rel (%p244) target = $region32
        $region31: #{tpu_custom_call.1} parent=11 // pred_region
          _
        $region32: #{tpu_custom_call.1} parent=11 // pred_fallthru
          _
        // Predicated region
        $region33: #{tpu_custom_call.1} parent=11 // pred_check
          %p247 = pneg %p175
        $region34: #{tpu_custom_call.1} parent=11 // pred_check_branch
          %249 = sbr.rel (%p247) target = $region36
        $region35: #{tpu_custom_call.1} parent=11 // pred_region
          %s251 = ssub.s32 2048, 2048
          %252 = vsyncadd [#allocation11], %s251
          %s253 = sshll.u32 [#allocation10], 4
          %s254 = int_to_ptr.vmem [resolvable:$true] %s253
          %259 = dma.hbm_to_vmem [thread:$0]  %s6, 2048, %s254, [#allocation11], 64, 64, 4
        $region36: #{tpu_custom_call.1} parent=11 // pred_fallthru
          _
      $region12: #{tpu_custom_call.1} parent=5 // pred_fallthru
        _
      %p260 = scmp.lt.s32.totalorder %s23, 2
      // Predicated region
      $region37: #{tpu_custom_call.1} parent=5 // pred_check
        %p261 = pneg %p260
      $region38: #{tpu_custom_call.1} parent=5 // pred_check_branch
        %263 = sbr.rel (%p261) target = $region40
      $region39: #{tpu_custom_call.1} parent=5 // pred_region
        // Predicated region
        $region41: #{tpu_custom_call.1} parent=39 // pred_check
          %p264 = pneg %p43
        $region42: #{tpu_custom_call.1} parent=39 // pred_check_branch
          %266 = sbr.rel (%p264) target = $region44
        $region43: #{tpu_custom_call.1} parent=39 // pred_region
          %s267 = sand.u32 %s33, 1
          %s268 = scalar_lea.sflag [#allocation4], %s267
          %s269 = sand.u32 %s33, 1
          %s270 = smul.addr %s269, 24
          %s271 = scalar_lea.vmem [#allocation3], %s270
          %s273 = ssub.s32 384, 384
          %274 = vsyncadd %s268, %s273
          %s275 = smul.addr %s23, 3
          %s276 = smul.addr %s275, 128
          %s277 = scalar_lea.hbm %s0, %s276
          %s279 = sshll.u32 %s271, 4
          %s280 = int_to_ptr.vmem [resolvable:$true] %s279
          %282 = dma.hbm_to_vmem [thread:$0]  %s277, 384, %s280, %s268
        $region44: #{tpu_custom_call.1} parent=39 // pred_fallthru
          _
      $region40: #{tpu_custom_call.1} parent=5 // pred_fallthru
        _
      %p283 = scmp.le.s32.totalorder 1, %s23
      %p284 = scmp.lt.s32.totalorder %s23, 3
      %p285 = pnand %p283, %p284
      %p286 = pneg %p285
      // Predicated region
      $region45: #{tpu_custom_call.1} parent=5 // pred_check
        _
      $region46: #{tpu_custom_call.1} parent=5 // pred_check_branch
        %288 = sbr.rel (%p285) target = $region48
      $region47: #{tpu_custom_call.1} parent=5 // pred_region
        %s289 = ssub.s32 %s23, 1
        %s290 = sand.u32 %s36, 1
        %s291 = scalar_lea.sflag [#allocation4], %s290
        %s292 = sand.u32 %s36, 1
        %s293 = smul.addr %s292, 24
        %s294 = scalar_lea.vmem [#allocation3], %s293
        // Predicated region
        $region49: #{tpu_custom_call.1} parent=47 // pred_check
          %p295 = pneg %p49
        $region50: #{tpu_custom_call.1} parent=47 // pred_check_branch
          %297 = sbr.rel (%p295) target = $region52
        $region51: #{tpu_custom_call.1} parent=47 // pred_region
          %298 = dma.done %s291, 384
        $region52: #{tpu_custom_call.1} parent=47 // pred_fallthru
          _
        // Predicated region
        $region53: #{tpu_custom_call.1} parent=47 // pred_check
          %p299 = pneg %p70
        $region54: #{tpu_custom_call.1} parent=47 // pred_check_branch
          %301 = sbr.rel (%p299) target = $region56
        $region55: #{tpu_custom_call.1} parent=47 // pred_region
          %302 = dma.done [#allocation6], 128
        $region56: #{tpu_custom_call.1} parent=47 // pred_fallthru
          _
        // Predicated region
        $region57: #{tpu_custom_call.1} parent=47 // pred_check
          %p303 = pneg %p91
        $region58: #{tpu_custom_call.1} parent=47 // pred_check_branch
          %305 = sbr.rel (%p303) target = $region60
        $region59: #{tpu_custom_call.1} parent=47 // pred_region
          %306 = dma.done [#allocation9], 16
        $region60: #{tpu_custom_call.1} parent=47 // pred_fallthru
          _
        // Predicated region
        $region61: #{tpu_custom_call.1} parent=47 // pred_check
          %p307 = pneg %p175
        $region62: #{tpu_custom_call.1} parent=47 // pred_check_branch
          %309 = sbr.rel (%p307) target = $region64
        $region63: #{tpu_custom_call.1} parent=47 // pred_region
          %310 = dma.done [#allocation11], 2048
        $region64: #{tpu_custom_call.1} parent=47 // pred_fallthru
          _
        %311 = sfence
        %s312 = sand.u32 %s36, 1
        %s313 = scalar_lea.sflag [#allocation4], %s312
        %s314 = sand.u32 %s36, 1
        %s315 = smul.addr %s314, 24
        %s316 = scalar_lea.vmem [#allocation3], %s315
        %p317 = pneg %p49
        %p318 = pneg %p46
        %p319 = pneg %p70
        %p320 = pneg %p67
        %p321 = pneg %p91
        %p322 = pneg %p88
        %p323 = pneg %p112
        %p324 = pneg %p109
        %p325 = pneg %p133
        %p326 = pneg %p130
        %p327 = pneg %p154
        %p328 = pneg %p151
        %p329 = pneg %p175
        %p330 = pneg %p172
        %p331 = pneg %p201
        %p332 = pneg %p198
        %s333 = sand.u32 %s188, 1
        %s334 = scalar_lea.sflag [#allocation5], %s333
        %s335 = sand.u32 %s188, 1
        %s336 = smul.addr %s335, 32
        %s337 = scalar_lea.vmem [#allocation12], %s336
        %s338 = smul.u32 2, %s28
        %v340 = vld [vmem:[%s294] sm:$0xff]
        %v341 = vld [vmem:[%s294 + $0x8] sm:$0xff]
        %v342 = vld [vmem:[%s294 + $0x10] sm:$0xff]
        %s343 = sld [smem:[#allocation7]]
        %v344 = vstv %s343
        %v345 = vmul.f32 %v340, %v344
        %v346 = vmul.f32 %v341, %v344
        %s347 = sld [smem:[#allocation7 + $0x1]]
        %v348 = vstv %s347
        %v349 = vmul.f32 %v340, %v348
        %v350 = vmul.f32 %v341, %v348
        %v351 = vmul.f32 %v342, %v348
        %355 = vrot.lane.b32.xlu0 %v349, 127
        %v356 = vpop.permute.xlu0 %355
        %357 = vrot.lane.b32.xlu0 %v350, 127
        %v358 = vpop.permute.xlu0 %357
        %359 = vrot.lane.b32.xlu0 %v351, 127
        %v360 = vpop.permute.xlu0 %359
        %vm361 = vcmask 1039360
        %v362 = vsel %vm361, %v356, %v358
        %v363 = vsel %vm361, %v358, %v360
        %v366 = vadd.f32 %v345, %v362
        %v367 = vadd.f32 %v346, %v363
        %s368 = sld [smem:[#allocation7 + $0x2]]
        %v369 = vstv %s368
        %v370 = vmul.f32 %v340, %v369
        %v371 = vmul.f32 %v341, %v369
        %v372 = vmul.f32 %v342, %v369
        %376 = vrot.lane.b32.xlu0 %v370, 126
        %v377 = vpop.permute.xlu0 %376
        %378 = vrot.lane.b32.xlu0 %v371, 126
        %v379 = vpop.permute.xlu0 %378
        %380 = vrot.lane.b32.xlu0 %v372, 126
        %v381 = vpop.permute.xlu0 %380
        %vm382 = vcmask 1031168
        %v383 = vsel %vm382, %v377, %v379
        %v384 = vsel %vm382, %v379, %v381
        %v387 = vadd.f32 %v366, %v383
        %v388 = vadd.f32 %v367, %v384
        %s389 = sld [smem:[#allocation7 + $0x3]]
        %v390 = vstv %s389
        %v391 = vmul.f32 %v340, %v390
        %v392 = vmul.f32 %v341, %v390
        %v393 = vmul.f32 %v342, %v390
        %397 = vrot.lane.b32.xlu0 %v391, 125
        %v398 = vpop.permute.xlu0 %397
        %399 = vrot.lane.b32.xlu0 %v392, 125
        %v400 = vpop.permute.xlu0 %399
        %401 = vrot.lane.b32.xlu0 %v393, 125
        %v402 = vpop.permute.xlu0 %401
        %vm403 = vcmask 1022976
        %v404 = vsel %vm403, %v398, %v400
        %v405 = vsel %vm403, %v400, %v402
        %v408 = vadd.f32 %v387, %v404
        %v409 = vadd.f32 %v388, %v405
        %s410 = sld [smem:[#allocation7 + $0x4]]
        %v411 = vstv %s410
        %v412 = vmul.f32 %v340, %v411
        %v413 = vmul.f32 %v341, %v411
        %v414 = vmul.f32 %v342, %v411
        %418 = vrot.lane.b32.xlu0 %v412, 124
        %v419 = vpop.permute.xlu0 %418
        %420 = vrot.lane.b32.xlu0 %v413, 124
        %v421 = vpop.permute.xlu0 %420
        %422 = vrot.lane.b32.xlu0 %v414, 124
        %v423 = vpop.permute.xlu0 %422
        %vm424 = vcmask 1014784
        %v425 = vsel %vm424, %v419, %v421
        %v426 = vsel %vm424, %v421, %v423
        %v429 = vadd.f32 %v408, %v425
        %v430 = vadd.f32 %v409, %v426
        %s431 = sld [smem:[#allocation7 + $0x5]]
        %v432 = vstv %s431
        %v433 = vmul.f32 %v340, %v432
        %v434 = vmul.f32 %v341, %v432
        %v435 = vmul.f32 %v342, %v432
        %439 = vrot.lane.b32.xlu0 %v433, 123
        %v440 = vpop.permute.xlu0 %439
        %441 = vrot.lane.b32.xlu0 %v434, 123
        %v442 = vpop.permute.xlu0 %441
        %443 = vrot.lane.b32.xlu0 %v435, 123
        %v444 = vpop.permute.xlu0 %443
        %vm445 = vcmask 1006592
        %v446 = vsel %vm445, %v440, %v442
        %v447 = vsel %vm445, %v442, %v444
        %v450 = vadd.f32 %v429, %v446
        %v451 = vadd.f32 %v430, %v447
        %s452 = sld [smem:[#allocation7 + $0x6]]
        %v453 = vstv %s452
        %v454 = vmul.f32 %v340, %v453
        %v455 = vmul.f32 %v341, %v453
        %v456 = vmul.f32 %v342, %v453
        %460 = vrot.lane.b32.xlu0 %v454, 122
        %v461 = vpop.permute.xlu0 %460
        %462 = vrot.lane.b32.xlu0 %v455, 122
        %v463 = vpop.permute.xlu0 %462
        %464 = vrot.lane.b32.xlu0 %v456, 122
        %v465 = vpop.permute.xlu0 %464
        %vm466 = vcmask 998400
        %v467 = vsel %vm466, %v461, %v463
        %v468 = vsel %vm466, %v463, %v465
        %v471 = vadd.f32 %v450, %v467
        %v472 = vadd.f32 %v451, %v468
        %s473 = sld [smem:[#allocation7 + $0x7]]
        %v474 = vstv %s473
        %v475 = vmul.f32 %v340, %v474
        %v476 = vmul.f32 %v341, %v474
        %v477 = vmul.f32 %v342, %v474
        %481 = vrot.lane.b32.xlu0 %v475, 121
        %v482 = vpop.permute.xlu0 %481
        %483 = vrot.lane.b32.xlu0 %v476, 121
        %v484 = vpop.permute.xlu0 %483
        %485 = vrot.lane.b32.xlu0 %v477, 121
        %v486 = vpop.permute.xlu0 %485
        %vm487 = vcmask 990208
        %v488 = vsel %vm487, %v482, %v484
        %v489 = vsel %vm487, %v484, %v486
        %v492 = vadd.f32 %v471, %v488
        %v493 = vadd.f32 %v472, %v489
        %s494 = sld [smem:[#allocation7 + $0x8]]
        %v495 = vstv %s494
        %v496 = vmul.f32 %v340, %v495
        %v497 = vmul.f32 %v341, %v495
        %v498 = vmul.f32 %v342, %v495
        %502 = vrot.lane.b32.xlu0 %v496, 120
        %v503 = vpop.permute.xlu0 %502
        %504 = vrot.lane.b32.xlu0 %v497, 120
        %v505 = vpop.permute.xlu0 %504
        %506 = vrot.lane.b32.xlu0 %v498, 120
        %v507 = vpop.permute.xlu0 %506
        %vm508 = vcmask 982016
        %v509 = vsel %vm508, %v503, %v505
        %v510 = vsel %vm508, %v505, %v507
        %v513 = vadd.f32 %v492, %v509
        %v514 = vadd.f32 %v493, %v510
        %s515 = sld [smem:[#allocation7 + $0x9]]
        %v516 = vstv %s515
        %v517 = vmul.f32 %v340, %v516
        %v518 = vmul.f32 %v341, %v516
        %v519 = vmul.f32 %v342, %v516
        %523 = vrot.lane.b32.xlu0 %v517, 119
        %v524 = vpop.permute.xlu0 %523
        %525 = vrot.lane.b32.xlu0 %v518, 119
        %v526 = vpop.permute.xlu0 %525
        %527 = vrot.lane.b32.xlu0 %v519, 119
        %v528 = vpop.permute.xlu0 %527
        %vm529 = vcmask 973824
        %v530 = vsel %vm529, %v524, %v526
        %v531 = vsel %vm529, %v526, %v528
        %v534 = vadd.f32 %v513, %v530
        %v535 = vadd.f32 %v514, %v531
        %s536 = sld [smem:[#allocation7 + $0xa]]
        %v537 = vstv %s536
        %v538 = vmul.f32 %v340, %v537
        %v539 = vmul.f32 %v341, %v537
        %v540 = vmul.f32 %v342, %v537
        %544 = vrot.lane.b32.xlu0 %v538, 118
        %v545 = vpop.permute.xlu0 %544
        %546 = vrot.lane.b32.xlu0 %v539, 118
        %v547 = vpop.permute.xlu0 %546
        %548 = vrot.lane.b32.xlu0 %v540, 118
        %v549 = vpop.permute.xlu0 %548
        %vm550 = vcmask 965632
        %v551 = vsel %vm550, %v545, %v547
        %v552 = vsel %vm550, %v547, %v549
        %v555 = vadd.f32 %v534, %v551
        %v556 = vadd.f32 %v535, %v552
        %s557 = sld [smem:[#allocation7 + $0xb]]
        %v558 = vstv %s557
        %v559 = vmul.f32 %v340, %v558
        %v560 = vmul.f32 %v341, %v558
        %v561 = vmul.f32 %v342, %v558
        %565 = vrot.lane.b32.xlu0 %v559, 117
        %v566 = vpop.permute.xlu0 %565
        %567 = vrot.lane.b32.xlu0 %v560, 117
        %v568 = vpop.permute.xlu0 %567
        %569 = vrot.lane.b32.xlu0 %v561, 117
        %v570 = vpop.permute.xlu0 %569
        %vm571 = vcmask 957440
        %v572 = vsel %vm571, %v566, %v568
        %v573 = vsel %vm571, %v568, %v570
        %v576 = vadd.f32 %v555, %v572
        %v577 = vadd.f32 %v556, %v573
        %s578 = sld [smem:[#allocation7 + $0xc]]
        %v579 = vstv %s578
        %v580 = vmul.f32 %v340, %v579
        %v581 = vmul.f32 %v341, %v579
        %v582 = vmul.f32 %v342, %v579
        %586 = vrot.lane.b32.xlu0 %v580, 116
        %v587 = vpop.permute.xlu0 %586
        %588 = vrot.lane.b32.xlu0 %v581, 116
        %v589 = vpop.permute.xlu0 %588
        %590 = vrot.lane.b32.xlu0 %v582, 116
        %v591 = vpop.permute.xlu0 %590
        %vm592 = vcmask 949248
        %v593 = vsel %vm592, %v587, %v589
        %v594 = vsel %vm592, %v589, %v591
        %v597 = vadd.f32 %v576, %v593
        %v598 = vadd.f32 %v577, %v594
        %s599 = sld [smem:[#allocation7 + $0xd]]
        %v600 = vstv %s599
        %v601 = vmul.f32 %v340, %v600
        %v602 = vmul.f32 %v341, %v600
        %v603 = vmul.f32 %v342, %v600
        %607 = vrot.lane.b32.xlu0 %v601, 115
        %v608 = vpop.permute.xlu0 %607
        %609 = vrot.lane.b32.xlu0 %v602, 115
        %v610 = vpop.permute.xlu0 %609
        %611 = vrot.lane.b32.xlu0 %v603, 115
        %v612 = vpop.permute.xlu0 %611
        %vm613 = vcmask 941056
        %v614 = vsel %vm613, %v608, %v610
        %v615 = vsel %vm613, %v610, %v612
        %v618 = vadd.f32 %v597, %v614
        %v619 = vadd.f32 %v598, %v615
        %s620 = sld [smem:[#allocation7 + $0xe]]
        %v621 = vstv %s620
        %v622 = vmul.f32 %v340, %v621
        %v623 = vmul.f32 %v341, %v621
        %v624 = vmul.f32 %v342, %v621
        %628 = vrot.lane.b32.xlu0 %v622, 114
        %v629 = vpop.permute.xlu0 %628
        %630 = vrot.lane.b32.xlu0 %v623, 114
        %v631 = vpop.permute.xlu0 %630
        %632 = vrot.lane.b32.xlu0 %v624, 114
        %v633 = vpop.permute.xlu0 %632
        %vm634 = vcmask 932864
        %v635 = vsel %vm634, %v629, %v631
        %v636 = vsel %vm634, %v631, %v633
        %v639 = vadd.f32 %v618, %v635
        %v640 = vadd.f32 %v619, %v636
        %s641 = sld [smem:[#allocation8]]
        %v642 = vstv %s641
        %v643 = vadd.f32 %v639, %v642
        %v644 = vadd.f32 %v640, %v642
        %s645 = sld [smem:[#allocation7 + $0x80]]
        %v646 = vstv %s645
        %v647 = vmul.f32 %v340, %v646
        %v648 = vmul.f32 %v341, %v646
        %s649 = sld [smem:[#allocation7 + $0x81]]
        %v650 = vstv %s649
        %v651 = vmul.f32 %v340, %v650
        %v652 = vmul.f32 %v341, %v650
        %v653 = vmul.f32 %v342, %v650
        %657 = vrot.lane.b32.xlu0 %v651, 127
        %v658 = vpop.permute.xlu0 %657
        %659 = vrot.lane.b32.xlu0 %v652, 127
        %v660 = vpop.permute.xlu0 %659
        %661 = vrot.lane.b32.xlu0 %v653, 127
        %v662 = vpop.permute.xlu0 %661
        %v663 = vsel %vm361, %v658, %v660
        %v664 = vsel %vm361, %v660, %v662
        %v667 = vadd.f32 %v647, %v663
        %v668 = vadd.f32 %v648, %v664
        %s669 = sld [smem:[#allocation7 + $0x82]]
        %v670 = vstv %s669
        %v671 = vmul.f32 %v340, %v670
        %v672 = vmul.f32 %v341, %v670
        %v673 = vmul.f32 %v342, %v670
        %677 = vrot.lane.b32.xlu0 %v671, 126
        %v678 = vpop.permute.xlu0 %677
        %679 = vrot.lane.b32.xlu0 %v672, 126
        %v680 = vpop.permute.xlu0 %679
        %681 = vrot.lane.b32.xlu0 %v673, 126
        %v682 = vpop.permute.xlu0 %681
        %v683 = vsel %vm382, %v678, %v680
        %v684 = vsel %vm382, %v680, %v682
        %v687 = vadd.f32 %v667, %v683
        %v688 = vadd.f32 %v668, %v684
        %s689 = sld [smem:[#allocation7 + $0x83]]
        %v690 = vstv %s689
        %v691 = vmul.f32 %v340, %v690
        %v692 = vmul.f32 %v341, %v690
        %v693 = vmul.f32 %v342, %v690
        %697 = vrot.lane.b32.xlu0 %v691, 125
        %v698 = vpop.permute.xlu0 %697
        %699 = vrot.lane.b32.xlu0 %v692, 125
        %v700 = vpop.permute.xlu0 %699
        %701 = vrot.lane.b32.xlu0 %v693, 125
        %v702 = vpop.permute.xlu0 %701
        %v703 = vsel %vm403, %v698, %v700
        %v704 = vsel %vm403, %v700, %v702
        %v707 = vadd.f32 %v687, %v703
        %v708 = vadd.f32 %v688, %v704
        %s709 = sld [smem:[#allocation7 + $0x84]]
        %v710 = vstv %s709
        %v711 = vmul.f32 %v340, %v710
        %v712 = vmul.f32 %v341, %v710
        %v713 = vmul.f32 %v342, %v710
        %717 = vrot.lane.b32.xlu0 %v711, 124
        %v718 = vpop.permute.xlu0 %717
        %719 = vrot.lane.b32.xlu0 %v712, 124
        %v720 = vpop.permute.xlu0 %719
        %721 = vrot.lane.b32.xlu0 %v713, 124
        %v722 = vpop.permute.xlu0 %721
        %v723 = vsel %vm424, %v718, %v720
        %v724 = vsel %vm424, %v720, %v722
        %v727 = vadd.f32 %v707, %v723
        %v728 = vadd.f32 %v708, %v724
        %s729 = sld [smem:[#allocation7 + $0x85]]
        %v730 = vstv %s729
        %v731 = vmul.f32 %v340, %v730
        %v732 = vmul.f32 %v341, %v730
        %v733 = vmul.f32 %v342, %v730
        %737 = vrot.lane.b32.xlu0 %v731, 123
        %v738 = vpop.permute.xlu0 %737
        %739 = vrot.lane.b32.xlu0 %v732, 123
        %v740 = vpop.permute.xlu0 %739
        %741 = vrot.lane.b32.xlu0 %v733, 123
        %v742 = vpop.permute.xlu0 %741
        %v743 = vsel %vm445, %v738, %v740
        %v744 = vsel %vm445, %v740, %v742
        %v747 = vadd.f32 %v727, %v743
        %v748 = vadd.f32 %v728, %v744
        %s749 = sld [smem:[#allocation7 + $0x86]]
        %v750 = vstv %s749
        %v751 = vmul.f32 %v340, %v750
        %v752 = vmul.f32 %v341, %v750
        %v753 = vmul.f32 %v342, %v750
        %757 = vrot.lane.b32.xlu0 %v751, 122
        %v758 = vpop.permute.xlu0 %757
        %759 = vrot.lane.b32.xlu0 %v752, 122
        %v760 = vpop.permute.xlu0 %759
        %761 = vrot.lane.b32.xlu0 %v753, 122
        %v762 = vpop.permute.xlu0 %761
        %v763 = vsel %vm466, %v758, %v760
        %v764 = vsel %vm466, %v760, %v762
        %v767 = vadd.f32 %v747, %v763
        %v768 = vadd.f32 %v748, %v764
        %s769 = sld [smem:[#allocation7 + $0x87]]
        %v770 = vstv %s769
        %v771 = vmul.f32 %v340, %v770
        %v772 = vmul.f32 %v341, %v770
        %v773 = vmul.f32 %v342, %v770
        %777 = vrot.lane.b32.xlu0 %v771, 121
        %v778 = vpop.permute.xlu0 %777
        %779 = vrot.lane.b32.xlu0 %v772, 121
        %v780 = vpop.permute.xlu0 %779
        %781 = vrot.lane.b32.xlu0 %v773, 121
        %v782 = vpop.permute.xlu0 %781
        %v783 = vsel %vm487, %v778, %v780
        %v784 = vsel %vm487, %v780, %v782
        %v787 = vadd.f32 %v767, %v783
        %v788 = vadd.f32 %v768, %v784
        %s789 = sld [smem:[#allocation7 + $0x88]]
        %v790 = vstv %s789
        %v791 = vmul.f32 %v340, %v790
        %v792 = vmul.f32 %v341, %v790
        %v793 = vmul.f32 %v342, %v790
        %797 = vrot.lane.b32.xlu0 %v791, 120
        %v798 = vpop.permute.xlu0 %797
        %799 = vrot.lane.b32.xlu0 %v792, 120
        %v800 = vpop.permute.xlu0 %799
        %801 = vrot.lane.b32.xlu0 %v793, 120
        %v802 = vpop.permute.xlu0 %801
        %v803 = vsel %vm508, %v798, %v800
        %v804 = vsel %vm508, %v800, %v802
        %v807 = vadd.f32 %v787, %v803
        %v808 = vadd.f32 %v788, %v804
        %s809 = sld [smem:[#allocation7 + $0x89]]
        %v810 = vstv %s809
        %v811 = vmul.f32 %v340, %v810
        %v812 = vmul.f32 %v341, %v810
        %v813 = vmul.f32 %v342, %v810
        %817 = vrot.lane.b32.xlu0 %v811, 119
        %v818 = vpop.permute.xlu0 %817
        %819 = vrot.lane.b32.xlu0 %v812, 119
        %v820 = vpop.permute.xlu0 %819
        %821 = vrot.lane.b32.xlu0 %v813, 119
        %v822 = vpop.permute.xlu0 %821
        %v823 = vsel %vm529, %v818, %v820
        %v824 = vsel %vm529, %v820, %v822
        %v827 = vadd.f32 %v807, %v823
        %v828 = vadd.f32 %v808, %v824
        %s829 = sld [smem:[#allocation7 + $0x8a]]
        %v830 = vstv %s829
        %v831 = vmul.f32 %v340, %v830
        %v832 = vmul.f32 %v341, %v830
        %v833 = vmul.f32 %v342, %v830
        %837 = vrot.lane.b32.xlu0 %v831, 118
        %v838 = vpop.permute.xlu0 %837
        %839 = vrot.lane.b32.xlu0 %v832, 118
        %v840 = vpop.permute.xlu0 %839
        %841 = vrot.lane.b32.xlu0 %v833, 118
        %v842 = vpop.permute.xlu0 %841
        %v843 = vsel %vm550, %v838, %v840
        %v844 = vsel %vm550, %v840, %v842
        %v847 = vadd.f32 %v827, %v843
        %v848 = vadd.f32 %v828, %v844
        %s849 = sld [smem:[#allocation7 + $0x8b]]
        %v850 = vstv %s849
        %v851 = vmul.f32 %v340, %v850
        %v852 = vmul.f32 %v341, %v850
        %v853 = vmul.f32 %v342, %v850
        %857 = vrot.lane.b32.xlu0 %v851, 117
        %v858 = vpop.permute.xlu0 %857
        %859 = vrot.lane.b32.xlu0 %v852, 117
        %v860 = vpop.permute.xlu0 %859
        %861 = vrot.lane.b32.xlu0 %v853, 117
        %v862 = vpop.permute.xlu0 %861
        %v863 = vsel %vm571, %v858, %v860
        %v864 = vsel %vm571, %v860, %v862
        %v867 = vadd.f32 %v847, %v863
        %v868 = vadd.f32 %v848, %v864
        %s869 = sld [smem:[#allocation7 + $0x8c]]
        %v870 = vstv %s869
        %v871 = vmul.f32 %v340, %v870
        %v872 = vmul.f32 %v341, %v870
        %v873 = vmul.f32 %v342, %v870
        %877 = vrot.lane.b32.xlu0 %v871, 116
        %v878 = vpop.permute.xlu0 %877
        %879 = vrot.lane.b32.xlu0 %v872, 116
        %v880 = vpop.permute.xlu0 %879
        %881 = vrot.lane.b32.xlu0 %v873, 116
        %v882 = vpop.permute.xlu0 %881
        %v883 = vsel %vm592, %v878, %v880
        %v884 = vsel %vm592, %v880, %v882
        %v887 = vadd.f32 %v867, %v883
        %v888 = vadd.f32 %v868, %v884
        %s889 = sld [smem:[#allocation7 + $0x8d]]
        %v890 = vstv %s889
        %v891 = vmul.f32 %v340, %v890
        %v892 = vmul.f32 %v341, %v890
        %v893 = vmul.f32 %v342, %v890
        %897 = vrot.lane.b32.xlu0 %v891, 115
        %v898 = vpop.permute.xlu0 %897
        %899 = vrot.lane.b32.xlu0 %v892, 115
        %v900 = vpop.permute.xlu0 %899
        %901 = vrot.lane.b32.xlu0 %v893, 115
        %v902 = vpop.permute.xlu0 %901
        %v903 = vsel %vm613, %v898, %v900
        %v904 = vsel %vm613, %v900, %v902
        %v907 = vadd.f32 %v887, %v903
        %v908 = vadd.f32 %v888, %v904
        %s909 = sld [smem:[#allocation7 + $0x8e]]
        %v910 = vstv %s909
        %v911 = vmul.f32 %v340, %v910
        %v912 = vmul.f32 %v341, %v910
        %v913 = vmul.f32 %v342, %v910
        %917 = vrot.lane.b32.xlu0 %v911, 114
        %v918 = vpop.permute.xlu0 %917
        %919 = vrot.lane.b32.xlu0 %v912, 114
        %v920 = vpop.permute.xlu0 %919
        %921 = vrot.lane.b32.xlu0 %v913, 114
        %v922 = vpop.permute.xlu0 %921
        %v923 = vsel %vm634, %v918, %v920
        %v924 = vsel %vm634, %v920, %v922
        %v927 = vadd.f32 %v907, %v923
        %v928 = vadd.f32 %v908, %v924
        %s929 = sld [smem:[#allocation8 + $0x1]]
        %v930 = vstv %s929
        %v931 = vadd.f32 %v927, %v930
        %v932 = vadd.f32 %v928, %v930
        %s933 = sld [smem:[#allocation7 + $0x100]]
        %v934 = vstv %s933
        %v935 = vmul.f32 %v340, %v934
        %v936 = vmul.f32 %v341, %v934
        %s937 = sld [smem:[#allocation7 + $0x101]]
        %v938 = vstv %s937
        %v939 = vmul.f32 %v340, %v938
        %v940 = vmul.f32 %v341, %v938
        %v941 = vmul.f32 %v342, %v938
        %945 = vrot.lane.b32.xlu0 %v939, 127
        %v946 = vpop.permute.xlu0 %945
        %947 = vrot.lane.b32.xlu0 %v940, 127
        %v948 = vpop.permute.xlu0 %947
        %949 = vrot.lane.b32.xlu0 %v941, 127
        %v950 = vpop.permute.xlu0 %949
        %v951 = vsel %vm361, %v946, %v948
        %v952 = vsel %vm361, %v948, %v950
        %v955 = vadd.f32 %v935, %v951
        %v956 = vadd.f32 %v936, %v952
        %s957 = sld [smem:[#allocation7 + $0x102]]
        %v958 = vstv %s957
        %v959 = vmul.f32 %v340, %v958
        %v960 = vmul.f32 %v341, %v958
        %v961 = vmul.f32 %v342, %v958
        %965 = vrot.lane.b32.xlu0 %v959, 126
        %v966 = vpop.permute.xlu0 %965
        %967 = vrot.lane.b32.xlu0 %v960, 126
        %v968 = vpop.permute.xlu0 %967
        %969 = vrot.lane.b32.xlu0 %v961, 126
        %v970 = vpop.permute.xlu0 %969
        %v971 = vsel %vm382, %v966, %v968
        %v972 = vsel %vm382, %v968, %v970
        %v975 = vadd.f32 %v955, %v971
        %v976 = vadd.f32 %v956, %v972
        %s977 = sld [smem:[#allocation7 + $0x103]]
        %v978 = vstv %s977
        %v979 = vmul.f32 %v340, %v978
        %v980 = vmul.f32 %v341, %v978
        %v981 = vmul.f32 %v342, %v978
        %985 = vrot.lane.b32.xlu0 %v979, 125
        %v986 = vpop.permute.xlu0 %985
        %987 = vrot.lane.b32.xlu0 %v980, 125
        %v988 = vpop.permute.xlu0 %987
        %989 = vrot.lane.b32.xlu0 %v981, 125
        %v990 = vpop.permute.xlu0 %989
        %v991 = vsel %vm403, %v986, %v988
        %v992 = vsel %vm403, %v988, %v990
        %v995 = vadd.f32 %v975, %v991
        %v996 = vadd.f32 %v976, %v992
        %s997 = sld [smem:[#allocation7 + $0x104]]
        %v998 = vstv %s997
        %v999 = vmul.f32 %v340, %v998
        %v1000 = vmul.f32 %v341, %v998
        %v1001 = vmul.f32 %v342, %v998
        %1005 = vrot.lane.b32.xlu0 %v999, 124
        %v1006 = vpop.permute.xlu0 %1005
        %1007 = vrot.lane.b32.xlu0 %v1000, 124
        %v1008 = vpop.permute.xlu0 %1007
        %1009 = vrot.lane.b32.xlu0 %v1001, 124
        %v1010 = vpop.permute.xlu0 %1009
        %v1011 = vsel %vm424, %v1006, %v1008
        %v1012 = vsel %vm424, %v1008, %v1010
        %v1015 = vadd.f32 %v995, %v1011
        %v1016 = vadd.f32 %v996, %v1012
        %s1017 = sld [smem:[#allocation7 + $0x105]]
        %v1018 = vstv %s1017
        %v1019 = vmul.f32 %v340, %v1018
        %v1020 = vmul.f32 %v341, %v1018
        %v1021 = vmul.f32 %v342, %v1018
        %1025 = vrot.lane.b32.xlu0 %v1019, 123
        %v1026 = vpop.permute.xlu0 %1025
        %1027 = vrot.lane.b32.xlu0 %v1020, 123
        %v1028 = vpop.permute.xlu0 %1027
        %1029 = vrot.lane.b32.xlu0 %v1021, 123
        %v1030 = vpop.permute.xlu0 %1029
        %v1031 = vsel %vm445, %v1026, %v1028
        %v1032 = vsel %vm445, %v1028, %v1030
        %v1035 = vadd.f32 %v1015, %v1031
        %v1036 = vadd.f32 %v1016, %v1032
        %s1037 = sld [smem:[#allocation7 + $0x106]]
        %v1038 = vstv %s1037
        %v1039 = vmul.f32 %v340, %v1038
        %v1040 = vmul.f32 %v341, %v1038
        %v1041 = vmul.f32 %v342, %v1038
        %1045 = vrot.lane.b32.xlu0 %v1039, 122
        %v1046 = vpop.permute.xlu0 %1045
        %1047 = vrot.lane.b32.xlu0 %v1040, 122
        %v1048 = vpop.permute.xlu0 %1047
        %1049 = vrot.lane.b32.xlu0 %v1041, 122
        %v1050 = vpop.permute.xlu0 %1049
        %v1051 = vsel %vm466, %v1046, %v1048
        %v1052 = vsel %vm466, %v1048, %v1050
        %v1055 = vadd.f32 %v1035, %v1051
        %v1056 = vadd.f32 %v1036, %v1052
        %s1057 = sld [smem:[#allocation7 + $0x107]]
        %v1058 = vstv %s1057
        %v1059 = vmul.f32 %v340, %v1058
        %v1060 = vmul.f32 %v341, %v1058
        %v1061 = vmul.f32 %v342, %v1058
        %1065 = vrot.lane.b32.xlu0 %v1059, 121
        %v1066 = vpop.permute.xlu0 %1065
        %1067 = vrot.lane.b32.xlu0 %v1060, 121
        %v1068 = vpop.permute.xlu0 %1067
        %1069 = vrot.lane.b32.xlu0 %v1061, 121
        %v1070 = vpop.permute.xlu0 %1069
        %v1071 = vsel %vm487, %v1066, %v1068
        %v1072 = vsel %vm487, %v1068, %v1070
        %v1075 = vadd.f32 %v1055, %v1071
        %v1076 = vadd.f32 %v1056, %v1072
        %s1077 = sld [smem:[#allocation7 + $0x108]]
        %v1078 = vstv %s1077
        %v1079 = vmul.f32 %v340, %v1078
        %v1080 = vmul.f32 %v341, %v1078
        %v1081 = vmul.f32 %v342, %v1078
        %1085 = vrot.lane.b32.xlu0 %v1079, 120
        %v1086 = vpop.permute.xlu0 %1085
        %1087 = vrot.lane.b32.xlu0 %v1080, 120
        %v1088 = vpop.permute.xlu0 %1087
        %1089 = vrot.lane.b32.xlu0 %v1081, 120
        %v1090 = vpop.permute.xlu0 %1089
        %v1091 = vsel %vm508, %v1086, %v1088
        %v1092 = vsel %vm508, %v1088, %v1090
        %v1095 = vadd.f32 %v1075, %v1091
        %v1096 = vadd.f32 %v1076, %v1092
        %s1097 = sld [smem:[#allocation7 + $0x109]]
        %v1098 = vstv %s1097
        %v1099 = vmul.f32 %v340, %v1098
        %v1100 = vmul.f32 %v341, %v1098
        %v1101 = vmul.f32 %v342, %v1098
        %1105 = vrot.lane.b32.xlu0 %v1099, 119
        %v1106 = vpop.permute.xlu0 %1105
        %1107 = vrot.lane.b32.xlu0 %v1100, 119
        %v1108 = vpop.permute.xlu0 %1107
        %1109 = vrot.lane.b32.xlu0 %v1101, 119
        %v1110 = vpop.permute.xlu0 %1109
        %v1111 = vsel %vm529, %v1106, %v1108
        %v1112 = vsel %vm529, %v1108, %v1110
        %v1115 = vadd.f32 %v1095, %v1111
        %v1116 = vadd.f32 %v1096, %v1112
        %s1117 = sld [smem:[#allocation7 + $0x10a]]
        %v1118 = vstv %s1117
        %v1119 = vmul.f32 %v340, %v1118
        %v1120 = vmul.f32 %v341, %v1118
        %v1121 = vmul.f32 %v342, %v1118
        %1125 = vrot.lane.b32.xlu0 %v1119, 118
        %v1126 = vpop.permute.xlu0 %1125
        %1127 = vrot.lane.b32.xlu0 %v1120, 118
        %v1128 = vpop.permute.xlu0 %1127
        %1129 = vrot.lane.b32.xlu0 %v1121, 118
        %v1130 = vpop.permute.xlu0 %1129
        %v1131 = vsel %vm550, %v1126, %v1128
        %v1132 = vsel %vm550, %v1128, %v1130
        %v1135 = vadd.f32 %v1115, %v1131
        %v1136 = vadd.f32 %v1116, %v1132
        %s1137 = sld [smem:[#allocation7 + $0x10b]]
        %v1138 = vstv %s1137
        %v1139 = vmul.f32 %v340, %v1138
        %v1140 = vmul.f32 %v341, %v1138
        %v1141 = vmul.f32 %v342, %v1138
        %1145 = vrot.lane.b32.xlu0 %v1139, 117
        %v1146 = vpop.permute.xlu0 %1145
        %1147 = vrot.lane.b32.xlu0 %v1140, 117
        %v1148 = vpop.permute.xlu0 %1147
        %1149 = vrot.lane.b32.xlu0 %v1141, 117
        %v1150 = vpop.permute.xlu0 %1149
        %v1151 = vsel %vm571, %v1146, %v1148
        %v1152 = vsel %vm571, %v1148, %v1150
        %v1155 = vadd.f32 %v1135, %v1151
        %v1156 = vadd.f32 %v1136, %v1152
        %s1157 = sld [smem:[#allocation7 + $0x10c]]
        %v1158 = vstv %s1157
        %v1159 = vmul.f32 %v340, %v1158
        %v1160 = vmul.f32 %v341, %v1158
        %v1161 = vmul.f32 %v342, %v1158
        %1165 = vrot.lane.b32.xlu0 %v1159, 116
        %v1166 = vpop.permute.xlu0 %1165
        %1167 = vrot.lane.b32.xlu0 %v1160, 116
        %v1168 = vpop.permute.xlu0 %1167
        %1169 = vrot.lane.b32.xlu0 %v1161, 116
        %v1170 = vpop.permute.xlu0 %1169
        %v1171 = vsel %vm592, %v1166, %v1168
        %v1172 = vsel %vm592, %v1168, %v1170
        %v1175 = vadd.f32 %v1155, %v1171
        %v1176 = vadd.f32 %v1156, %v1172
        %s1177 = sld [smem:[#allocation7 + $0x10d]]
        %v1178 = vstv %s1177
        %v1179 = vmul.f32 %v340, %v1178
        %v1180 = vmul.f32 %v341, %v1178
        %v1181 = vmul.f32 %v342, %v1178
        %1185 = vrot.lane.b32.xlu0 %v1179, 115
        %v1186 = vpop.permute.xlu0 %1185
        %1187 = vrot.lane.b32.xlu0 %v1180, 115
        %v1188 = vpop.permute.xlu0 %1187
        %1189 = vrot.lane.b32.xlu0 %v1181, 115
        %v1190 = vpop.permute.xlu0 %1189
        %v1191 = vsel %vm613, %v1186, %v1188
        %v1192 = vsel %vm613, %v1188, %v1190
        %v1195 = vadd.f32 %v1175, %v1191
        %v1196 = vadd.f32 %v1176, %v1192
        %s1197 = sld [smem:[#allocation7 + $0x10e]]
        %v1198 = vstv %s1197
        %v1199 = vmul.f32 %v340, %v1198
        %v1200 = vmul.f32 %v341, %v1198
        %v1201 = vmul.f32 %v342, %v1198
        %1205 = vrot.lane.b32.xlu0 %v1199, 114
        %v1206 = vpop.permute.xlu0 %1205
        %1207 = vrot.lane.b32.xlu0 %v1200, 114
        %v1208 = vpop.permute.xlu0 %1207
        %1209 = vrot.lane.b32.xlu0 %v1201, 114
        %v1210 = vpop.permute.xlu0 %1209
        %v1211 = vsel %vm634, %v1206, %v1208
        %v1212 = vsel %vm634, %v1208, %v1210
        %v1215 = vadd.f32 %v1195, %v1211
        %v1216 = vadd.f32 %v1196, %v1212
        %s1217 = sld [smem:[#allocation8 + $0x2]]
        %v1218 = vstv %s1217
        %v1219 = vadd.f32 %v1215, %v1218
        %v1220 = vadd.f32 %v1216, %v1218
        %s1221 = sld [smem:[#allocation7 + $0x180]]
        %v1222 = vstv %s1221
        %v1223 = vmul.f32 %v340, %v1222
        %v1224 = vmul.f32 %v341, %v1222
        %s1225 = sld [smem:[#allocation7 + $0x181]]
        %v1226 = vstv %s1225
        %v1227 = vmul.f32 %v340, %v1226
        %v1228 = vmul.f32 %v341, %v1226
        %v1229 = vmul.f32 %v342, %v1226
        %1233 = vrot.lane.b32.xlu0 %v1227, 127
        %v1234 = vpop.permute.xlu0 %1233
        %1235 = vrot.lane.b32.xlu0 %v1228, 127
        %v1236 = vpop.permute.xlu0 %1235
        %1237 = vrot.lane.b32.xlu0 %v1229, 127
        %v1238 = vpop.permute.xlu0 %1237
        %v1239 = vsel %vm361, %v1234, %v1236
        %v1240 = vsel %vm361, %v1236, %v1238
        %v1243 = vadd.f32 %v1223, %v1239
        %v1244 = vadd.f32 %v1224, %v1240
        %s1245 = sld [smem:[#allocation7 + $0x182]]
        %v1246 = vstv %s1245
        %v1247 = vmul.f32 %v340, %v1246
        %v1248 = vmul.f32 %v341, %v1246
        %v1249 = vmul.f32 %v342, %v1246
        %1253 = vrot.lane.b32.xlu0 %v1247, 126
        %v1254 = vpop.permute.xlu0 %1253
        %1255 = vrot.lane.b32.xlu0 %v1248, 126
        %v1256 = vpop.permute.xlu0 %1255
        %1257 = vrot.lane.b32.xlu0 %v1249, 126
        %v1258 = vpop.permute.xlu0 %1257
        %v1259 = vsel %vm382, %v1254, %v1256
        %v1260 = vsel %vm382, %v1256, %v1258
        %v1263 = vadd.f32 %v1243, %v1259
        %v1264 = vadd.f32 %v1244, %v1260
        %s1265 = sld [smem:[#allocation7 + $0x183]]
        %v1266 = vstv %s1265
        %v1267 = vmul.f32 %v340, %v1266
        %v1268 = vmul.f32 %v341, %v1266
        %v1269 = vmul.f32 %v342, %v1266
        %1273 = vrot.lane.b32.xlu0 %v1267, 125
        %v1274 = vpop.permute.xlu0 %1273
        %1275 = vrot.lane.b32.xlu0 %v1268, 125
        %v1276 = vpop.permute.xlu0 %1275
        %1277 = vrot.lane.b32.xlu0 %v1269, 125
        %v1278 = vpop.permute.xlu0 %1277
        %v1279 = vsel %vm403, %v1274, %v1276
        %v1280 = vsel %vm403, %v1276, %v1278
        %v1283 = vadd.f32 %v1263, %v1279
        %v1284 = vadd.f32 %v1264, %v1280
        %s1285 = sld [smem:[#allocation7 + $0x184]]
        %v1286 = vstv %s1285
        %v1287 = vmul.f32 %v340, %v1286
        %v1288 = vmul.f32 %v341, %v1286
        %v1289 = vmul.f32 %v342, %v1286
        %1293 = vrot.lane.b32.xlu0 %v1287, 124
        %v1294 = vpop.permute.xlu0 %1293
        %1295 = vrot.lane.b32.xlu0 %v1288, 124
        %v1296 = vpop.permute.xlu0 %1295
        %1297 = vrot.lane.b32.xlu0 %v1289, 124
        %v1298 = vpop.permute.xlu0 %1297
        %v1299 = vsel %vm424, %v1294, %v1296
        %v1300 = vsel %vm424, %v1296, %v1298
        %v1303 = vadd.f32 %v1283, %v1299
        %v1304 = vadd.f32 %v1284, %v1300
        %s1305 = sld [smem:[#allocation7 + $0x185]]
        %v1306 = vstv %s1305
        %v1307 = vmul.f32 %v340, %v1306
        %v1308 = vmul.f32 %v341, %v1306
        %v1309 = vmul.f32 %v342, %v1306
        %1313 = vrot.lane.b32.xlu0 %v1307, 123
        %v1314 = vpop.permute.xlu0 %1313
        %1315 = vrot.lane.b32.xlu0 %v1308, 123
        %v1316 = vpop.permute.xlu0 %1315
        %1317 = vrot.lane.b32.xlu0 %v1309, 123
        %v1318 = vpop.permute.xlu0 %1317
        %v1319 = vsel %vm445, %v1314, %v1316
        %v1320 = vsel %vm445, %v1316, %v1318
        %v1323 = vadd.f32 %v1303, %v1319
        %v1324 = vadd.f32 %v1304, %v1320
        %s1325 = sld [smem:[#allocation7 + $0x186]]
        %v1326 = vstv %s1325
        %v1327 = vmul.f32 %v340, %v1326
        %v1328 = vmul.f32 %v341, %v1326
        %v1329 = vmul.f32 %v342, %v1326
        %1333 = vrot.lane.b32.xlu0 %v1327, 122
        %v1334 = vpop.permute.xlu0 %1333
        %1335 = vrot.lane.b32.xlu0 %v1328, 122
        %v1336 = vpop.permute.xlu0 %1335
        %1337 = vrot.lane.b32.xlu0 %v1329, 122
        %v1338 = vpop.permute.xlu0 %1337
        %v1339 = vsel %vm466, %v1334, %v1336
        %v1340 = vsel %vm466, %v1336, %v1338
        %v1343 = vadd.f32 %v1323, %v1339
        %v1344 = vadd.f32 %v1324, %v1340
        %s1345 = sld [smem:[#allocation7 + $0x187]]
        %v1346 = vstv %s1345
        %v1347 = vmul.f32 %v340, %v1346
        %v1348 = vmul.f32 %v341, %v1346
        %v1349 = vmul.f32 %v342, %v1346
        %1353 = vrot.lane.b32.xlu0 %v1347, 121
        %v1354 = vpop.permute.xlu0 %1353
        %1355 = vrot.lane.b32.xlu0 %v1348, 121
        %v1356 = vpop.permute.xlu0 %1355
        %1357 = vrot.lane.b32.xlu0 %v1349, 121
        %v1358 = vpop.permute.xlu0 %1357
        %v1359 = vsel %vm487, %v1354, %v1356
        %v1360 = vsel %vm487, %v1356, %v1358
        %v1363 = vadd.f32 %v1343, %v1359
        %v1364 = vadd.f32 %v1344, %v1360
        %s1365 = sld [smem:[#allocation7 + $0x188]]
        %v1366 = vstv %s1365
        %v1367 = vmul.f32 %v340, %v1366
        %v1368 = vmul.f32 %v341, %v1366
        %v1369 = vmul.f32 %v342, %v1366
        %1373 = vrot.lane.b32.xlu0 %v1367, 120
        %v1374 = vpop.permute.xlu0 %1373
        %1375 = vrot.lane.b32.xlu0 %v1368, 120
        %v1376 = vpop.permute.xlu0 %1375
        %1377 = vrot.lane.b32.xlu0 %v1369, 120
        %v1378 = vpop.permute.xlu0 %1377
        %v1379 = vsel %vm508, %v1374, %v1376
        %v1380 = vsel %vm508, %v1376, %v1378
        %v1383 = vadd.f32 %v1363, %v1379
        %v1384 = vadd.f32 %v1364, %v1380
        %s1385 = sld [smem:[#allocation7 + $0x189]]
        %v1386 = vstv %s1385
        %v1387 = vmul.f32 %v340, %v1386
        %v1388 = vmul.f32 %v341, %v1386
        %v1389 = vmul.f32 %v342, %v1386
        %1393 = vrot.lane.b32.xlu0 %v1387, 119
        %v1394 = vpop.permute.xlu0 %1393
        %1395 = vrot.lane.b32.xlu0 %v1388, 119
        %v1396 = vpop.permute.xlu0 %1395
        %1397 = vrot.lane.b32.xlu0 %v1389, 119
        %v1398 = vpop.permute.xlu0 %1397
        %v1399 = vsel %vm529, %v1394, %v1396
        %v1400 = vsel %vm529, %v1396, %v1398
        %v1403 = vadd.f32 %v1383, %v1399
        %v1404 = vadd.f32 %v1384, %v1400
        %s1405 = sld [smem:[#allocation7 + $0x18a]]
        %v1406 = vstv %s1405
        %v1407 = vmul.f32 %v340, %v1406
        %v1408 = vmul.f32 %v341, %v1406
        %v1409 = vmul.f32 %v342, %v1406
        %1413 = vrot.lane.b32.xlu0 %v1407, 118
        %v1414 = vpop.permute.xlu0 %1413
        %1415 = vrot.lane.b32.xlu0 %v1408, 118
        %v1416 = vpop.permute.xlu0 %1415
        %1417 = vrot.lane.b32.xlu0 %v1409, 118
        %v1418 = vpop.permute.xlu0 %1417
        %v1419 = vsel %vm550, %v1414, %v1416
        %v1420 = vsel %vm550, %v1416, %v1418
        %v1423 = vadd.f32 %v1403, %v1419
        %v1424 = vadd.f32 %v1404, %v1420
        %s1425 = sld [smem:[#allocation7 + $0x18b]]
        %v1426 = vstv %s1425
        %v1427 = vmul.f32 %v340, %v1426
        %v1428 = vmul.f32 %v341, %v1426
        %v1429 = vmul.f32 %v342, %v1426
        %1433 = vrot.lane.b32.xlu0 %v1427, 117
        %v1434 = vpop.permute.xlu0 %1433
        %1435 = vrot.lane.b32.xlu0 %v1428, 117
        %v1436 = vpop.permute.xlu0 %1435
        %1437 = vrot.lane.b32.xlu0 %v1429, 117
        %v1438 = vpop.permute.xlu0 %1437
        %v1439 = vsel %vm571, %v1434, %v1436
        %v1440 = vsel %vm571, %v1436, %v1438
        %v1443 = vadd.f32 %v1423, %v1439
        %v1444 = vadd.f32 %v1424, %v1440
        %s1445 = sld [smem:[#allocation7 + $0x18c]]
        %v1446 = vstv %s1445
        %v1447 = vmul.f32 %v340, %v1446
        %v1448 = vmul.f32 %v341, %v1446
        %v1449 = vmul.f32 %v342, %v1446
        %1453 = vrot.lane.b32.xlu0 %v1447, 116
        %v1454 = vpop.permute.xlu0 %1453
        %1455 = vrot.lane.b32.xlu0 %v1448, 116
        %v1456 = vpop.permute.xlu0 %1455
        %1457 = vrot.lane.b32.xlu0 %v1449, 116
        %v1458 = vpop.permute.xlu0 %1457
        %v1459 = vsel %vm592, %v1454, %v1456
        %v1460 = vsel %vm592, %v1456, %v1458
        %v1463 = vadd.f32 %v1443, %v1459
        %v1464 = vadd.f32 %v1444, %v1460
        %s1465 = sld [smem:[#allocation7 + $0x18d]]
        %v1466 = vstv %s1465
        %v1467 = vmul.f32 %v340, %v1466
        %v1468 = vmul.f32 %v341, %v1466
        %v1469 = vmul.f32 %v342, %v1466
        %1473 = vrot.lane.b32.xlu0 %v1467, 115
        %v1474 = vpop.permute.xlu0 %1473
        %1475 = vrot.lane.b32.xlu0 %v1468, 115
        %v1476 = vpop.permute.xlu0 %1475
        %1477 = vrot.lane.b32.xlu0 %v1469, 115
        %v1478 = vpop.permute.xlu0 %1477
        %v1479 = vsel %vm613, %v1474, %v1476
        %v1480 = vsel %vm613, %v1476, %v1478
        %v1483 = vadd.f32 %v1463, %v1479
        %v1484 = vadd.f32 %v1464, %v1480
        %s1485 = sld [smem:[#allocation7 + $0x18e]]
        %v1486 = vstv %s1485
        %v1487 = vmul.f32 %v340, %v1486
        %v1488 = vmul.f32 %v341, %v1486
        %v1489 = vmul.f32 %v342, %v1486
        %1493 = vrot.lane.b32.xlu0 %v1487, 114
        %v1494 = vpop.permute.xlu0 %1493
        %1495 = vrot.lane.b32.xlu0 %v1488, 114
        %v1496 = vpop.permute.xlu0 %1495
        %1497 = vrot.lane.b32.xlu0 %v1489, 114
        %v1498 = vpop.permute.xlu0 %1497
        %v1499 = vsel %vm634, %v1494, %v1496
        %v1500 = vsel %vm634, %v1496, %v1498
        %v1503 = vadd.f32 %v1483, %v1499
        %v1504 = vadd.f32 %v1484, %v1500
        %s1505 = sld [smem:[#allocation8 + $0x3]]
        %v1506 = vstv %s1505
        %v1507 = vadd.f32 %v1503, %v1506
        %v1508 = vadd.f32 %v1504, %v1506
        %s1509 = sld [smem:[#allocation7 + $0x200]]
        %v1510 = vstv %s1509
        %v1511 = vmul.f32 %v340, %v1510
        %v1512 = vmul.f32 %v341, %v1510
        %s1513 = sld [smem:[#allocation7 + $0x201]]
        %v1514 = vstv %s1513
        %v1515 = vmul.f32 %v340, %v1514
        %v1516 = vmul.f32 %v341, %v1514
        %v1517 = vmul.f32 %v342, %v1514
        %1521 = vrot.lane.b32.xlu0 %v1515, 127
        %v1522 = vpop.permute.xlu0 %1521
        %1523 = vrot.lane.b32.xlu0 %v1516, 127
        %v1524 = vpop.permute.xlu0 %1523
        %1525 = vrot.lane.b32.xlu0 %v1517, 127
        %v1526 = vpop.permute.xlu0 %1525
        %v1527 = vsel %vm361, %v1522, %v1524
        %v1528 = vsel %vm361, %v1524, %v1526
        %v1531 = vadd.f32 %v1511, %v1527
        %v1532 = vadd.f32 %v1512, %v1528
        %s1533 = sld [smem:[#allocation7 + $0x202]]
        %v1534 = vstv %s1533
        %v1535 = vmul.f32 %v340, %v1534
        %v1536 = vmul.f32 %v341, %v1534
        %v1537 = vmul.f32 %v342, %v1534
        %1541 = vrot.lane.b32.xlu0 %v1535, 126
        %v1542 = vpop.permute.xlu0 %1541
        %1543 = vrot.lane.b32.xlu0 %v1536, 126
        %v1544 = vpop.permute.xlu0 %1543
        %1545 = vrot.lane.b32.xlu0 %v1537, 126
        %v1546 = vpop.permute.xlu0 %1545
        %v1547 = vsel %vm382, %v1542, %v1544
        %v1548 = vsel %vm382, %v1544, %v1546
        %v1551 = vadd.f32 %v1531, %v1547
        %v1552 = vadd.f32 %v1532, %v1548
        %s1553 = sld [smem:[#allocation7 + $0x203]]
        %v1554 = vstv %s1553
        %v1555 = vmul.f32 %v340, %v1554
        %v1556 = vmul.f32 %v341, %v1554
        %v1557 = vmul.f32 %v342, %v1554
        %1561 = vrot.lane.b32.xlu0 %v1555, 125
        %v1562 = vpop.permute.xlu0 %1561
        %1563 = vrot.lane.b32.xlu0 %v1556, 125
        %v1564 = vpop.permute.xlu0 %1563
        %1565 = vrot.lane.b32.xlu0 %v1557, 125
        %v1566 = vpop.permute.xlu0 %1565
        %v1567 = vsel %vm403, %v1562, %v1564
        %v1568 = vsel %vm403, %v1564, %v1566
        %v1571 = vadd.f32 %v1551, %v1567
        %v1572 = vadd.f32 %v1552, %v1568
        %s1573 = sld [smem:[#allocation7 + $0x204]]
        %v1574 = vstv %s1573
        %v1575 = vmul.f32 %v340, %v1574
        %v1576 = vmul.f32 %v341, %v1574
        %v1577 = vmul.f32 %v342, %v1574
        %1581 = vrot.lane.b32.xlu0 %v1575, 124
        %v1582 = vpop.permute.xlu0 %1581
        %1583 = vrot.lane.b32.xlu0 %v1576, 124
        %v1584 = vpop.permute.xlu0 %1583
        %1585 = vrot.lane.b32.xlu0 %v1577, 124
        %v1586 = vpop.permute.xlu0 %1585
        %v1587 = vsel %vm424, %v1582, %v1584
        %v1588 = vsel %vm424, %v1584, %v1586
        %v1591 = vadd.f32 %v1571, %v1587
        %v1592 = vadd.f32 %v1572, %v1588
        %s1593 = sld [smem:[#allocation7 + $0x205]]
        %v1594 = vstv %s1593
        %v1595 = vmul.f32 %v340, %v1594
        %v1596 = vmul.f32 %v341, %v1594
        %v1597 = vmul.f32 %v342, %v1594
        %1601 = vrot.lane.b32.xlu0 %v1595, 123
        %v1602 = vpop.permute.xlu0 %1601
        %1603 = vrot.lane.b32.xlu0 %v1596, 123
        %v1604 = vpop.permute.xlu0 %1603
        %1605 = vrot.lane.b32.xlu0 %v1597, 123
        %v1606 = vpop.permute.xlu0 %1605
        %v1607 = vsel %vm445, %v1602, %v1604
        %v1608 = vsel %vm445, %v1604, %v1606
        %v1611 = vadd.f32 %v1591, %v1607
        %v1612 = vadd.f32 %v1592, %v1608
        %s1613 = sld [smem:[#allocation7 + $0x206]]
        %v1614 = vstv %s1613
        %v1615 = vmul.f32 %v340, %v1614
        %v1616 = vmul.f32 %v341, %v1614
        %v1617 = vmul.f32 %v342, %v1614
        %1621 = vrot.lane.b32.xlu0 %v1615, 122
        %v1622 = vpop.permute.xlu0 %1621
        %1623 = vrot.lane.b32.xlu0 %v1616, 122
        %v1624 = vpop.permute.xlu0 %1623
        %1625 = vrot.lane.b32.xlu0 %v1617, 122
        %v1626 = vpop.permute.xlu0 %1625
        %v1627 = vsel %vm466, %v1622, %v1624
        %v1628 = vsel %vm466, %v1624, %v1626
        %v1631 = vadd.f32 %v1611, %v1627
        %v1632 = vadd.f32 %v1612, %v1628
        %s1633 = sld [smem:[#allocation7 + $0x207]]
        %v1634 = vstv %s1633
        %v1635 = vmul.f32 %v340, %v1634
        %v1636 = vmul.f32 %v341, %v1634
        %v1637 = vmul.f32 %v342, %v1634
        %1641 = vrot.lane.b32.xlu0 %v1635, 121
        %v1642 = vpop.permute.xlu0 %1641
        %1643 = vrot.lane.b32.xlu0 %v1636, 121
        %v1644 = vpop.permute.xlu0 %1643
        %1645 = vrot.lane.b32.xlu0 %v1637, 121
        %v1646 = vpop.permute.xlu0 %1645
        %v1647 = vsel %vm487, %v1642, %v1644
        %v1648 = vsel %vm487, %v1644, %v1646
        %v1651 = vadd.f32 %v1631, %v1647
        %v1652 = vadd.f32 %v1632, %v1648
        %s1653 = sld [smem:[#allocation7 + $0x208]]
        %v1654 = vstv %s1653
        %v1655 = vmul.f32 %v340, %v1654
        %v1656 = vmul.f32 %v341, %v1654
        %v1657 = vmul.f32 %v342, %v1654
        %1661 = vrot.lane.b32.xlu0 %v1655, 120
        %v1662 = vpop.permute.xlu0 %1661
        %1663 = vrot.lane.b32.xlu0 %v1656, 120
        %v1664 = vpop.permute.xlu0 %1663
        %1665 = vrot.lane.b32.xlu0 %v1657, 120
        %v1666 = vpop.permute.xlu0 %1665
        %v1667 = vsel %vm508, %v1662, %v1664
        %v1668 = vsel %vm508, %v1664, %v1666
        %v1671 = vadd.f32 %v1651, %v1667
        %v1672 = vadd.f32 %v1652, %v1668
        %s1673 = sld [smem:[#allocation7 + $0x209]]
        %v1674 = vstv %s1673
        %v1675 = vmul.f32 %v340, %v1674
        %v1676 = vmul.f32 %v341, %v1674
        %v1677 = vmul.f32 %v342, %v1674
        %1681 = vrot.lane.b32.xlu0 %v1675, 119
        %v1682 = vpop.permute.xlu0 %1681
        %1683 = vrot.lane.b32.xlu0 %v1676, 119
        %v1684 = vpop.permute.xlu0 %1683
        %1685 = vrot.lane.b32.xlu0 %v1677, 119
        %v1686 = vpop.permute.xlu0 %1685
        %v1687 = vsel %vm529, %v1682, %v1684
        %v1688 = vsel %vm529, %v1684, %v1686
        %v1691 = vadd.f32 %v1671, %v1687
        %v1692 = vadd.f32 %v1672, %v1688
        %s1693 = sld [smem:[#allocation7 + $0x20a]]
        %v1694 = vstv %s1693
        %v1695 = vmul.f32 %v340, %v1694
        %v1696 = vmul.f32 %v341, %v1694
        %v1697 = vmul.f32 %v342, %v1694
        %1701 = vrot.lane.b32.xlu0 %v1695, 118
        %v1702 = vpop.permute.xlu0 %1701
        %1703 = vrot.lane.b32.xlu0 %v1696, 118
        %v1704 = vpop.permute.xlu0 %1703
        %1705 = vrot.lane.b32.xlu0 %v1697, 118
        %v1706 = vpop.permute.xlu0 %1705
        %v1707 = vsel %vm550, %v1702, %v1704
        %v1708 = vsel %vm550, %v1704, %v1706
        %v1711 = vadd.f32 %v1691, %v1707
        %v1712 = vadd.f32 %v1692, %v1708
        %s1713 = sld [smem:[#allocation7 + $0x20b]]
        %v1714 = vstv %s1713
        %v1715 = vmul.f32 %v340, %v1714
        %v1716 = vmul.f32 %v341, %v1714
        %v1717 = vmul.f32 %v342, %v1714
        %1721 = vrot.lane.b32.xlu0 %v1715, 117
        %v1722 = vpop.permute.xlu0 %1721
        %1723 = vrot.lane.b32.xlu0 %v1716, 117
        %v1724 = vpop.permute.xlu0 %1723
        %1725 = vrot.lane.b32.xlu0 %v1717, 117
        %v1726 = vpop.permute.xlu0 %1725
        %v1727 = vsel %vm571, %v1722, %v1724
        %v1728 = vsel %vm571, %v1724, %v1726
        %v1731 = vadd.f32 %v1711, %v1727
        %v1732 = vadd.f32 %v1712, %v1728
        %s1733 = sld [smem:[#allocation7 + $0x20c]]
        %v1734 = vstv %s1733
        %v1735 = vmul.f32 %v340, %v1734
        %v1736 = vmul.f32 %v341, %v1734
        %v1737 = vmul.f32 %v342, %v1734
        %1741 = vrot.lane.b32.xlu0 %v1735, 116
        %v1742 = vpop.permute.xlu0 %1741
        %1743 = vrot.lane.b32.xlu0 %v1736, 116
        %v1744 = vpop.permute.xlu0 %1743
        %1745 = vrot.lane.b32.xlu0 %v1737, 116
        %v1746 = vpop.permute.xlu0 %1745
        %v1747 = vsel %vm592, %v1742, %v1744
        %v1748 = vsel %vm592, %v1744, %v1746
        %v1751 = vadd.f32 %v1731, %v1747
        %v1752 = vadd.f32 %v1732, %v1748
        %s1753 = sld [smem:[#allocation7 + $0x20d]]
        %v1754 = vstv %s1753
        %v1755 = vmul.f32 %v340, %v1754
        %v1756 = vmul.f32 %v341, %v1754
        %v1757 = vmul.f32 %v342, %v1754
        %1761 = vrot.lane.b32.xlu0 %v1755, 115
        %v1762 = vpop.permute.xlu0 %1761
        %1763 = vrot.lane.b32.xlu0 %v1756, 115
        %v1764 = vpop.permute.xlu0 %1763
        %1765 = vrot.lane.b32.xlu0 %v1757, 115
        %v1766 = vpop.permute.xlu0 %1765
        %v1767 = vsel %vm613, %v1762, %v1764
        %v1768 = vsel %vm613, %v1764, %v1766
        %v1771 = vadd.f32 %v1751, %v1767
        %v1772 = vadd.f32 %v1752, %v1768
        %s1773 = sld [smem:[#allocation7 + $0x20e]]
        %v1774 = vstv %s1773
        %v1775 = vmul.f32 %v340, %v1774
        %v1776 = vmul.f32 %v341, %v1774
        %v1777 = vmul.f32 %v342, %v1774
        %1781 = vrot.lane.b32.xlu0 %v1775, 114
        %v1782 = vpop.permute.xlu0 %1781
        %1783 = vrot.lane.b32.xlu0 %v1776, 114
        %v1784 = vpop.permute.xlu0 %1783
        %1785 = vrot.lane.b32.xlu0 %v1777, 114
        %v1786 = vpop.permute.xlu0 %1785
        %v1787 = vsel %vm634, %v1782, %v1784
        %v1788 = vsel %vm634, %v1784, %v1786
        %v1791 = vadd.f32 %v1771, %v1787
        %v1792 = vadd.f32 %v1772, %v1788
        %s1793 = sld [smem:[#allocation8 + $0x4]]
        %v1794 = vstv %s1793
        %v1795 = vadd.f32 %v1791, %v1794
        %v1796 = vadd.f32 %v1792, %v1794
        %s1797 = sld [smem:[#allocation7 + $0x280]]
        %v1798 = vstv %s1797
        %v1799 = vmul.f32 %v340, %v1798
        %v1800 = vmul.f32 %v341, %v1798
        %s1801 = sld [smem:[#allocation7 + $0x281]]
        %v1802 = vstv %s1801
        %v1803 = vmul.f32 %v340, %v1802
        %v1804 = vmul.f32 %v341, %v1802
        %v1805 = vmul.f32 %v342, %v1802
        %1809 = vrot.lane.b32.xlu0 %v1803, 127
        %v1810 = vpop.permute.xlu0 %1809
        %1811 = vrot.lane.b32.xlu0 %v1804, 127
        %v1812 = vpop.permute.xlu0 %1811
        %1813 = vrot.lane.b32.xlu0 %v1805, 127
        %v1814 = vpop.permute.xlu0 %1813
        %v1815 = vsel %vm361, %v1810, %v1812
        %v1816 = vsel %vm361, %v1812, %v1814
        %v1819 = vadd.f32 %v1799, %v1815
        %v1820 = vadd.f32 %v1800, %v1816
        %s1821 = sld [smem:[#allocation7 + $0x282]]
        %v1822 = vstv %s1821
        %v1823 = vmul.f32 %v340, %v1822
        %v1824 = vmul.f32 %v341, %v1822
        %v1825 = vmul.f32 %v342, %v1822
        %1829 = vrot.lane.b32.xlu0 %v1823, 126
        %v1830 = vpop.permute.xlu0 %1829
        %1831 = vrot.lane.b32.xlu0 %v1824, 126
        %v1832 = vpop.permute.xlu0 %1831
        %1833 = vrot.lane.b32.xlu0 %v1825, 126
        %v1834 = vpop.permute.xlu0 %1833
        %v1835 = vsel %vm382, %v1830, %v1832
        %v1836 = vsel %vm382, %v1832, %v1834
        %v1839 = vadd.f32 %v1819, %v1835
        %v1840 = vadd.f32 %v1820, %v1836
        %s1841 = sld [smem:[#allocation7 + $0x283]]
        %v1842 = vstv %s1841
        %v1843 = vmul.f32 %v340, %v1842
        %v1844 = vmul.f32 %v341, %v1842
        %v1845 = vmul.f32 %v342, %v1842
        %1849 = vrot.lane.b32.xlu0 %v1843, 125
        %v1850 = vpop.permute.xlu0 %1849
        %1851 = vrot.lane.b32.xlu0 %v1844, 125
        %v1852 = vpop.permute.xlu0 %1851
        %1853 = vrot.lane.b32.xlu0 %v1845, 125
        %v1854 = vpop.permute.xlu0 %1853
        %v1855 = vsel %vm403, %v1850, %v1852
        %v1856 = vsel %vm403, %v1852, %v1854
        %v1859 = vadd.f32 %v1839, %v1855
        %v1860 = vadd.f32 %v1840, %v1856
        %s1861 = sld [smem:[#allocation7 + $0x284]]
        %v1862 = vstv %s1861
        %v1863 = vmul.f32 %v340, %v1862
        %v1864 = vmul.f32 %v341, %v1862
        %v1865 = vmul.f32 %v342, %v1862
        %1869 = vrot.lane.b32.xlu0 %v1863, 124
        %v1870 = vpop.permute.xlu0 %1869
        %1871 = vrot.lane.b32.xlu0 %v1864, 124
        %v1872 = vpop.permute.xlu0 %1871
        %1873 = vrot.lane.b32.xlu0 %v1865, 124
        %v1874 = vpop.permute.xlu0 %1873
        %v1875 = vsel %vm424, %v1870, %v1872
        %v1876 = vsel %vm424, %v1872, %v1874
        %v1879 = vadd.f32 %v1859, %v1875
        %v1880 = vadd.f32 %v1860, %v1876
        %s1881 = sld [smem:[#allocation7 + $0x285]]
        %v1882 = vstv %s1881
        %v1883 = vmul.f32 %v340, %v1882
        %v1884 = vmul.f32 %v341, %v1882
        %v1885 = vmul.f32 %v342, %v1882
        %1889 = vrot.lane.b32.xlu0 %v1883, 123
        %v1890 = vpop.permute.xlu0 %1889
        %1891 = vrot.lane.b32.xlu0 %v1884, 123
        %v1892 = vpop.permute.xlu0 %1891
        %1893 = vrot.lane.b32.xlu0 %v1885, 123
        %v1894 = vpop.permute.xlu0 %1893
        %v1895 = vsel %vm445, %v1890, %v1892
        %v1896 = vsel %vm445, %v1892, %v1894
        %v1899 = vadd.f32 %v1879, %v1895
        %v1900 = vadd.f32 %v1880, %v1896
        %s1901 = sld [smem:[#allocation7 + $0x286]]
        %v1902 = vstv %s1901
        %v1903 = vmul.f32 %v340, %v1902
        %v1904 = vmul.f32 %v341, %v1902
        %v1905 = vmul.f32 %v342, %v1902
        %1909 = vrot.lane.b32.xlu0 %v1903, 122
        %v1910 = vpop.permute.xlu0 %1909
        %1911 = vrot.lane.b32.xlu0 %v1904, 122
        %v1912 = vpop.permute.xlu0 %1911
        %1913 = vrot.lane.b32.xlu0 %v1905, 122
        %v1914 = vpop.permute.xlu0 %1913
        %v1915 = vsel %vm466, %v1910, %v1912
        %v1916 = vsel %vm466, %v1912, %v1914
        %v1919 = vadd.f32 %v1899, %v1915
        %v1920 = vadd.f32 %v1900, %v1916
        %s1921 = sld [smem:[#allocation7 + $0x287]]
        %v1922 = vstv %s1921
        %v1923 = vmul.f32 %v340, %v1922
        %v1924 = vmul.f32 %v341, %v1922
        %v1925 = vmul.f32 %v342, %v1922
        %1929 = vrot.lane.b32.xlu0 %v1923, 121
        %v1930 = vpop.permute.xlu0 %1929
        %1931 = vrot.lane.b32.xlu0 %v1924, 121
        %v1932 = vpop.permute.xlu0 %1931
        %1933 = vrot.lane.b32.xlu0 %v1925, 121
        %v1934 = vpop.permute.xlu0 %1933
        %v1935 = vsel %vm487, %v1930, %v1932
        %v1936 = vsel %vm487, %v1932, %v1934
        %v1939 = vadd.f32 %v1919, %v1935
        %v1940 = vadd.f32 %v1920, %v1936
        %s1941 = sld [smem:[#allocation7 + $0x288]]
        %v1942 = vstv %s1941
        %v1943 = vmul.f32 %v340, %v1942
        %v1944 = vmul.f32 %v341, %v1942
        %v1945 = vmul.f32 %v342, %v1942
        %1949 = vrot.lane.b32.xlu0 %v1943, 120
        %v1950 = vpop.permute.xlu0 %1949
        %1951 = vrot.lane.b32.xlu0 %v1944, 120
        %v1952 = vpop.permute.xlu0 %1951
        %1953 = vrot.lane.b32.xlu0 %v1945, 120
        %v1954 = vpop.permute.xlu0 %1953
        %v1955 = vsel %vm508, %v1950, %v1952
        %v1956 = vsel %vm508, %v1952, %v1954
        %v1959 = vadd.f32 %v1939, %v1955
        %v1960 = vadd.f32 %v1940, %v1956
        %s1961 = sld [smem:[#allocation7 + $0x289]]
        %v1962 = vstv %s1961
        %v1963 = vmul.f32 %v340, %v1962
        %v1964 = vmul.f32 %v341, %v1962
        %v1965 = vmul.f32 %v342, %v1962
        %1969 = vrot.lane.b32.xlu0 %v1963, 119
        %v1970 = vpop.permute.xlu0 %1969
        %1971 = vrot.lane.b32.xlu0 %v1964, 119
        %v1972 = vpop.permute.xlu0 %1971
        %1973 = vrot.lane.b32.xlu0 %v1965, 119
        %v1974 = vpop.permute.xlu0 %1973
        %v1975 = vsel %vm529, %v1970, %v1972
        %v1976 = vsel %vm529, %v1972, %v1974
        %v1979 = vadd.f32 %v1959, %v1975
        %v1980 = vadd.f32 %v1960, %v1976
        %s1981 = sld [smem:[#allocation7 + $0x28a]]
        %v1982 = vstv %s1981
        %v1983 = vmul.f32 %v340, %v1982
        %v1984 = vmul.f32 %v341, %v1982
        %v1985 = vmul.f32 %v342, %v1982
        %1989 = vrot.lane.b32.xlu0 %v1983, 118
        %v1990 = vpop.permute.xlu0 %1989
        %1991 = vrot.lane.b32.xlu0 %v1984, 118
        %v1992 = vpop.permute.xlu0 %1991
        %1993 = vrot.lane.b32.xlu0 %v1985, 118
        %v1994 = vpop.permute.xlu0 %1993
        %v1995 = vsel %vm550, %v1990, %v1992
        %v1996 = vsel %vm550, %v1992, %v1994
        %v1999 = vadd.f32 %v1979, %v1995
        %v2000 = vadd.f32 %v1980, %v1996
        %s2001 = sld [smem:[#allocation7 + $0x28b]]
        %v2002 = vstv %s2001
        %v2003 = vmul.f32 %v340, %v2002
        %v2004 = vmul.f32 %v341, %v2002
        %v2005 = vmul.f32 %v342, %v2002
        %2009 = vrot.lane.b32.xlu0 %v2003, 117
        %v2010 = vpop.permute.xlu0 %2009
        %2011 = vrot.lane.b32.xlu0 %v2004, 117
        %v2012 = vpop.permute.xlu0 %2011
        %2013 = vrot.lane.b32.xlu0 %v2005, 117
        %v2014 = vpop.permute.xlu0 %2013
        %v2015 = vsel %vm571, %v2010, %v2012
        %v2016 = vsel %vm571, %v2012, %v2014
        %v2019 = vadd.f32 %v1999, %v2015
        %v2020 = vadd.f32 %v2000, %v2016
        %s2021 = sld [smem:[#allocation7 + $0x28c]]
        %v2022 = vstv %s2021
        %v2023 = vmul.f32 %v340, %v2022
        %v2024 = vmul.f32 %v341, %v2022
        %v2025 = vmul.f32 %v342, %v2022
        %2029 = vrot.lane.b32.xlu0 %v2023, 116
        %v2030 = vpop.permute.xlu0 %2029
        %2031 = vrot.lane.b32.xlu0 %v2024, 116
        %v2032 = vpop.permute.xlu0 %2031
        %2033 = vrot.lane.b32.xlu0 %v2025, 116
        %v2034 = vpop.permute.xlu0 %2033
        %v2035 = vsel %vm592, %v2030, %v2032
        %v2036 = vsel %vm592, %v2032, %v2034
        %v2039 = vadd.f32 %v2019, %v2035
        %v2040 = vadd.f32 %v2020, %v2036
        %s2041 = sld [smem:[#allocation7 + $0x28d]]
        %v2042 = vstv %s2041
        %v2043 = vmul.f32 %v340, %v2042
        %v2044 = vmul.f32 %v341, %v2042
        %v2045 = vmul.f32 %v342, %v2042
        %2049 = vrot.lane.b32.xlu0 %v2043, 115
        %v2050 = vpop.permute.xlu0 %2049
        %2051 = vrot.lane.b32.xlu0 %v2044, 115
        %v2052 = vpop.permute.xlu0 %2051
        %2053 = vrot.lane.b32.xlu0 %v2045, 115
        %v2054 = vpop.permute.xlu0 %2053
        %v2055 = vsel %vm613, %v2050, %v2052
        %v2056 = vsel %vm613, %v2052, %v2054
        %v2059 = vadd.f32 %v2039, %v2055
        %v2060 = vadd.f32 %v2040, %v2056
        %s2061 = sld [smem:[#allocation7 + $0x28e]]
        %v2062 = vstv %s2061
        %v2063 = vmul.f32 %v340, %v2062
        %v2064 = vmul.f32 %v341, %v2062
        %v2065 = vmul.f32 %v342, %v2062
        %2069 = vrot.lane.b32.xlu0 %v2063, 114
        %v2070 = vpop.permute.xlu0 %2069
        %2071 = vrot.lane.b32.xlu0 %v2064, 114
        %v2072 = vpop.permute.xlu0 %2071
        %2073 = vrot.lane.b32.xlu0 %v2065, 114
        %v2074 = vpop.permute.xlu0 %2073
        %v2075 = vsel %vm634, %v2070, %v2072
        %v2076 = vsel %vm634, %v2072, %v2074
        %v2079 = vadd.f32 %v2059, %v2075
        %v2080 = vadd.f32 %v2060, %v2076
        %s2081 = sld [smem:[#allocation8 + $0x5]]
        %v2082 = vstv %s2081
        %v2083 = vadd.f32 %v2079, %v2082
        %v2084 = vadd.f32 %v2080, %v2082
        %s2085 = sld [smem:[#allocation7 + $0x300]]
        %v2086 = vstv %s2085
        %v2087 = vmul.f32 %v340, %v2086
        %v2088 = vmul.f32 %v341, %v2086
        %s2089 = sld [smem:[#allocation7 + $0x301]]
        %v2090 = vstv %s2089
        %v2091 = vmul.f32 %v340, %v2090
        %v2092 = vmul.f32 %v341, %v2090
        %v2093 = vmul.f32 %v342, %v2090
        %2097 = vrot.lane.b32.xlu0 %v2091, 127
        %v2098 = vpop.permute.xlu0 %2097
        %2099 = vrot.lane.b32.xlu0 %v2092, 127
        %v2100 = vpop.permute.xlu0 %2099
        %2101 = vrot.lane.b32.xlu0 %v2093, 127
        %v2102 = vpop.permute.xlu0 %2101
        %v2103 = vsel %vm361, %v2098, %v2100
        %v2104 = vsel %vm361, %v2100, %v2102
        %v2107 = vadd.f32 %v2087, %v2103
        %v2108 = vadd.f32 %v2088, %v2104
        %s2109 = sld [smem:[#allocation7 + $0x302]]
        %v2110 = vstv %s2109
        %v2111 = vmul.f32 %v340, %v2110
        %v2112 = vmul.f32 %v341, %v2110
        %v2113 = vmul.f32 %v342, %v2110
        %2117 = vrot.lane.b32.xlu0 %v2111, 126
        %v2118 = vpop.permute.xlu0 %2117
        %2119 = vrot.lane.b32.xlu0 %v2112, 126
        %v2120 = vpop.permute.xlu0 %2119
        %2121 = vrot.lane.b32.xlu0 %v2113, 126
        %v2122 = vpop.permute.xlu0 %2121
        %v2123 = vsel %vm382, %v2118, %v2120
        %v2124 = vsel %vm382, %v2120, %v2122
        %v2127 = vadd.f32 %v2107, %v2123
        %v2128 = vadd.f32 %v2108, %v2124
        %s2129 = sld [smem:[#allocation7 + $0x303]]
        %v2130 = vstv %s2129
        %v2131 = vmul.f32 %v340, %v2130
        %v2132 = vmul.f32 %v341, %v2130
        %v2133 = vmul.f32 %v342, %v2130
        %2137 = vrot.lane.b32.xlu0 %v2131, 125
        %v2138 = vpop.permute.xlu0 %2137
        %2139 = vrot.lane.b32.xlu0 %v2132, 125
        %v2140 = vpop.permute.xlu0 %2139
        %2141 = vrot.lane.b32.xlu0 %v2133, 125
        %v2142 = vpop.permute.xlu0 %2141
        %v2143 = vsel %vm403, %v2138, %v2140
        %v2144 = vsel %vm403, %v2140, %v2142
        %v2147 = vadd.f32 %v2127, %v2143
        %v2148 = vadd.f32 %v2128, %v2144
        %s2149 = sld [smem:[#allocation7 + $0x304]]
        %v2150 = vstv %s2149
        %v2151 = vmul.f32 %v340, %v2150
        %v2152 = vmul.f32 %v341, %v2150
        %v2153 = vmul.f32 %v342, %v2150
        %2157 = vrot.lane.b32.xlu0 %v2151, 124
        %v2158 = vpop.permute.xlu0 %2157
        %2159 = vrot.lane.b32.xlu0 %v2152, 124
        %v2160 = vpop.permute.xlu0 %2159
        %2161 = vrot.lane.b32.xlu0 %v2153, 124
        %v2162 = vpop.permute.xlu0 %2161
        %v2163 = vsel %vm424, %v2158, %v2160
        %v2164 = vsel %vm424, %v2160, %v2162
        %v2167 = vadd.f32 %v2147, %v2163
        %v2168 = vadd.f32 %v2148, %v2164
        %s2169 = sld [smem:[#allocation7 + $0x305]]
        %v2170 = vstv %s2169
        %v2171 = vmul.f32 %v340, %v2170
        %v2172 = vmul.f32 %v341, %v2170
        %v2173 = vmul.f32 %v342, %v2170
        %2177 = vrot.lane.b32.xlu0 %v2171, 123
        %v2178 = vpop.permute.xlu0 %2177
        %2179 = vrot.lane.b32.xlu0 %v2172, 123
        %v2180 = vpop.permute.xlu0 %2179
        %2181 = vrot.lane.b32.xlu0 %v2173, 123
        %v2182 = vpop.permute.xlu0 %2181
        %v2183 = vsel %vm445, %v2178, %v2180
        %v2184 = vsel %vm445, %v2180, %v2182
        %v2187 = vadd.f32 %v2167, %v2183
        %v2188 = vadd.f32 %v2168, %v2184
        %s2189 = sld [smem:[#allocation7 + $0x306]]
        %v2190 = vstv %s2189
        %v2191 = vmul.f32 %v340, %v2190
        %v2192 = vmul.f32 %v341, %v2190
        %v2193 = vmul.f32 %v342, %v2190
        %2197 = vrot.lane.b32.xlu0 %v2191, 122
        %v2198 = vpop.permute.xlu0 %2197
        %2199 = vrot.lane.b32.xlu0 %v2192, 122
        %v2200 = vpop.permute.xlu0 %2199
        %2201 = vrot.lane.b32.xlu0 %v2193, 122
        %v2202 = vpop.permute.xlu0 %2201
        %v2203 = vsel %vm466, %v2198, %v2200
        %v2204 = vsel %vm466, %v2200, %v2202
        %v2207 = vadd.f32 %v2187, %v2203
        %v2208 = vadd.f32 %v2188, %v2204
        %s2209 = sld [smem:[#allocation7 + $0x307]]
        %v2210 = vstv %s2209
        %v2211 = vmul.f32 %v340, %v2210
        %v2212 = vmul.f32 %v341, %v2210
        %v2213 = vmul.f32 %v342, %v2210
        %2217 = vrot.lane.b32.xlu0 %v2211, 121
        %v2218 = vpop.permute.xlu0 %2217
        %2219 = vrot.lane.b32.xlu0 %v2212, 121
        %v2220 = vpop.permute.xlu0 %2219
        %2221 = vrot.lane.b32.xlu0 %v2213, 121
        %v2222 = vpop.permute.xlu0 %2221
        %v2223 = vsel %vm487, %v2218, %v2220
        %v2224 = vsel %vm487, %v2220, %v2222
        %v2227 = vadd.f32 %v2207, %v2223
        %v2228 = vadd.f32 %v2208, %v2224
        %s2229 = sld [smem:[#allocation7 + $0x308]]
        %v2230 = vstv %s2229
        %v2231 = vmul.f32 %v340, %v2230
        %v2232 = vmul.f32 %v341, %v2230
        %v2233 = vmul.f32 %v342, %v2230
        %2237 = vrot.lane.b32.xlu0 %v2231, 120
        %v2238 = vpop.permute.xlu0 %2237
        %2239 = vrot.lane.b32.xlu0 %v2232, 120
        %v2240 = vpop.permute.xlu0 %2239
        %2241 = vrot.lane.b32.xlu0 %v2233, 120
        %v2242 = vpop.permute.xlu0 %2241
        %v2243 = vsel %vm508, %v2238, %v2240
        %v2244 = vsel %vm508, %v2240, %v2242
        %v2247 = vadd.f32 %v2227, %v2243
        %v2248 = vadd.f32 %v2228, %v2244
        %s2249 = sld [smem:[#allocation7 + $0x309]]
        %v2250 = vstv %s2249
        %v2251 = vmul.f32 %v340, %v2250
        %v2252 = vmul.f32 %v341, %v2250
        %v2253 = vmul.f32 %v342, %v2250
        %2257 = vrot.lane.b32.xlu0 %v2251, 119
        %v2258 = vpop.permute.xlu0 %2257
        %2259 = vrot.lane.b32.xlu0 %v2252, 119
        %v2260 = vpop.permute.xlu0 %2259
        %2261 = vrot.lane.b32.xlu0 %v2253, 119
        %v2262 = vpop.permute.xlu0 %2261
        %v2263 = vsel %vm529, %v2258, %v2260
        %v2264 = vsel %vm529, %v2260, %v2262
        %v2267 = vadd.f32 %v2247, %v2263
        %v2268 = vadd.f32 %v2248, %v2264
        %s2269 = sld [smem:[#allocation7 + $0x30a]]
        %v2270 = vstv %s2269
        %v2271 = vmul.f32 %v340, %v2270
        %v2272 = vmul.f32 %v341, %v2270
        %v2273 = vmul.f32 %v342, %v2270
        %2277 = vrot.lane.b32.xlu0 %v2271, 118
        %v2278 = vpop.permute.xlu0 %2277
        %2279 = vrot.lane.b32.xlu0 %v2272, 118
        %v2280 = vpop.permute.xlu0 %2279
        %2281 = vrot.lane.b32.xlu0 %v2273, 118
        %v2282 = vpop.permute.xlu0 %2281
        %v2283 = vsel %vm550, %v2278, %v2280
        %v2284 = vsel %vm550, %v2280, %v2282
        %v2287 = vadd.f32 %v2267, %v2283
        %v2288 = vadd.f32 %v2268, %v2284
        %s2289 = sld [smem:[#allocation7 + $0x30b]]
        %v2290 = vstv %s2289
        %v2291 = vmul.f32 %v340, %v2290
        %v2292 = vmul.f32 %v341, %v2290
        %v2293 = vmul.f32 %v342, %v2290
        %2297 = vrot.lane.b32.xlu0 %v2291, 117
        %v2298 = vpop.permute.xlu0 %2297
        %2299 = vrot.lane.b32.xlu0 %v2292, 117
        %v2300 = vpop.permute.xlu0 %2299
        %2301 = vrot.lane.b32.xlu0 %v2293, 117
        %v2302 = vpop.permute.xlu0 %2301
        %v2303 = vsel %vm571, %v2298, %v2300
        %v2304 = vsel %vm571, %v2300, %v2302
        %v2307 = vadd.f32 %v2287, %v2303
        %v2308 = vadd.f32 %v2288, %v2304
        %s2309 = sld [smem:[#allocation7 + $0x30c]]
        %v2310 = vstv %s2309
        %v2311 = vmul.f32 %v340, %v2310
        %v2312 = vmul.f32 %v341, %v2310
        %v2313 = vmul.f32 %v342, %v2310
        %2317 = vrot.lane.b32.xlu0 %v2311, 116
        %v2318 = vpop.permute.xlu0 %2317
        %2319 = vrot.lane.b32.xlu0 %v2312, 116
        %v2320 = vpop.permute.xlu0 %2319
        %2321 = vrot.lane.b32.xlu0 %v2313, 116
        %v2322 = vpop.permute.xlu0 %2321
        %v2323 = vsel %vm592, %v2318, %v2320
        %v2324 = vsel %vm592, %v2320, %v2322
        %v2327 = vadd.f32 %v2307, %v2323
        %v2328 = vadd.f32 %v2308, %v2324
        %s2329 = sld [smem:[#allocation7 + $0x30d]]
        %v2330 = vstv %s2329
        %v2331 = vmul.f32 %v340, %v2330
        %v2332 = vmul.f32 %v341, %v2330
        %v2333 = vmul.f32 %v342, %v2330
        %2337 = vrot.lane.b32.xlu0 %v2331, 115
        %v2338 = vpop.permute.xlu0 %2337
        %2339 = vrot.lane.b32.xlu0 %v2332, 115
        %v2340 = vpop.permute.xlu0 %2339
        %2341 = vrot.lane.b32.xlu0 %v2333, 115
        %v2342 = vpop.permute.xlu0 %2341
        %v2343 = vsel %vm613, %v2338, %v2340
        %v2344 = vsel %vm613, %v2340, %v2342
        %v2347 = vadd.f32 %v2327, %v2343
        %v2348 = vadd.f32 %v2328, %v2344
        %s2349 = sld [smem:[#allocation7 + $0x30e]]
        %v2350 = vstv %s2349
        %v2351 = vmul.f32 %v340, %v2350
        %v2352 = vmul.f32 %v341, %v2350
        %v2353 = vmul.f32 %v342, %v2350
        %2357 = vrot.lane.b32.xlu0 %v2351, 114
        %v2358 = vpop.permute.xlu0 %2357
        %2359 = vrot.lane.b32.xlu0 %v2352, 114
        %v2360 = vpop.permute.xlu0 %2359
        %2361 = vrot.lane.b32.xlu0 %v2353, 114
        %v2362 = vpop.permute.xlu0 %2361
        %v2363 = vsel %vm634, %v2358, %v2360
        %v2364 = vsel %vm634, %v2360, %v2362
        %v2367 = vadd.f32 %v2347, %v2363
        %v2368 = vadd.f32 %v2348, %v2364
        %s2369 = sld [smem:[#allocation8 + $0x6]]
        %v2370 = vstv %s2369
        %v2371 = vadd.f32 %v2367, %v2370
        %v2372 = vadd.f32 %v2368, %v2370
        %s2373 = sld [smem:[#allocation7 + $0x380]]
        %v2374 = vstv %s2373
        %v2375 = vmul.f32 %v340, %v2374
        %v2376 = vmul.f32 %v341, %v2374
        %s2377 = sld [smem:[#allocation7 + $0x381]]
        %v2378 = vstv %s2377
        %v2379 = vmul.f32 %v340, %v2378
        %v2380 = vmul.f32 %v341, %v2378
        %v2381 = vmul.f32 %v342, %v2378
        %2385 = vrot.lane.b32.xlu0 %v2379, 127
        %v2386 = vpop.permute.xlu0 %2385
        %2387 = vrot.lane.b32.xlu0 %v2380, 127
        %v2388 = vpop.permute.xlu0 %2387
        %2389 = vrot.lane.b32.xlu0 %v2381, 127
        %v2390 = vpop.permute.xlu0 %2389
        %v2391 = vsel %vm361, %v2386, %v2388
        %v2392 = vsel %vm361, %v2388, %v2390
        %v2395 = vadd.f32 %v2375, %v2391
        %v2396 = vadd.f32 %v2376, %v2392
        %s2397 = sld [smem:[#allocation7 + $0x382]]
        %v2398 = vstv %s2397
        %v2399 = vmul.f32 %v340, %v2398
        %v2400 = vmul.f32 %v341, %v2398
        %v2401 = vmul.f32 %v342, %v2398
        %2405 = vrot.lane.b32.xlu0 %v2399, 126
        %v2406 = vpop.permute.xlu0 %2405
        %2407 = vrot.lane.b32.xlu0 %v2400, 126
        %v2408 = vpop.permute.xlu0 %2407
        %2409 = vrot.lane.b32.xlu0 %v2401, 126
        %v2410 = vpop.permute.xlu0 %2409
        %v2411 = vsel %vm382, %v2406, %v2408
        %v2412 = vsel %vm382, %v2408, %v2410
        %v2415 = vadd.f32 %v2395, %v2411
        %v2416 = vadd.f32 %v2396, %v2412
        %s2417 = sld [smem:[#allocation7 + $0x383]]
        %v2418 = vstv %s2417
        %v2419 = vmul.f32 %v340, %v2418
        %v2420 = vmul.f32 %v341, %v2418
        %v2421 = vmul.f32 %v342, %v2418
        %2425 = vrot.lane.b32.xlu0 %v2419, 125
        %v2426 = vpop.permute.xlu0 %2425
        %2427 = vrot.lane.b32.xlu0 %v2420, 125
        %v2428 = vpop.permute.xlu0 %2427
        %2429 = vrot.lane.b32.xlu0 %v2421, 125
        %v2430 = vpop.permute.xlu0 %2429
        %v2431 = vsel %vm403, %v2426, %v2428
        %v2432 = vsel %vm403, %v2428, %v2430
        %v2435 = vadd.f32 %v2415, %v2431
        %v2436 = vadd.f32 %v2416, %v2432
        %s2437 = sld [smem:[#allocation7 + $0x384]]
        %v2438 = vstv %s2437
        %v2439 = vmul.f32 %v340, %v2438
        %v2440 = vmul.f32 %v341, %v2438
        %v2441 = vmul.f32 %v342, %v2438
        %2445 = vrot.lane.b32.xlu0 %v2439, 124
        %v2446 = vpop.permute.xlu0 %2445
        %2447 = vrot.lane.b32.xlu0 %v2440, 124
        %v2448 = vpop.permute.xlu0 %2447
        %2449 = vrot.lane.b32.xlu0 %v2441, 124
        %v2450 = vpop.permute.xlu0 %2449
        %v2451 = vsel %vm424, %v2446, %v2448
        %v2452 = vsel %vm424, %v2448, %v2450
        %v2455 = vadd.f32 %v2435, %v2451
        %v2456 = vadd.f32 %v2436, %v2452
        %s2457 = sld [smem:[#allocation7 + $0x385]]
        %v2458 = vstv %s2457
        %v2459 = vmul.f32 %v340, %v2458
        %v2460 = vmul.f32 %v341, %v2458
        %v2461 = vmul.f32 %v342, %v2458
        %2465 = vrot.lane.b32.xlu0 %v2459, 123
        %v2466 = vpop.permute.xlu0 %2465
        %2467 = vrot.lane.b32.xlu0 %v2460, 123
        %v2468 = vpop.permute.xlu0 %2467
        %2469 = vrot.lane.b32.xlu0 %v2461, 123
        %v2470 = vpop.permute.xlu0 %2469
        %v2471 = vsel %vm445, %v2466, %v2468
        %v2472 = vsel %vm445, %v2468, %v2470
        %v2475 = vadd.f32 %v2455, %v2471
        %v2476 = vadd.f32 %v2456, %v2472
        %s2477 = sld [smem:[#allocation7 + $0x386]]
        %v2478 = vstv %s2477
        %v2479 = vmul.f32 %v340, %v2478
        %v2480 = vmul.f32 %v341, %v2478
        %v2481 = vmul.f32 %v342, %v2478
        %2485 = vrot.lane.b32.xlu0 %v2479, 122
        %v2486 = vpop.permute.xlu0 %2485
        %2487 = vrot.lane.b32.xlu0 %v2480, 122
        %v2488 = vpop.permute.xlu0 %2487
        %2489 = vrot.lane.b32.xlu0 %v2481, 122
        %v2490 = vpop.permute.xlu0 %2489
        %v2491 = vsel %vm466, %v2486, %v2488
        %v2492 = vsel %vm466, %v2488, %v2490
        %v2495 = vadd.f32 %v2475, %v2491
        %v2496 = vadd.f32 %v2476, %v2492
        %s2497 = sld [smem:[#allocation7 + $0x387]]
        %v2498 = vstv %s2497
        %v2499 = vmul.f32 %v340, %v2498
        %v2500 = vmul.f32 %v341, %v2498
        %v2501 = vmul.f32 %v342, %v2498
        %2505 = vrot.lane.b32.xlu0 %v2499, 121
        %v2506 = vpop.permute.xlu0 %2505
        %2507 = vrot.lane.b32.xlu0 %v2500, 121
        %v2508 = vpop.permute.xlu0 %2507
        %2509 = vrot.lane.b32.xlu0 %v2501, 121
        %v2510 = vpop.permute.xlu0 %2509
        %v2511 = vsel %vm487, %v2506, %v2508
        %v2512 = vsel %vm487, %v2508, %v2510
        %v2515 = vadd.f32 %v2495, %v2511
        %v2516 = vadd.f32 %v2496, %v2512
        %s2517 = sld [smem:[#allocation7 + $0x388]]
        %v2518 = vstv %s2517
        %v2519 = vmul.f32 %v340, %v2518
        %v2520 = vmul.f32 %v341, %v2518
        %v2521 = vmul.f32 %v342, %v2518
        %2525 = vrot.lane.b32.xlu0 %v2519, 120
        %v2526 = vpop.permute.xlu0 %2525
        %2527 = vrot.lane.b32.xlu0 %v2520, 120
        %v2528 = vpop.permute.xlu0 %2527
        %2529 = vrot.lane.b32.xlu0 %v2521, 120
        %v2530 = vpop.permute.xlu0 %2529
        %v2531 = vsel %vm508, %v2526, %v2528
        %v2532 = vsel %vm508, %v2528, %v2530
        %v2535 = vadd.f32 %v2515, %v2531
        %v2536 = vadd.f32 %v2516, %v2532
        %s2537 = sld [smem:[#allocation7 + $0x389]]
        %v2538 = vstv %s2537
        %v2539 = vmul.f32 %v340, %v2538
        %v2540 = vmul.f32 %v341, %v2538
        %v2541 = vmul.f32 %v342, %v2538
        %2545 = vrot.lane.b32.xlu0 %v2539, 119
        %v2546 = vpop.permute.xlu0 %2545
        %2547 = vrot.lane.b32.xlu0 %v2540, 119
        %v2548 = vpop.permute.xlu0 %2547
        %2549 = vrot.lane.b32.xlu0 %v2541, 119
        %v2550 = vpop.permute.xlu0 %2549
        %v2551 = vsel %vm529, %v2546, %v2548
        %v2552 = vsel %vm529, %v2548, %v2550
        %v2555 = vadd.f32 %v2535, %v2551
        %v2556 = vadd.f32 %v2536, %v2552
        %s2557 = sld [smem:[#allocation7 + $0x38a]]
        %v2558 = vstv %s2557
        %v2559 = vmul.f32 %v340, %v2558
        %v2560 = vmul.f32 %v341, %v2558
        %v2561 = vmul.f32 %v342, %v2558
        %2565 = vrot.lane.b32.xlu0 %v2559, 118
        %v2566 = vpop.permute.xlu0 %2565
        %2567 = vrot.lane.b32.xlu0 %v2560, 118
        %v2568 = vpop.permute.xlu0 %2567
        %2569 = vrot.lane.b32.xlu0 %v2561, 118
        %v2570 = vpop.permute.xlu0 %2569
        %v2571 = vsel %vm550, %v2566, %v2568
        %v2572 = vsel %vm550, %v2568, %v2570
        %v2575 = vadd.f32 %v2555, %v2571
        %v2576 = vadd.f32 %v2556, %v2572
        %s2577 = sld [smem:[#allocation7 + $0x38b]]
        %v2578 = vstv %s2577
        %v2579 = vmul.f32 %v340, %v2578
        %v2580 = vmul.f32 %v341, %v2578
        %v2581 = vmul.f32 %v342, %v2578
        %2585 = vrot.lane.b32.xlu0 %v2579, 117
        %v2586 = vpop.permute.xlu0 %2585
        %2587 = vrot.lane.b32.xlu0 %v2580, 117
        %v2588 = vpop.permute.xlu0 %2587
        %2589 = vrot.lane.b32.xlu0 %v2581, 117
        %v2590 = vpop.permute.xlu0 %2589
        %v2591 = vsel %vm571, %v2586, %v2588
        %v2592 = vsel %vm571, %v2588, %v2590
        %v2595 = vadd.f32 %v2575, %v2591
        %v2596 = vadd.f32 %v2576, %v2592
        %s2597 = sld [smem:[#allocation7 + $0x38c]]
        %v2598 = vstv %s2597
        %v2599 = vmul.f32 %v340, %v2598
        %v2600 = vmul.f32 %v341, %v2598
        %v2601 = vmul.f32 %v342, %v2598
        %2605 = vrot.lane.b32.xlu0 %v2599, 116
        %v2606 = vpop.permute.xlu0 %2605
        %2607 = vrot.lane.b32.xlu0 %v2600, 116
        %v2608 = vpop.permute.xlu0 %2607
        %2609 = vrot.lane.b32.xlu0 %v2601, 116
        %v2610 = vpop.permute.xlu0 %2609
        %v2611 = vsel %vm592, %v2606, %v2608
        %v2612 = vsel %vm592, %v2608, %v2610
        %v2615 = vadd.f32 %v2595, %v2611
        %v2616 = vadd.f32 %v2596, %v2612
        %s2617 = sld [smem:[#allocation7 + $0x38d]]
        %v2618 = vstv %s2617
        %v2619 = vmul.f32 %v340, %v2618
        %v2620 = vmul.f32 %v341, %v2618
        %v2621 = vmul.f32 %v342, %v2618
        %2625 = vrot.lane.b32.xlu0 %v2619, 115
        %v2626 = vpop.permute.xlu0 %2625
        %2627 = vrot.lane.b32.xlu0 %v2620, 115
        %v2628 = vpop.permute.xlu0 %2627
        %2629 = vrot.lane.b32.xlu0 %v2621, 115
        %v2630 = vpop.permute.xlu0 %2629
        %v2631 = vsel %vm613, %v2626, %v2628
        %v2632 = vsel %vm613, %v2628, %v2630
        %v2635 = vadd.f32 %v2615, %v2631
        %v2636 = vadd.f32 %v2616, %v2632
        %s2637 = sld [smem:[#allocation7 + $0x38e]]
        %v2638 = vstv %s2637
        %v2639 = vmul.f32 %v340, %v2638
        %v2640 = vmul.f32 %v341, %v2638
        %v2641 = vmul.f32 %v342, %v2638
        %2645 = vrot.lane.b32.xlu0 %v2639, 114
        %v2646 = vpop.permute.xlu0 %2645
        %2647 = vrot.lane.b32.xlu0 %v2640, 114
        %v2648 = vpop.permute.xlu0 %2647
        %2649 = vrot.lane.b32.xlu0 %v2641, 114
        %v2650 = vpop.permute.xlu0 %2649
        %v2651 = vsel %vm634, %v2646, %v2648
        %v2652 = vsel %vm634, %v2648, %v2650
        %v2655 = vadd.f32 %v2635, %v2651
        %v2656 = vadd.f32 %v2636, %v2652
        %s2657 = sld [smem:[#allocation8 + $0x7]]
        %v2658 = vstv %s2657
        %v2659 = vadd.f32 %v2655, %v2658
        %v2660 = vadd.f32 %v2656, %v2658
        %s2661 = sld [smem:[#allocation2]]
        %v2662 = vld [vmem:[%s4] sm:$0xf]
        %v2663 = vld [vmem:[%s4 + $0x4] sm:$0xf]
        %v2664 = vld [vmem:[%s5] sm:$0xff]
        %v2665 = vld [vmem:[%s5 + $0x8] sm:$0xff]
        %v2666 = vld [vmem:[#allocation10] sm:$0xf]
        %v2667 = vld [vmem:[#allocation10 + $0x4] sm:$0xf]
        %v2668 = vld [vmem:[#allocation10 + $0x8] sm:$0xf]
        %v2669 = vld [vmem:[#allocation10 + $0xc] sm:$0xf]
        %v2670 = vld [vmem:[#allocation10 + $0x10] sm:$0xf]
        %v2671 = vld [vmem:[#allocation10 + $0x14] sm:$0xf]
        %v2672 = vld [vmem:[#allocation10 + $0x18] sm:$0xf]
        %v2673 = vld [vmem:[#allocation10 + $0x1c] sm:$0xf]
        %v2674 = vld [vmem:[#allocation10 + $0x20] sm:$0xf]
        %v2675 = vld [vmem:[#allocation10 + $0x24] sm:$0xf]
        %v2676 = vld [vmem:[#allocation10 + $0x28] sm:$0xf]
        %v2677 = vld [vmem:[#allocation10 + $0x2c] sm:$0xf]
        %v2678 = vld [vmem:[#allocation10 + $0x30] sm:$0xf]
        %v2679 = vld [vmem:[#allocation10 + $0x34] sm:$0xf]
        %v2680 = vld [vmem:[#allocation10 + $0x38] sm:$0xf]
        %v2681 = vld [vmem:[#allocation10 + $0x3c] sm:$0xf]
        %v2682 = vld [vmem:[#allocation10 + $0x40] sm:$0xf]
        %v2683 = vld [vmem:[#allocation10 + $0x44] sm:$0xf]
        %v2684 = vld [vmem:[#allocation10 + $0x48] sm:$0xf]
        %v2685 = vld [vmem:[#allocation10 + $0x4c] sm:$0xf]
        %v2686 = vld [vmem:[#allocation10 + $0x50] sm:$0xf]
        %v2687 = vld [vmem:[#allocation10 + $0x54] sm:$0xf]
        %v2688 = vld [vmem:[#allocation10 + $0x58] sm:$0xf]
        %v2689 = vld [vmem:[#allocation10 + $0x5c] sm:$0xf]
        %v2690 = vld [vmem:[#allocation10 + $0x60] sm:$0xf]
        %v2691 = vld [vmem:[#allocation10 + $0x64] sm:$0xf]
        %v2692 = vld [vmem:[#allocation10 + $0x68] sm:$0xf]
        %v2693 = vld [vmem:[#allocation10 + $0x6c] sm:$0xf]
        %v2694 = vld [vmem:[#allocation10 + $0x70] sm:$0xf]
        %v2695 = vld [vmem:[#allocation10 + $0x74] sm:$0xf]
        %v2696 = vld [vmem:[#allocation10 + $0x78] sm:$0xf]
        %v2697 = vld [vmem:[#allocation10 + $0x7c] sm:$0xf]
        %v2700 = vrot.slane %v931, 4
        %v2701 = vrot.slane %v932, 4
        %v2706 = vrot.slane %v1507, 4
        %v2707 = vrot.slane %v1508, 4
        %v2712 = vrot.slane %v2083, 4
        %v2713 = vrot.slane %v2084, 4
        %v2718 = vrot.slane %v2659, 4
        %v2719 = vrot.slane %v2660, 4
        %vm2722 = vcmask 1043456
        %v2723 = vsel %vm2722, %v643, %v2700
        %v2724 = vsel %vm2722, %v644, %v2701
        %v2725 = vsel %vm2722, %v1219, %v2706
        %v2726 = vsel %vm2722, %v1220, %v2707
        %v2727 = vsel %vm2722, %v1795, %v2712
        %v2728 = vsel %vm2722, %v1796, %v2713
        %v2729 = vsel %vm2722, %v2371, %v2718
        %v2730 = vsel %vm2722, %v2372, %v2719
        %2731 = vmatprep.subr.mxu0 %v2724
        %2732 = vmatpush1.xpose.msra.mxu0 %v2723
        %2733 = vmatprep.subr.mxu0 %v2726
        %2734 = vmatpush1.xpose.msra.mxu0 %v2725
        %2735 = vmatprep.subr.mxu0 %v2728
        %2736 = vmatpush1.xpose.msra.mxu0 %v2727
        %2737 = vmatprep.subr.mxu0 %v2730
        %2738 = vmatpush1.xpose.msra.mxu0 %v2729
        %2739 = vmatprep.subr.mxu0 0.0
        %2740 = vmatpush1.xpose.msra.mxu0 0.0
        %2741 = vmatprep.subr.mxu0 0.0
        %2742 = vmatpush1.xpose.msra.mxu0 0.0
        %2743 = vmatprep.subr.mxu0 0.0
        %2744 = vmatpush1.xpose.msra.mxu0 0.0
        %2745 = vmatprep.subr.mxu0 0.0
        %2746 = vmatpush1.xpose.msra.mxu0 0.0
        %2747 = vmatprep.subr.mxu0 0.0
        %2748 = vmatpush1.xpose.msra.mxu0 0.0
        %2749 = vmatprep.subr.mxu0 0.0
        %2750 = vmatpush1.xpose.msra.mxu0 0.0
        %2751 = vmatprep.subr.mxu0 0.0
        %2752 = vmatpush1.xpose.msra.mxu0 0.0
        %2753 = vmatprep.subr.mxu0 0.0
        %2754 = vmatpush1.xpose.msra.mxu0 0.0
        %2755 = vmatprep.subr.mxu0 0.0
        %2756 = vmatpush1.xpose.msra.mxu0 0.0
        %2757 = vmatprep.subr.mxu0 0.0
        %2758 = vmatpush1.xpose.msra.mxu0 0.0
        %2759 = vmatprep.subr.mxu0 0.0
        %2760 = vmatpush1.xpose.msra.mxu0 0.0
        %2761 = vmatprep.subr.mxu0 0.0
        %2762 = vmatpush1.xpose.msra.mxu0 0.0
        %2763 = vmatprep.subr.mxu0 0.0
        %2764 = vmatpush1.xpose.msra.mxu0 0.0
        %2765 = vmatprep.subr.mxu0 0.0
        %2766 = vmatpush1.xpose.msra.mxu0 0.0
        %2767 = vmatprep.subr.mxu0 0.0
        %2768 = vmatpush1.xpose.msra.mxu0 0.0
        %2769 = vmatprep.subr.mxu0 0.0
        %2770 = vmatpush1.xpose.msra.mxu0 0.0
        %2771 = vmatprep.subr.mxu0 0.0
        %2772 = vmatpush1.xpose.msra.mxu0 0.0
        %2773 = vmatprep.subr.mxu0 0.0
        %2774 = vmatpush1.xpose.msra.mxu0 0.0
        %2775 = vmatprep.subr.mxu0 0.0
        %2776 = vmatpush1.xpose.msra.mxu0 0.0
        %2777 = vmatprep.subr.mxu0 0.0
        %2778 = vmatpush1.xpose.msra.mxu0 0.0
        %2779 = vmatprep.subr.mxu0 0.0
        %2780 = vmatpush1.xpose.msra.mxu0 0.0
        %2781 = vmatprep.subr.mxu0 0.0
        %2782 = vmatpush1.xpose.msra.mxu0 0.0
        %2783 = vmatprep.subr.mxu0 0.0
        %2784 = vmatpush1.xpose.msra.mxu0 0.0
        %2785 = vmatprep.subr.mxu0 0.0
        %2786 = vmatpush1.xpose.msra.mxu0 0.0
        %2787 = vmatprep.subr.mxu0 0.0
        %2788 = vmatpush1.xpose.msra.mxu0 0.0
        %2789 = vmatprep.subr.mxu0 0.0
        %2790 = vmatpush1.xpose.msra.mxu0 0.0
        %2791 = vmatprep.subr.mxu0 0.0
        %2792 = vmatpush1.xpose.msra.mxu0 0.0
        %2793 = vmatprep.subr.mxu0 0.0
        %2794 = vmatpush1.xpose.msra.mxu0 0.0
        %2795 = vmatprep.mubr.f32.mxu0 %v2724
        %2796 = vmatmul.mubr.f32.gmra.mrb[0].mxu0 %v2723
        %v2797 = vpop.f32.mrb[0].mxu0
        %v2798 = vadd.f32 0.0, %v2797
        %v2799 = vpop.f32.mrb[0].mxu0
        %2800 = vmatprep.mubr.f32.mxu0 %v2726
        %2801 = vmatmul.mubr.f32.gmra.mrb[0].mxu0 %v2725
        %v2802 = vpop.f32.mrb[0].mxu0
        %v2803 = vadd.f32 0.0, %v2802
        %v2804 = vpop.f32.mrb[0].mxu0
        %2805 = vmatprep.mubr.f32.mxu0 %v2728
        %2806 = vmatmul.mubr.f32.gmra.mrb[0].mxu0 %v2727
        %v2807 = vpop.f32.mrb[0].mxu0
        %v2808 = vadd.f32 0.0, %v2807
        %v2809 = vpop.f32.mrb[0].mxu0
        %2810 = vmatprep.mubr.f32.mxu0 %v2730
        %2811 = vmatmul.mubr.f32.gmra.mrb[0].mxu0 %v2729
        %v2812 = vpop.f32.mrb[0].mxu0
        %v2813 = vadd.f32 0.0, %v2812
        %v2814 = vpop.f32.mrb[0].mxu0
        %2815 = vdwg.mxu0
        %v2816 = vmul.f32 %v2798, 0.0625
        %v2817 = vmul.f32 %v2803, 0.0625
        %v2818 = vmul.f32 %v2808, 0.0625
        %v2819 = vmul.f32 %v2813, 0.0625
        %vm2820 = vcmask 261120
        %v2821 = vsel %vm2820, %v2816, -inf
        %2822 = vmax.xlane.f32.xlu0 %v2821
        %v2823 = vpop.xlane.xlu0 %2822
        %v2824 = vsel %vm2820, %v2817, -inf
        %2825 = vmax.xlane.f32.xlu0 %v2824
        %v2826 = vpop.xlane.xlu0 %2825
        %v2827 = vsel %vm2820, %v2818, -inf
        %2828 = vmax.xlane.f32.xlu0 %v2827
        %v2829 = vpop.xlane.xlu0 %2828
        %v2830 = vsel %vm2820, %v2819, -inf
        %2831 = vmax.xlane.f32.xlu0 %v2830
        %v2832 = vpop.xlane.xlu0 %2831
        %v2833 = vsub.f32 %v2816, %v2823
        %v2834 = vsub.f32 %v2817, %v2826
        %v2835 = vsub.f32 %v2818, %v2829
        %v2836 = vsub.f32 %v2819, %v2832
        %v2837 = vmul.f32 %v2833, 1.442695
        %v2838 = vpow.pop %v2837
        %v2839 = vmul.f32 %v2834, 1.442695
        %v2840 = vpow.pop %v2839
        %v2841 = vmul.f32 %v2835, 1.442695
        %v2842 = vpow.pop %v2841
        %v2843 = vmul.f32 %v2836, 1.442695
        %v2844 = vpow.pop %v2843
        %v2845 = vsel %vm2820, %v2838, 0.0
        %2846 = vadd.xlane.f32.xlu0 %v2845
        %v2847 = vpop.xlane.xlu0 %2846
        %v2848 = vsel %vm2820, %v2840, 0.0
        %2849 = vadd.xlane.f32.xlu0 %v2848
        %v2850 = vpop.xlane.xlu0 %2849
        %v2851 = vsel %vm2820, %v2842, 0.0
        %2852 = vadd.xlane.f32.xlu0 %v2851
        %v2853 = vpop.xlane.xlu0 %2852
        %v2854 = vsel %vm2820, %v2844, 0.0
        %2855 = vadd.xlane.f32.xlu0 %v2854
        %v2856 = vpop.xlane.xlu0 %2855
        %v2857 = vrcp.pop %v2847
        %v2858 = vrcp.pop %v2850
        %v2859 = vrcp.pop %v2853
        %v2860 = vrcp.pop %v2856
        %v2861 = vmul.f32 %v2838, %v2857
        %v2862 = vmul.f32 %v2840, %v2858
        %v2863 = vmul.f32 %v2842, %v2859
        %v2864 = vmul.f32 %v2844, %v2860
        %v2866 = vsel %vm2820, %v2861, 0
        %v2869 = vsel %vm2820, %v2862, 0
        %v2872 = vsel %vm2820, %v2863, 0
        %v2875 = vsel %vm2820, %v2864, 0
        %2877 = vmatprep.subr.mxu0 %v2724
        %2878 = vmatpush1.msra.mxu0 %v2723
        %2879 = vmatprep.subr.mxu0 %v2726
        %2880 = vmatpush1.msra.mxu0 %v2725
        %2881 = vmatprep.subr.mxu0 %v2728
        %2882 = vmatpush1.msra.mxu0 %v2727
        %2883 = vmatprep.subr.mxu0 %v2730
        %2884 = vmatpush1.msra.mxu0 %v2729
        %2885 = vmatprep.subr.mxu0 0.0
        %2886 = vmatpush1.msra.mxu0 0.0
        %2887 = vmatprep.subr.mxu0 0.0
        %2888 = vmatpush1.msra.mxu0 0.0
        %2889 = vmatprep.subr.mxu0 0.0
        %2890 = vmatpush1.msra.mxu0 0.0
        %2891 = vmatprep.subr.mxu0 0.0
        %2892 = vmatpush1.msra.mxu0 0.0
        %2893 = vmatprep.subr.mxu0 0.0
        %2894 = vmatpush1.msra.mxu0 0.0
        %2895 = vmatprep.subr.mxu0 0.0
        %2896 = vmatpush1.msra.mxu0 0.0
        %2897 = vmatprep.subr.mxu0 0.0
        %2898 = vmatpush1.msra.mxu0 0.0
        %2899 = vmatprep.subr.mxu0 0.0
        %2900 = vmatpush1.msra.mxu0 0.0
        %2901 = vmatprep.subr.mxu0 0.0
        %2902 = vmatpush1.msra.mxu0 0.0
        %2903 = vmatprep.subr.mxu0 0.0
        %2904 = vmatpush1.msra.mxu0 0.0
        %2905 = vmatprep.subr.mxu0 0.0
        %2906 = vmatpush1.msra.mxu0 0.0
        %2907 = vmatprep.subr.mxu0 0.0
        %2908 = vmatpush1.msra.mxu0 0.0
        %2909 = vmatprep.subr.mxu0 0.0
        %2910 = vmatpush1.msra.mxu0 0.0
        %2911 = vmatprep.subr.mxu0 0.0
        %2912 = vmatpush1.msra.mxu0 0.0
        %2913 = vmatprep.subr.mxu0 0.0
        %2914 = vmatpush1.msra.mxu0 0.0
        %2915 = vmatprep.subr.mxu0 0.0
        %2916 = vmatpush1.msra.mxu0 0.0
        %2917 = vmatprep.subr.mxu0 0.0
        %2918 = vmatpush1.msra.mxu0 0.0
        %2919 = vmatprep.subr.mxu0 0.0
        %2920 = vmatpush1.msra.mxu0 0.0
        %2921 = vmatprep.subr.mxu0 0.0
        %2922 = vmatpush1.msra.mxu0 0.0
        %2923 = vmatprep.subr.mxu0 0.0
        %2924 = vmatpush1.msra.mxu0 0.0
        %2925 = vmatprep.subr.mxu0 0.0
        %2926 = vmatpush1.msra.mxu0 0.0
        %2927 = vmatprep.subr.mxu0 0.0
        %2928 = vmatpush1.msra.mxu0 0.0
        %2929 = vmatprep.subr.mxu0 0.0
        %2930 = vmatpush1.msra.mxu0 0.0
        %2931 = vmatprep.subr.mxu0 0.0
        %2932 = vmatpush1.msra.mxu0 0.0
        %2933 = vmatprep.subr.mxu0 0.0
        %2934 = vmatpush1.msra.mxu0 0.0
        %2935 = vmatprep.subr.mxu0 0.0
        %2936 = vmatpush1.msra.mxu0 0.0
        %2937 = vmatprep.subr.mxu0 0.0
        %2938 = vmatpush1.msra.mxu0 0.0
        %2939 = vmatprep.subr.mxu0 0.0
        %2940 = vmatpush1.msra.mxu0 0.0
        %2941 = vmatprep.mubr.f32.mxu0 0.0
        %2942 = vmatmul.mubr.f32.gmra.mrb[0].mxu0 %v2866
        %v2943 = vpop.f32.mrb[0].mxu0
        %v2944 = vadd.f32 0.0, %v2943
        %v2945 = vpop.f32.mrb[0].mxu0
        %v2946 = vadd.f32 0.0, %v2945
        %2947 = vmatprep.mubr.f32.mxu0 0.0
        %2948 = vmatmul.mubr.f32.gmra.mrb[0].mxu0 %v2869
        %v2949 = vpop.f32.mrb[0].mxu0
        %v2950 = vadd.f32 0.0, %v2949
        %v2951 = vpop.f32.mrb[0].mxu0
        %v2952 = vadd.f32 0.0, %v2951
        %2953 = vmatprep.mubr.f32.mxu0 0.0
        %2954 = vmatmul.mubr.f32.gmra.mrb[0].mxu0 %v2872
        %v2955 = vpop.f32.mrb[0].mxu0
        %v2956 = vadd.f32 0.0, %v2955
        %v2957 = vpop.f32.mrb[0].mxu0
        %v2958 = vadd.f32 0.0, %v2957
        %2959 = vmatprep.mubr.f32.mxu0 0.0
        %2960 = vmatmul.mubr.f32.gmra.mrb[0].mxu0 %v2875
        %v2961 = vpop.f32.mrb[0].mxu0
        %v2962 = vadd.f32 0.0, %v2961
        %v2963 = vpop.f32.mrb[0].mxu0
        %v2964 = vadd.f32 0.0, %v2963
        %2965 = vdwg.mxu0
        %v2966 = vstv %s2661
        %v2967 = vmul.f32 %v2966, %v2944
        %v2968 = vmul.f32 %v2966, %v2946
        %v2969 = vmul.f32 %v2966, %v2950
        %v2970 = vmul.f32 %v2966, %v2952
        %v2971 = vmul.f32 %v2966, %v2956
        %v2972 = vmul.f32 %v2966, %v2958
        %v2973 = vmul.f32 %v2966, %v2962
        %v2974 = vmul.f32 %v2966, %v2964
        %v2975 = vadd.f32 %v2967, %v2723
        %v2976 = vadd.f32 %v2968, %v2724
        %v2977 = vadd.f32 %v2969, %v2725
        %v2978 = vadd.f32 %v2970, %v2726
        %v2979 = vadd.f32 %v2971, %v2727
        %v2980 = vadd.f32 %v2972, %v2728
        %v2981 = vadd.f32 %v2973, %v2729
        %v2982 = vadd.f32 %v2974, %v2730
        %v2983 = vpack.c.bf16 %v2977, %v2975
        %v2984 = vpack.c.bf16 %v2978, %v2976
        %v2985 = vpack.c.bf16 %v2981, %v2979
        %v2986 = vpack.c.bf16 %v2982, %v2980
        %2988 = vset.pattern.permute.xlu0 0
        %2989 = vperm.xlu0 %2988, %v2664
        %v2990 = vpop.permute.xlu0 %2989
        %2993 = vset.pattern.permute.xlu0 0
        %2994 = vperm.xlu0 %2993, %v2665
        %v2995 = vpop.permute.xlu0 %2994
        %v2999 = vunpack.c.l.b16 %v2662
        %v3000 = vunpack.c.l.b16 %v2663
        %v3001 = vpack.c.b16 %v3000, %v2999
        %v3003 = vsel %vm2820, %v3001, 0
        %3005 = vmatprep.subr.bf16.mxu0 %v2984
        %3006 = vmatpush1.bf16.msra.mxu0 %v2983
        %3007 = vmatprep.subr.bf16.mxu0 %v2986
        %3008 = vmatpush1.bf16.msra.mxu0 %v2985
        %3009 = vmatprep.subr.bf16.mxu0 0
        %3010 = vmatpush1.bf16.msra.mxu0 0
        %3011 = vmatprep.subr.bf16.mxu0 0
        %3012 = vmatpush1.bf16.msra.mxu0 0
        %3013 = vmatprep.subr.bf16.mxu0 0
        %3014 = vmatpush1.bf16.msra.mxu0 0
        %3015 = vmatprep.subr.bf16.mxu0 0
        %3016 = vmatpush1.bf16.msra.mxu0 0
        %3017 = vmatprep.subr.bf16.mxu0 0
        %3018 = vmatpush1.bf16.msra.mxu0 0
        %3019 = vmatprep.subr.bf16.mxu0 0
        %3020 = vmatpush1.bf16.msra.mxu0 0
        %3021 = vmatprep.subr.bf16.mxu0 0
        %3022 = vmatpush1.bf16.msra.mxu0 0
        %3023 = vmatprep.subr.bf16.mxu0 0
        %3024 = vmatpush1.bf16.msra.mxu0 0
        %3025 = vmatprep.subr.bf16.mxu0 0
        %3026 = vmatpush1.bf16.msra.mxu0 0
        %3027 = vmatprep.subr.bf16.mxu0 0
        %3028 = vmatpush1.bf16.msra.mxu0 0
        %3029 = vmatprep.subr.bf16.mxu0 0
        %3030 = vmatpush1.bf16.msra.mxu0 0
        %3031 = vmatprep.subr.bf16.mxu0 0
        %3032 = vmatpush1.bf16.msra.mxu0 0
        %3033 = vmatprep.subr.bf16.mxu0 0
        %3034 = vmatpush1.bf16.msra.mxu0 0
        %3035 = vmatprep.subr.bf16.mxu0 0
        %3036 = vmatpush1.bf16.msra.mxu0 0
        %3037 = vmatprep.mubr.bf16.mxu0 0
        %3038 = vmatmul.mubr.bf16.gmra.mrb[0].mxu0 %v3003
        %v3039 = vpop.f32.mrb[0].mxu0
        %v3040 = vadd.f32 %v2990, %v3039
        %v3041 = vpop.f32.mrb[0].mxu0
        %v3042 = vadd.f32 %v2990, %v3041
        %v3043 = vpop.f32.mrb[0].mxu0
        %v3044 = vadd.f32 %v2995, %v3043
        %v3045 = vpop.f32.mrb[0].mxu0
        %v3046 = vadd.f32 %v2995, %v3045
        %3047 = vdwg.mxu0
        %vm3048 = vcmp.gt.f32.partialorder %v3040, 0.0
        %vm3049 = vcmp.gt.f32.partialorder %v3042, 0.0
        %vm3050 = vcmp.gt.f32.partialorder %v3044, 0.0
        %vm3051 = vcmp.gt.f32.partialorder %v3046, 0.0
        %v3052 = vmin.f32 %v3040, 0.0
        %v3053 = vmin.f32 %v3042, 0.0
        %v3054 = vmin.f32 %v3044, 0.0
        %v3055 = vmin.f32 %v3046, 0.0
        %v3056 = vmul.f32 %v3052, 1.442695
        %v3057 = vpow.pop %v3056
        %v3058 = vmul.f32 %v3053, 1.442695
        %v3059 = vpow.pop %v3058
        %v3060 = vmul.f32 %v3054, 1.442695
        %v3061 = vpow.pop %v3060
        %v3062 = vmul.f32 %v3055, 1.442695
        %v3063 = vpow.pop %v3062
        %v3064 = vsub.f32 %v3057, 1.0
        %v3065 = vsub.f32 %v3059, 1.0
        %v3066 = vsub.f32 %v3061, 1.0
        %v3067 = vsub.f32 %v3063, 1.0
        %v3068 = vsel %vm3048, %v3040, %v3064
        %v3069 = vsel %vm3049, %v3042, %v3065
        %v3070 = vsel %vm3050, %v3044, %v3066
        %v3071 = vsel %vm3051, %v3046, %v3067
        %v3072 = vpack.c.bf16 %v3070, %v3068
        %v3073 = vpack.c.bf16 %v3071, %v3069
        %v3106 = vunpack.c.l.b16 %v2666
        %v3107 = vunpack.c.l.b16 %v2667
        %v3108 = vunpack.c.l.b16 %v2668
        %v3109 = vunpack.c.l.b16 %v2669
        %v3110 = vunpack.c.l.b16 %v2670
        %v3111 = vunpack.c.l.b16 %v2671
        %v3112 = vunpack.c.l.b16 %v2672
        %v3113 = vunpack.c.l.b16 %v2673
        %v3114 = vunpack.c.l.b16 %v2674
        %v3115 = vunpack.c.l.b16 %v2675
        %v3116 = vunpack.c.l.b16 %v2676
        %v3117 = vunpack.c.l.b16 %v2677
        %v3118 = vunpack.c.l.b16 %v2678
        %v3119 = vunpack.c.l.b16 %v2679
        %v3120 = vunpack.c.l.b16 %v2680
        %v3121 = vunpack.c.l.b16 %v2681
        %v3122 = vunpack.c.l.b16 %v2682
        %v3123 = vunpack.c.l.b16 %v2683
        %v3124 = vunpack.c.l.b16 %v2684
        %v3125 = vunpack.c.l.b16 %v2685
        %v3126 = vunpack.c.l.b16 %v2686
        %v3127 = vunpack.c.l.b16 %v2687
        %v3128 = vunpack.c.l.b16 %v2688
        %v3129 = vunpack.c.l.b16 %v2689
        %v3130 = vunpack.c.l.b16 %v2690
        %v3131 = vunpack.c.l.b16 %v2691
        %v3132 = vunpack.c.l.b16 %v2692
        %v3133 = vunpack.c.l.b16 %v2693
        %v3134 = vunpack.c.l.b16 %v2694
        %v3135 = vunpack.c.l.b16 %v2695
        %v3136 = vunpack.c.l.b16 %v2696
        %v3137 = vunpack.c.l.b16 %v2697
        %v3138 = vpack.c.b16 %v3107, %v3106
        %v3139 = vpack.c.b16 %v3109, %v3108
        %v3140 = vpack.c.b16 %v3111, %v3110
        %v3141 = vpack.c.b16 %v3113, %v3112
        %v3142 = vpack.c.b16 %v3115, %v3114
        %v3143 = vpack.c.b16 %v3117, %v3116
        %v3144 = vpack.c.b16 %v3119, %v3118
        %v3145 = vpack.c.b16 %v3121, %v3120
        %v3146 = vpack.c.b16 %v3123, %v3122
        %v3147 = vpack.c.b16 %v3125, %v3124
        %v3148 = vpack.c.b16 %v3127, %v3126
        %v3149 = vpack.c.b16 %v3129, %v3128
        %v3150 = vpack.c.b16 %v3131, %v3130
        %v3151 = vpack.c.b16 %v3133, %v3132
        %v3152 = vpack.c.b16 %v3135, %v3134
        %v3153 = vpack.c.b16 %v3137, %v3136
        %3170 = vmatprep.subr.bf16.mxu0 0
        %3171 = vmatpush1.bf16.msra.mxu0 %v3138
        %3172 = vmatprep.subr.bf16.mxu0 0
        %3173 = vmatpush1.bf16.msra.mxu0 %v3139
        %3174 = vmatprep.subr.bf16.mxu0 0
        %3175 = vmatpush1.bf16.msra.mxu0 %v3140
        %3176 = vmatprep.subr.bf16.mxu0 0
        %3177 = vmatpush1.bf16.msra.mxu0 %v3141
        %3178 = vmatprep.subr.bf16.mxu0 0
        %3179 = vmatpush1.bf16.msra.mxu0 %v3142
        %3180 = vmatprep.subr.bf16.mxu0 0
        %3181 = vmatpush1.bf16.msra.mxu0 %v3143
        %3182 = vmatprep.subr.bf16.mxu0 0
        %3183 = vmatpush1.bf16.msra.mxu0 %v3144
        %3184 = vmatprep.subr.bf16.mxu0 0
        %3185 = vmatpush1.bf16.msra.mxu0 %v3145
        %3186 = vmatprep.subr.bf16.mxu0 0
        %3187 = vmatpush1.bf16.msra.mxu0 %v3146
        %3188 = vmatprep.subr.bf16.mxu0 0
        %3189 = vmatpush1.bf16.msra.mxu0 %v3147
        %3190 = vmatprep.subr.bf16.mxu0 0
        %3191 = vmatpush1.bf16.msra.mxu0 %v3148
        %3192 = vmatprep.subr.bf16.mxu0 0
        %3193 = vmatpush1.bf16.msra.mxu0 %v3149
        %3194 = vmatprep.subr.bf16.mxu0 0
        %3195 = vmatpush1.bf16.msra.mxu0 %v3150
        %3196 = vmatprep.subr.bf16.mxu0 0
        %3197 = vmatpush1.bf16.msra.mxu0 %v3151
        %3198 = vmatprep.subr.bf16.mxu0 0
        %3199 = vmatpush1.bf16.msra.mxu0 %v3152
        %3200 = vmatprep.subr.bf16.mxu0 0
        %3201 = vmatpush1.bf16.msra.mxu0 %v3153
        %3202 = vmatprep.mubr.bf16.mxu0 %v3073
        %3203 = vmatmul.mubr.bf16.gmra.mrb[0].mxu0 %v3072
        %v3204 = vpop.f32.mrb[0].mxu0
        %v3205 = vadd.f32 0.0, %v3204
        %v3206 = vpop.f32.mrb[0].mxu0
        %v3207 = vpop.f32.mrb[0].mxu0
        %v3208 = vadd.f32 0.0, %v3207
        %v3209 = vpop.f32.mrb[0].mxu0
        %3210 = vdwg.mxu0
        %3211 = vst [vmem:[%s337] sm:$0xff] %v3205
        %3212 = vst [vmem:[%s337 + $0x8] sm:$0xff] %v3208
        %v3215 = vrot.slane %v643, 4
        %v3216 = vrot.slane %v644, 4
        %v3221 = vrot.slane %v1219, 4
        %v3222 = vrot.slane %v1220, 4
        %v3227 = vrot.slane %v1795, 4
        %v3228 = vrot.slane %v1796, 4
        %v3233 = vrot.slane %v2371, 4
        %v3234 = vrot.slane %v2372, 4
        %v3237 = vsel %vm2722, %v3215, %v931
        %v3238 = vsel %vm2722, %v3216, %v932
        %v3239 = vsel %vm2722, %v3221, %v1507
        %v3240 = vsel %vm2722, %v3222, %v1508
        %v3241 = vsel %vm2722, %v3227, %v2083
        %v3242 = vsel %vm2722, %v3228, %v2084
        %v3243 = vsel %vm2722, %v3233, %v2659
        %v3244 = vsel %vm2722, %v3234, %v2660
        %3245 = vmatprep.subr.mxu0 %v3238
        %3246 = vmatpush1.xpose.msra.mxu0 %v3237
        %3247 = vmatprep.subr.mxu0 %v3240
        %3248 = vmatpush1.xpose.msra.mxu0 %v3239
        %3249 = vmatprep.subr.mxu0 %v3242
        %3250 = vmatpush1.xpose.msra.mxu0 %v3241
        %3251 = vmatprep.subr.mxu0 %v3244
        %3252 = vmatpush1.xpose.msra.mxu0 %v3243
        %3253 = vmatprep.subr.mxu0 0.0
        %3254 = vmatpush1.xpose.msra.mxu0 0.0
        %3255 = vmatprep.subr.mxu0 0.0
        %3256 = vmatpush1.xpose.msra.mxu0 0.0
        %3257 = vmatprep.subr.mxu0 0.0
        %3258 = vmatpush1.xpose.msra.mxu0 0.0
        %3259 = vmatprep.subr.mxu0 0.0
        %3260 = vmatpush1.xpose.msra.mxu0 0.0
        %3261 = vmatprep.subr.mxu0 0.0
        %3262 = vmatpush1.xpose.msra.mxu0 0.0
        %3263 = vmatprep.subr.mxu0 0.0
        %3264 = vmatpush1.xpose.msra.mxu0 0.0
        %3265 = vmatprep.subr.mxu0 0.0
        %3266 = vmatpush1.xpose.msra.mxu0 0.0
        %3267 = vmatprep.subr.mxu0 0.0
        %3268 = vmatpush1.xpose.msra.mxu0 0.0
        %3269 = vmatprep.subr.mxu0 0.0
        %3270 = vmatpush1.xpose.msra.mxu0 0.0
        %3271 = vmatprep.subr.mxu0 0.0
        %3272 = vmatpush1.xpose.msra.mxu0 0.0
        %3273 = vmatprep.subr.mxu0 0.0
        %3274 = vmatpush1.xpose.msra.mxu0 0.0
        %3275 = vmatprep.subr.mxu0 0.0
        %3276 = vmatpush1.xpose.msra.mxu0 0.0
        %3277 = vmatprep.subr.mxu0 0.0
        %3278 = vmatpush1.xpose.msra.mxu0 0.0
        %3279 = vmatprep.subr.mxu0 0.0
        %3280 = vmatpush1.xpose.msra.mxu0 0.0
        %3281 = vmatprep.subr.mxu0 0.0
        %3282 = vmatpush1.xpose.msra.mxu0 0.0
        %3283 = vmatprep.subr.mxu0 0.0
        %3284 = vmatpush1.xpose.msra.mxu0 0.0
        %3285 = vmatprep.subr.mxu0 0.0
        %3286 = vmatpush1.xpose.msra.mxu0 0.0
        %3287 = vmatprep.subr.mxu0 0.0
        %3288 = vmatpush1.xpose.msra.mxu0 0.0
        %3289 = vmatprep.subr.mxu0 0.0
        %3290 = vmatpush1.xpose.msra.mxu0 0.0
        %3291 = vmatprep.subr.mxu0 0.0
        %3292 = vmatpush1.xpose.msra.mxu0 0.0
        %3293 = vmatprep.subr.mxu0 0.0
        %3294 = vmatpush1.xpose.msra.mxu0 0.0
        %3295 = vmatprep.subr.mxu0 0.0
        %3296 = vmatpush1.xpose.msra.mxu0 0.0
        %3297 = vmatprep.subr.mxu0 0.0
        %3298 = vmatpush1.xpose.msra.mxu0 0.0
        %3299 = vmatprep.subr.mxu0 0.0
        %3300 = vmatpush1.xpose.msra.mxu0 0.0
        %3301 = vmatprep.subr.mxu0 0.0
        %3302 = vmatpush1.xpose.msra.mxu0 0.0
        %3303 = vmatprep.subr.mxu0 0.0
        %3304 = vmatpush1.xpose.msra.mxu0 0.0
        %3305 = vmatprep.subr.mxu0 0.0
        %3306 = vmatpush1.xpose.msra.mxu0 0.0
        %3307 = vmatprep.subr.mxu0 0.0
        %3308 = vmatpush1.xpose.msra.mxu0 0.0
        %3309 = vmatprep.mubr.f32.mxu0 %v3238
        %3310 = vmatmul.mubr.f32.gmra.mrb[0].mxu0 %v3237
        %v3311 = vpop.f32.mrb[0].mxu0
        %v3312 = vadd.f32 0.0, %v3311
        %v3313 = vpop.f32.mrb[0].mxu0
        %3314 = vmatprep.mubr.f32.mxu0 %v3240
        %3315 = vmatmul.mubr.f32.gmra.mrb[0].mxu0 %v3239
        %v3316 = vpop.f32.mrb[0].mxu0
        %v3317 = vadd.f32 0.0, %v3316
        %v3318 = vpop.f32.mrb[0].mxu0
        %3319 = vmatprep.mubr.f32.mxu0 %v3242
        %3320 = vmatmul.mubr.f32.gmra.mrb[0].mxu0 %v3241
        %v3321 = vpop.f32.mrb[0].mxu0
        %v3322 = vadd.f32 0.0, %v3321
        %v3323 = vpop.f32.mrb[0].mxu0
        %3324 = vmatprep.mubr.f32.mxu0 %v3244
        %3325 = vmatmul.mubr.f32.gmra.mrb[0].mxu0 %v3243
        %v3326 = vpop.f32.mrb[0].mxu0
        %v3327 = vadd.f32 0.0, %v3326
        %v3328 = vpop.f32.mrb[0].mxu0
        %3329 = vdwg.mxu0
        %v3330 = vmul.f32 %v3312, 0.0625
        %v3331 = vmul.f32 %v3317, 0.0625
        %v3332 = vmul.f32 %v3322, 0.0625
        %v3333 = vmul.f32 %v3327, 0.0625
        %v3334 = vsel %vm2820, %v3330, -inf
        %3335 = vmax.xlane.f32.xlu0 %v3334
        %v3336 = vpop.xlane.xlu0 %3335
        %v3337 = vsel %vm2820, %v3331, -inf
        %3338 = vmax.xlane.f32.xlu0 %v3337
        %v3339 = vpop.xlane.xlu0 %3338
        %v3340 = vsel %vm2820, %v3332, -inf
        %3341 = vmax.xlane.f32.xlu0 %v3340
        %v3342 = vpop.xlane.xlu0 %3341
        %v3343 = vsel %vm2820, %v3333, -inf
        %3344 = vmax.xlane.f32.xlu0 %v3343
        %v3345 = vpop.xlane.xlu0 %3344
        %v3346 = vsub.f32 %v3330, %v3336
        %v3347 = vsub.f32 %v3331, %v3339
        %v3348 = vsub.f32 %v3332, %v3342
        %v3349 = vsub.f32 %v3333, %v3345
        %v3350 = vmul.f32 %v3346, 1.442695
        %v3351 = vpow.pop %v3350
        %v3352 = vmul.f32 %v3347, 1.442695
        %v3353 = vpow.pop %v3352
        %v3354 = vmul.f32 %v3348, 1.442695
        %v3355 = vpow.pop %v3354
        %v3356 = vmul.f32 %v3349, 1.442695
        %v3357 = vpow.pop %v3356
        %v3358 = vsel %vm2820, %v3351, 0.0
        %3359 = vadd.xlane.f32.xlu0 %v3358
        %v3360 = vpop.xlane.xlu0 %3359
        %v3361 = vsel %vm2820, %v3353, 0.0
        %3362 = vadd.xlane.f32.xlu0 %v3361
        %v3363 = vpop.xlane.xlu0 %3362
        %v3364 = vsel %vm2820, %v3355, 0.0
        %3365 = vadd.xlane.f32.xlu0 %v3364
        %v3366 = vpop.xlane.xlu0 %3365
        %v3367 = vsel %vm2820, %v3357, 0.0
        %3368 = vadd.xlane.f32.xlu0 %v3367
        %v3369 = vpop.xlane.xlu0 %3368
        %v3370 = vrcp.pop %v3360
        %v3371 = vrcp.pop %v3363
        %v3372 = vrcp.pop %v3366
        %v3373 = vrcp.pop %v3369
        %v3374 = vmul.f32 %v3351, %v3370
        %v3375 = vmul.f32 %v3353, %v3371
        %v3376 = vmul.f32 %v3355, %v3372
        %v3377 = vmul.f32 %v3357, %v3373
        %v3379 = vsel %vm2820, %v3374, 0
        %v3382 = vsel %vm2820, %v3375, 0
        %v3385 = vsel %vm2820, %v3376, 0
        %v3388 = vsel %vm2820, %v3377, 0
        %3390 = vmatprep.subr.mxu0 %v3238
        %3391 = vmatpush1.msra.mxu0 %v3237
        %3392 = vmatprep.subr.mxu0 %v3240
        %3393 = vmatpush1.msra.mxu0 %v3239
        %3394 = vmatprep.subr.mxu0 %v3242
        %3395 = vmatpush1.msra.mxu0 %v3241
        %3396 = vmatprep.subr.mxu0 %v3244
        %3397 = vmatpush1.msra.mxu0 %v3243
        %3398 = vmatprep.subr.mxu0 0.0
        %3399 = vmatpush1.msra.mxu0 0.0
        %3400 = vmatprep.subr.mxu0 0.0
        %3401 = vmatpush1.msra.mxu0 0.0
        %3402 = vmatprep.subr.mxu0 0.0
        %3403 = vmatpush1.msra.mxu0 0.0
        %3404 = vmatprep.subr.mxu0 0.0
        %3405 = vmatpush1.msra.mxu0 0.0
        %3406 = vmatprep.subr.mxu0 0.0
        %3407 = vmatpush1.msra.mxu0 0.0
        %3408 = vmatprep.subr.mxu0 0.0
        %3409 = vmatpush1.msra.mxu0 0.0
        %3410 = vmatprep.subr.mxu0 0.0
        %3411 = vmatpush1.msra.mxu0 0.0
        %3412 = vmatprep.subr.mxu0 0.0
        %3413 = vmatpush1.msra.mxu0 0.0
        %3414 = vmatprep.subr.mxu0 0.0
        %3415 = vmatpush1.msra.mxu0 0.0
        %3416 = vmatprep.subr.mxu0 0.0
        %3417 = vmatpush1.msra.mxu0 0.0
        %3418 = vmatprep.subr.mxu0 0.0
        %3419 = vmatpush1.msra.mxu0 0.0
        %3420 = vmatprep.subr.mxu0 0.0
        %3421 = vmatpush1.msra.mxu0 0.0
        %3422 = vmatprep.subr.mxu0 0.0
        %3423 = vmatpush1.msra.mxu0 0.0
        %3424 = vmatprep.subr.mxu0 0.0
        %3425 = vmatpush1.msra.mxu0 0.0
        %3426 = vmatprep.subr.mxu0 0.0
        %3427 = vmatpush1.msra.mxu0 0.0
        %3428 = vmatprep.subr.mxu0 0.0
        %3429 = vmatpush1.msra.mxu0 0.0
        %3430 = vmatprep.subr.mxu0 0.0
        %3431 = vmatpush1.msra.mxu0 0.0
        %3432 = vmatprep.subr.mxu0 0.0
        %3433 = vmatpush1.msra.mxu0 0.0
        %3434 = vmatprep.subr.mxu0 0.0
        %3435 = vmatpush1.msra.mxu0 0.0
        %3436 = vmatprep.subr.mxu0 0.0
        %3437 = vmatpush1.msra.mxu0 0.0
        %3438 = vmatprep.subr.mxu0 0.0
        %3439 = vmatpush1.msra.mxu0 0.0
        %3440 = vmatprep.subr.mxu0 0.0
        %3441 = vmatpush1.msra.mxu0 0.0
        %3442 = vmatprep.subr.mxu0 0.0
        %3443 = vmatpush1.msra.mxu0 0.0
        %3444 = vmatprep.subr.mxu0 0.0
        %3445 = vmatpush1.msra.mxu0 0.0
        %3446 = vmatprep.subr.mxu0 0.0
        %3447 = vmatpush1.msra.mxu0 0.0
        %3448 = vmatprep.subr.mxu0 0.0
        %3449 = vmatpush1.msra.mxu0 0.0
        %3450 = vmatprep.subr.mxu0 0.0
        %3451 = vmatpush1.msra.mxu0 0.0
        %3452 = vmatprep.subr.mxu0 0.0
        %3453 = vmatpush1.msra.mxu0 0.0
        %3454 = vmatprep.mubr.f32.mxu0 0.0
        %3455 = vmatmul.mubr.f32.gmra.mrb[0].mxu0 %v3379
        %v3456 = vpop.f32.mrb[0].mxu0
        %v3457 = vadd.f32 0.0, %v3456
        %v3458 = vpop.f32.mrb[0].mxu0
        %v3459 = vadd.f32 0.0, %v3458
        %3460 = vmatprep.mubr.f32.mxu0 0.0
        %3461 = vmatmul.mubr.f32.gmra.mrb[0].mxu0 %v3382
        %v3462 = vpop.f32.mrb[0].mxu0
        %v3463 = vadd.f32 0.0, %v3462
        %v3464 = vpop.f32.mrb[0].mxu0
        %v3465 = vadd.f32 0.0, %v3464
        %3466 = vmatprep.mubr.f32.mxu0 0.0
        %3467 = vmatmul.mubr.f32.gmra.mrb[0].mxu0 %v3385
        %v3468 = vpop.f32.mrb[0].mxu0
        %v3469 = vadd.f32 0.0, %v3468
        %v3470 = vpop.f32.mrb[0].mxu0
        %v3471 = vadd.f32 0.0, %v3470
        %3472 = vmatprep.mubr.f32.mxu0 0.0
        %3473 = vmatmul.mubr.f32.gmra.mrb[0].mxu0 %v3388
        %v3474 = vpop.f32.mrb[0].mxu0
        %v3475 = vadd.f32 0.0, %v3474
        %v3476 = vpop.f32.mrb[0].mxu0
        %v3477 = vadd.f32 0.0, %v3476
        %3478 = vdwg.mxu0
        %v3479 = vmul.f32 %v2966, %v3457
        %v3480 = vmul.f32 %v2966, %v3459
        %v3481 = vmul.f32 %v2966, %v3463
        %v3482 = vmul.f32 %v2966, %v3465
        %v3483 = vmul.f32 %v2966, %v3469
        %v3484 = vmul.f32 %v2966, %v3471
        %v3485 = vmul.f32 %v2966, %v3475
        %v3486 = vmul.f32 %v2966, %v3477
        %v3487 = vadd.f32 %v3479, %v3237
        %v3488 = vadd.f32 %v3480, %v3238
        %v3489 = vadd.f32 %v3481, %v3239
        %v3490 = vadd.f32 %v3482, %v3240
        %v3491 = vadd.f32 %v3483, %v3241
        %v3492 = vadd.f32 %v3484, %v3242
        %v3493 = vadd.f32 %v3485, %v3243
        %v3494 = vadd.f32 %v3486, %v3244
        %v3495 = vpack.c.bf16 %v3489, %v3487
        %v3496 = vpack.c.bf16 %v3490, %v3488
        %v3497 = vpack.c.bf16 %v3493, %v3491
        %v3498 = vpack.c.bf16 %v3494, %v3492
        %3499 = vmatprep.subr.bf16.mxu0 %v3496
        %3500 = vmatpush1.bf16.msra.mxu0 %v3495
        %3501 = vmatprep.subr.bf16.mxu0 %v3498
        %3502 = vmatpush1.bf16.msra.mxu0 %v3497
        %3503 = vmatprep.subr.bf16.mxu0 0
        %3504 = vmatpush1.bf16.msra.mxu0 0
        %3505 = vmatprep.subr.bf16.mxu0 0
        %3506 = vmatpush1.bf16.msra.mxu0 0
        %3507 = vmatprep.subr.bf16.mxu0 0
        %3508 = vmatpush1.bf16.msra.mxu0 0
        %3509 = vmatprep.subr.bf16.mxu0 0
        %3510 = vmatpush1.bf16.msra.mxu0 0
        %3511 = vmatprep.subr.bf16.mxu0 0
        %3512 = vmatpush1.bf16.msra.mxu0 0
        %3513 = vmatprep.subr.bf16.mxu0 0
        %3514 = vmatpush1.bf16.msra.mxu0 0
        %3515 = vmatprep.subr.bf16.mxu0 0
        %3516 = vmatpush1.bf16.msra.mxu0 0
        %3517 = vmatprep.subr.bf16.mxu0 0
        %3518 = vmatpush1.bf16.msra.mxu0 0
        %3519 = vmatprep.subr.bf16.mxu0 0
        %3520 = vmatpush1.bf16.msra.mxu0 0
        %3521 = vmatprep.subr.bf16.mxu0 0
        %3522 = vmatpush1.bf16.msra.mxu0 0
        %3523 = vmatprep.subr.bf16.mxu0 0
        %3524 = vmatpush1.bf16.msra.mxu0 0
        %3525 = vmatprep.subr.bf16.mxu0 0
        %3526 = vmatpush1.bf16.msra.mxu0 0
        %3527 = vmatprep.subr.bf16.mxu0 0
        %3528 = vmatpush1.bf16.msra.mxu0 0
        %3529 = vmatprep.subr.bf16.mxu0 0
        %3530 = vmatpush1.bf16.msra.mxu0 0
        %3531 = vmatprep.mubr.bf16.mxu0 0
        %3532 = vmatmul.mubr.bf16.gmra.mrb[0].mxu0 %v3003
        %v3533 = vpop.f32.mrb[0].mxu0
        %v3534 = vadd.f32 %v2990, %v3533
        %v3535 = vpop.f32.mrb[0].mxu0
        %v3536 = vadd.f32 %v2990, %v3535
        %v3537 = vpop.f32.mrb[0].mxu0
        %v3538 = vadd.f32 %v2995, %v3537
        %v3539 = vpop.f32.mrb[0].mxu0
        %v3540 = vadd.f32 %v2995, %v3539
        %3541 = vdwg.mxu0
        %vm3542 = vcmp.gt.f32.partialorder %v3534, 0.0
        %vm3543 = vcmp.gt.f32.partialorder %v3536, 0.0
        %vm3544 = vcmp.gt.f32.partialorder %v3538, 0.0
        %vm3545 = vcmp.gt.f32.partialorder %v3540, 0.0
        %v3546 = vmin.f32 %v3534, 0.0
        %v3547 = vmin.f32 %v3536, 0.0
        %v3548 = vmin.f32 %v3538, 0.0
        %v3549 = vmin.f32 %v3540, 0.0
        %v3550 = vmul.f32 %v3546, 1.442695
        %v3551 = vpow.pop %v3550
        %v3552 = vmul.f32 %v3547, 1.442695
        %v3553 = vpow.pop %v3552
        %v3554 = vmul.f32 %v3548, 1.442695
        %v3555 = vpow.pop %v3554
        %v3556 = vmul.f32 %v3549, 1.442695
        %v3557 = vpow.pop %v3556
        %v3558 = vsub.f32 %v3551, 1.0
        %v3559 = vsub.f32 %v3553, 1.0
        %v3560 = vsub.f32 %v3555, 1.0
        %v3561 = vsub.f32 %v3557, 1.0
        %v3562 = vsel %vm3542, %v3534, %v3558
        %v3563 = vsel %vm3543, %v3536, %v3559
        %v3564 = vsel %vm3544, %v3538, %v3560
        %v3565 = vsel %vm3545, %v3540, %v3561
        %v3566 = vpack.c.bf16 %v3564, %v3562
        %v3567 = vpack.c.bf16 %v3565, %v3563
        %3568 = vmatprep.subr.bf16.mxu0 0
        %3569 = vmatpush1.bf16.msra.mxu0 %v3138
        %3570 = vmatprep.subr.bf16.mxu0 0
        %3571 = vmatpush1.bf16.msra.mxu0 %v3139
        %3572 = vmatprep.subr.bf16.mxu0 0
        %3573 = vmatpush1.bf16.msra.mxu0 %v3140
        %3574 = vmatprep.subr.bf16.mxu0 0
        %3575 = vmatpush1.bf16.msra.mxu0 %v3141
        %3576 = vmatprep.subr.bf16.mxu0 0
        %3577 = vmatpush1.bf16.msra.mxu0 %v3142
        %3578 = vmatprep.subr.bf16.mxu0 0
        %3579 = vmatpush1.bf16.msra.mxu0 %v3143
        %3580 = vmatprep.subr.bf16.mxu0 0
        %3581 = vmatpush1.bf16.msra.mxu0 %v3144
        %3582 = vmatprep.subr.bf16.mxu0 0
        %3583 = vmatpush1.bf16.msra.mxu0 %v3145
        %3584 = vmatprep.subr.bf16.mxu0 0
        %3585 = vmatpush1.bf16.msra.mxu0 %v3146
        %3586 = vmatprep.subr.bf16.mxu0 0
        %3587 = vmatpush1.bf16.msra.mxu0 %v3147
        %3588 = vmatprep.subr.bf16.mxu0 0
        %3589 = vmatpush1.bf16.msra.mxu0 %v3148
        %3590 = vmatprep.subr.bf16.mxu0 0
        %3591 = vmatpush1.bf16.msra.mxu0 %v3149
        %3592 = vmatprep.subr.bf16.mxu0 0
        %3593 = vmatpush1.bf16.msra.mxu0 %v3150
        %3594 = vmatprep.subr.bf16.mxu0 0
        %3595 = vmatpush1.bf16.msra.mxu0 %v3151
        %3596 = vmatprep.subr.bf16.mxu0 0
        %3597 = vmatpush1.bf16.msra.mxu0 %v3152
        %3598 = vmatprep.subr.bf16.mxu0 0
        %3599 = vmatpush1.bf16.msra.mxu0 %v3153
        %3600 = vmatprep.mubr.bf16.mxu0 %v3567
        %3601 = vmatmul.mubr.bf16.gmra.mrb[0].mxu0 %v3566
        %v3602 = vpop.f32.mrb[0].mxu0
        %v3603 = vadd.f32 0.0, %v3602
        %v3604 = vpop.f32.mrb[0].mxu0
        %v3605 = vpop.f32.mrb[0].mxu0
        %v3606 = vadd.f32 0.0, %v3605
        %v3607 = vpop.f32.mrb[0].mxu0
        %3608 = vdwg.mxu0
        %s3609 = scalar_lea.vmem %s337, 16 [#allocation12]
        %3610 = vst [vmem:[%s3609] sm:$0xff] %v3603
        %3611 = vst [vmem:[%s3609 + $0x8] sm:$0xff] %v3606
        %s3612 = sand.u32 %s188, 1
        %s3613 = scalar_lea.sflag [#allocation5], %s3612
        %s3614 = sand.u32 %s188, 1
        %s3615 = smul.addr %s3614, 32
        %s3616 = scalar_lea.vmem [#allocation12], %s3615
        // Predicated region
        $region65: #{tpu_custom_call.1} parent=47 // pred_check
          %p3617 = pneg %p198
        $region66: #{tpu_custom_call.1} parent=47 // pred_check_branch
          %3619 = sbr.rel (%p3617) target = $region68
        $region67: #{tpu_custom_call.1} parent=47 // pred_region
          %s3620 = smul.u32 2, %s28
          %s3622 = ssub.s32 512, 512
          %3623 = vsyncadd %s3613, %s3622
          %s3624 = smul.addr %s3620, 2
          %s3625 = smul.addr %s3624, 128
          %s3626 = scalar_lea.hbm %s7, %s3625
          %s3627 = sshll.u32 %s3616, 4
          %s3628 = int_to_ptr.vmem [resolvable:$true] %s3627
          %3633 = dma.vmem_to_hbm [thread:$0]  %s3628, 512, %s3626, %s3613, 128, 128, 8
        $region68: #{tpu_custom_call.1} parent=47 // pred_fallthru
          _
      $region48: #{tpu_custom_call.1} parent=5 // pred_fallthru
        _
      %p3634 = scmp.le.s32.totalorder 2, %s23
      // Predicated region
      $region69: #{tpu_custom_call.1} parent=5 // pred_check
        %p3635 = pneg %p3634
      $region70: #{tpu_custom_call.1} parent=5 // pred_check_branch
        %3637 = sbr.rel (%p3635) target = $region72
      $region71: #{tpu_custom_call.1} parent=5 // pred_region
        %s3638 = ssub.s32 %s23, 2
        // Predicated region
        $region73: #{tpu_custom_call.1} parent=71 // pred_check
          %p3639 = pneg %p204
        $region74: #{tpu_custom_call.1} parent=71 // pred_check_branch
          %3641 = sbr.rel (%p3639) target = $region76
        $region75: #{tpu_custom_call.1} parent=71 // pred_region
          %s3642 = sand.u32 %s189, 1
          %s3643 = scalar_lea.sflag [#allocation5], %s3642
          %s3644 = sand.u32 %s189, 1
          %s3645 = smul.addr %s3644, 32
          %s3646 = scalar_lea.vmem [#allocation12], %s3645
          %3647 = dma.done %s3643, 512
        $region76: #{tpu_custom_call.1} parent=71 // pred_fallthru
          _
      $region72: #{tpu_custom_call.1} parent=5 // pred_fallthru
        _
    $region6: #{tpu_custom_call.1} parent=1 // loop_footer
      %s27 = sadd.s32 1, %s23
    $region7: #{tpu_custom_call.1} parent=1 // loop_footer_branch
      %22 = sbr.rel target = $region3
    $region8: #{tpu_custom_call.1} parent=1 // loop_exit
      _
    %3648 = vsyncpa [#allocation4], 1
    %s3649 = scalar_lea.sflag [#allocation4], 1
    %3650 = vsyncpa %s3649, 1
    %3651 = vsyncpa [#allocation11], 1
    %3652 = vsyncpa [#allocation5], 1
    %s3653 = scalar_lea.sflag [#allocation5], 1
    %3654 = vsyncpa %s3653, 1
    %3655 = vsyncpa [#allocation6], 1
    %s3656 = scalar_lea.sflag [#allocation6], 1
    %3657 = vsyncpa %s3656, 1
    %3658 = vsyncpa [#allocation9], 1

</llo_original>
